<compile_context>
chip_gen: v7x
topology: tpu7x:2x2x1
jax: 0.10.0
libtpu: 0.0.40
codegen_flags: <defaults>
</compile_context>

<pallas_src>
import jax
import jax.numpy as jnp
from jax import lax
from jax.experimental import pallas as pl
from jax.experimental.pallas import tpu as pltpu

HIDDEN = 150       # fixed by the module: nn.Linear(embedding_dimension, 150)
NEG_INF = -1e30    # bias for padded logit columns -> exp() == 0 in log-softmax


def _round_up(x, m):
    return (x + m - 1) // m * m


def cbow_kernel(ids_ref, emb_ref, w1_ref, b1_ref, w2_ref, b2_ref, out_ref):
    tb, C = ids_ref.shape
    v_pad = emb_ref.shape[0]

    # Fused embedding lookup + context sum as a one-hot matmul on the MXU:
    #   counts[b, v] = #{c : ids[b, c] == v};   emb_sum = counts @ emb_table
    # counts accumulate as int32, single cast to f32 at the end.
    vocab_iota = lax.broadcasted_iota(jnp.int32, (tb, v_pad), 1)
    counts_i = (vocab_iota == ids_ref[:, 0:1]).astype(jnp.int32)
    for c in range(1, C):  # static unroll; C is tiny
        counts_i = counts_i + (vocab_iota == ids_ref[:, c:c + 1]).astype(jnp.int32)
    counts = counts_i.astype(jnp.float32)

    emb_sum = jnp.dot(counts, emb_ref[...],
                      preferred_element_type=jnp.float32,
                      precision=lax.Precision.HIGHEST)              # [tb, D_pad]

    # Linear(D, 150) (zero-padded to 256 lanes) + ReLU (zero pad is neutral).
    h = jnp.dot(emb_sum, w1_ref[...],
                preferred_element_type=jnp.float32,
                precision=lax.Precision.HIGHEST) + b1_ref[...]      # [tb, H_pad]
    h = jnp.maximum(h, 0.0)

    # Linear(150, D).  Padded hidden rows of w2 are zero; padded D columns get
    # bias = NEG_INF so they vanish in the softmax normalization below.
    logits = jnp.dot(h, w2_ref[...],
                     preferred_element_type=jnp.float32,
                     precision=lax.Precision.HIGHEST) + b2_ref[...]  # [tb, D_pad]

    # Numerically stable LogSoftmax over the last dim.
    m = jnp.max(logits, axis=-1, keepdims=True)
    shifted = logits - m
    lse = jnp.log(jnp.sum(jnp.exp(shifted), axis=-1, keepdims=True))
    out_ref[...] = shifted - lse


def prepare_params(emb_table, w1, b1, w2, b2):
    """One-time parameter preparation (hoisted out of the per-call hot path).

    Linear weights are stored [in, out] (transpose of PyTorch's [out, in]).
    Pads: vocab -> mult of 128 (zero rows), D -> mult of 128 (zero weight cols,
    NEG_INF output-bias entries), hidden 150 -> mult of 128 (zeros)."""
    vocab, D = emb_table.shape
    d_in, H = w1.shape
    assert d_in == D and w2.shape == (H, D) and b1.shape == (H,) and b2.shape == (D,)

    v_pad = _round_up(vocab, 128)
    d_pad = _round_up(D, 128)
    h_pad = _round_up(H, 128)

    emb_p = jnp.pad(emb_table.astype(jnp.float32),
                    ((0, v_pad - vocab), (0, d_pad - D)))
    w1_p = jnp.pad(w1.astype(jnp.float32), ((0, d_pad - D), (0, h_pad - H)))
    b1_p = jnp.pad(b1.astype(jnp.float32), (0, h_pad - H)).reshape(1, h_pad)
    w2_p = jnp.pad(w2.astype(jnp.float32), ((0, h_pad - H), (0, d_pad - D)))
    b2_p = jnp.concatenate(
        [b2.astype(jnp.float32), jnp.full((d_pad - D,), NEG_INF, jnp.float32)]
    ).reshape(1, d_pad)

    return {"emb": emb_p, "w1": w1_p, "b1": b1_p, "w2": w2_p, "b2": b2_p,
            "vocab": vocab, "D": D}


def cbow_forward(context_ids, params, *, block_b=128):
    """context_ids: [B, C] (or [C]) int; returns [B, D] log-probabilities
    ([1, D] for a single context, matching the PyTorch module)."""
    if context_ids.ndim == 1:
        context_ids = context_ids[None, :]
    context_ids = context_ids.astype(jnp.int32)
    B, C = context_ids.shape

    emb_p, w1_p, b1_p, w2_p, b2_p = (params[k] for k in ("emb", "w1", "b1", "w2", "b2"))
    D = params["D"]
    v_pad, d_pad = emb_p.shape
    h_pad = w1_p.shape[1]

    # Batch tiling: blocks of up to `block_b` rows (multiple of 8 sublanes).
    tb = min(_round_up(B, 8), _round_up(block_b, 8))
    b_pad = _round_up(B, tb)
    if b_pad != B:
        context_ids = jnp.pad(context_ids, ((0, b_pad - B), (0, 0)))
    grid = (b_pad // tb,)

    def full_spec(shape):
        return pl.BlockSpec(shape, lambda i: (0,) * len(shape))

    flops = 2 * b_pad * (v_pad * d_pad + d_pad * h_pad + h_pad * d_pad)
    bytes_accessed = 4 * (b_pad * C + v_pad * d_pad + d_pad * h_pad + h_pad
                          + h_pad * d_pad + d_pad + b_pad * d_pad)

    out = pl.pallas_call(
        cbow_kernel,
        out_shape=jax.ShapeDtypeStruct((b_pad, d_pad), jnp.float32),
        grid=grid,
        in_specs=[
            pl.BlockSpec((tb, C), lambda i: (i, 0)),   # context-id block per step
            full_spec(emb_p.shape),                    # weights stay resident
            full_spec(w1_p.shape),
            full_spec(b1_p.shape),
            full_spec(w2_p.shape),
            full_spec(b2_p.shape),
        ],
        out_specs=pl.BlockSpec((tb, d_pad), lambda i: (i, 0)),
        compiler_params=pltpu.CompilerParams(
            dimension_semantics=("parallel",)),        # shards batch across v7x TCs
        cost_estimate=pl.CostEstimate(
            flops=flops,
            transcendentals=b_pad * (d_pad + 1),
            bytes_accessed=bytes_accessed),
    )(context_ids, emb_p, w1_p, b1_p, w2_p, b2_p)

    return out[:B, :D]


def reference_forward(context_ids, emb_table, w1, b1, w2, b2):
    if context_ids.ndim == 1:
        context_ids = context_ids[None, :]
    emb = jnp.sum(jnp.take(emb_table, context_ids, axis=0), axis=1)      # [B, D]
    h = jnp.maximum(jnp.dot(emb, w1, precision=lax.Precision.HIGHEST) + b1, 0.0)
    logits = jnp.dot(h, w2, precision=lax.Precision.HIGHEST) + b2
    return jax.nn.log_softmax(logits, axis=-1)


if __name__ == "__main__":
    vocab = 64
    embedding_dimension = 32
    context_size = 4       # e.g. window of 2 words on each side
    batch = 256            # fills MXU rows; 2 grid blocks of 128 rows

    key = jax.random.PRNGKey(0)
    k_emb, k_w1, k_b1, k_w2, k_b2, k_ctx = jax.random.split(key, 6)

    # deterministic synthetic parameters (mirroring PyTorch init styles)
    emb_table = jax.random.normal(k_emb, (vocab, embedding_dimension), jnp.float32)
    lim1 = 1.0 / jnp.sqrt(embedding_dimension)
    w1 = jax.random.uniform(k_w1, (embedding_dimension, HIDDEN), jnp.float32, -lim1, lim1)
    b1 = jax.random.uniform(k_b1, (HIDDEN,), jnp.float32, -lim1, lim1)
    lim2 = 1.0 / jnp.sqrt(HIDDEN)
    w2 = jax.random.uniform(k_w2, (HIDDEN, embedding_dimension), jnp.float32, -lim2, lim2)
    b2 = jax.random.uniform(k_b2, (embedding_dimension,), jnp.float32, -lim2, lim2)

    context_ids = jax.random.randint(k_ctx, (batch, context_size), 0, vocab, jnp.int32)

    # One-time parameter prep (padding hoisted off the per-call hot path).
    params = prepare_params(emb_table, w1, b1, w2, b2)

    # Batched forward
    out = jax.block_until_ready(cbow_forward(context_ids, params))
    ref = reference_forward(context_ids, emb_table, w1, b1, w2, b2)
    assert out.shape == (batch, embedding_dimension)
    assert jnp.allclose(out, ref, atol=1e-5, rtol=1e-5)

    # Single-context call (original PyTorch module semantics: returns [1, D])
    out1 = jax.block_until_ready(cbow_forward(context_ids[0], params))
    assert out1.shape == (1, embedding_dimension)
    assert jnp.allclose(out1, ref[0:1], atol=1e-5, rtol=1e-5)

    print("KERNEL_OK")
</pallas_src>

<mosaic_0001>
module attributes {stable_mosaic.version = 11 : i64} {
  func.func @cbow_kernel(%arg0: i32, %arg1: memref<128x4xi32, #tpu.memory_space<vmem>>, %arg2: memref<128x128xf32, #tpu.memory_space<vmem>>, %arg3: memref<128x256xf32, #tpu.memory_space<vmem>>, %arg4: memref<1x256xf32, #tpu.memory_space<vmem>>, %arg5: memref<256x128xf32, #tpu.memory_space<vmem>>, %arg6: memref<1x128xf32, #tpu.memory_space<vmem>>, %arg7: memref<128x128xf32, #tpu.memory_space<vmem>>) attributes {dimension_semantics = [#tpu.dimension_semantics<parallel>], iteration_bounds = array<i64: 2>, scalar_prefetch = 0 : i64, scratch_operands = 0 : i64, tpu.core_type = #tpu.core_type<tc>, window_params = [{transform_indices = @transform_0, window_bounds = array<i64: 128, 4>}, {pipeline_mode = #tpu.pipeline_mode<synchronous>, transform_indices = @transform_1, window_bounds = array<i64: 128, 128>}, {pipeline_mode = #tpu.pipeline_mode<synchronous>, transform_indices = @transform_2, window_bounds = array<i64: 128, 256>}, {pipeline_mode = #tpu.pipeline_mode<synchronous>, transform_indices = @transform_3, window_bounds = array<i64: 1, 256>}, {pipeline_mode = #tpu.pipeline_mode<synchronous>, transform_indices = @transform_4, window_bounds = array<i64: 256, 128>}, {pipeline_mode = #tpu.pipeline_mode<synchronous>, transform_indices = @transform_5, window_bounds = array<i64: 1, 128>}, {transform_indices = @transform_6, window_bounds = array<i64: 128, 128>}]} {
    %0 = tpu.iota {dimensions = array<i32: 1>} : vector<128x128xi32>
    %c0 = arith.constant 0 : index
    %c0_0 = arith.constant 0 : index
    %1 = vector.load %arg1[%c0, %c0_0] : memref<128x4xi32, #tpu.memory_space<vmem>>, vector<128x1xi32>
    %2 = vector.broadcast %1 : vector<128x1xi32> to vector<128x128xi32>
    %3 = arith.cmpi eq, %0, %2 : vector<128x128xi32>
    %4 = arith.extui %3 : vector<128x128xi1> to vector<128x128xi32>
    %c0_1 = arith.constant 0 : index
    %c1 = arith.constant 1 : index
    %5 = vector.load %arg1[%c0_1, %c1] : memref<128x4xi32, #tpu.memory_space<vmem>>, vector<128x1xi32>
    %6 = vector.broadcast %5 : vector<128x1xi32> to vector<128x128xi32>
    %7 = arith.cmpi eq, %0, %6 : vector<128x128xi32>
    %8 = arith.extui %7 : vector<128x128xi1> to vector<128x128xi32>
    %9 = arith.addi %4, %8 : vector<128x128xi32>
    %c0_2 = arith.constant 0 : index
    %c2 = arith.constant 2 : index
    %10 = vector.load %arg1[%c0_2, %c2] : memref<128x4xi32, #tpu.memory_space<vmem>>, vector<128x1xi32>
    %11 = vector.broadcast %10 : vector<128x1xi32> to vector<128x128xi32>
    %12 = arith.cmpi eq, %0, %11 : vector<128x128xi32>
    %13 = arith.extui %12 : vector<128x128xi1> to vector<128x128xi32>
    %14 = arith.addi %9, %13 : vector<128x128xi32>
    %c0_3 = arith.constant 0 : index
    %c3 = arith.constant 3 : index
    %15 = vector.load %arg1[%c0_3, %c3] : memref<128x4xi32, #tpu.memory_space<vmem>>, vector<128x1xi32>
    %16 = vector.broadcast %15 : vector<128x1xi32> to vector<128x128xi32>
    %17 = arith.cmpi eq, %0, %16 : vector<128x128xi32>
    %18 = arith.extui %17 : vector<128x128xi1> to vector<128x128xi32>
    %19 = arith.addi %14, %18 : vector<128x128xi32>
    %20 = arith.sitofp %19 : vector<128x128xi32> to vector<128x128xf32>
    %c0_4 = arith.constant 0 : index
    %c0_5 = arith.constant 0 : index
    %21 = vector.load %arg2[%c0_4, %c0_5] : memref<128x128xf32, #tpu.memory_space<vmem>>, vector<128x128xf32>
    %cst = arith.constant dense<0.000000e+00> : vector<128x128xf32>
    %22 = tpu.matmul %20, %21, %cst {dimension_numbers = #tpu.dot_dimension_numbers<[1], [0], [0], [1], [0, 0, 1, 1], [], []>, precision = #tpu.contract_precision<fp32>} : vector<128x128xf32>, vector<128x128xf32>, vector<128x128xf32> -> vector<128x128xf32>
    %c0_6 = arith.constant 0 : index
    %c0_7 = arith.constant 0 : index
    %23 = vector.load %arg3[%c0_6, %c0_7] : memref<128x256xf32, #tpu.memory_space<vmem>>, vector<128x256xf32>
    %cst_8 = arith.constant dense<0.000000e+00> : vector<128x256xf32>
    %24 = tpu.matmul %22, %23, %cst_8 {dimension_numbers = #tpu.dot_dimension_numbers<[1], [0], [0], [1], [0, 0, 1, 1], [], []>, precision = #tpu.contract_precision<fp32>} : vector<128x128xf32>, vector<128x256xf32>, vector<128x256xf32> -> vector<128x256xf32>
    %c0_9 = arith.constant 0 : index
    %c0_10 = arith.constant 0 : index
    %25 = vector.load %arg4[%c0_9, %c0_10] : memref<1x256xf32, #tpu.memory_space<vmem>>, vector<1x256xf32>
    %26 = vector.broadcast %25 : vector<1x256xf32> to vector<128x256xf32>
    %27 = arith.addf %24, %26 : vector<128x256xf32>
    %cst_11 = arith.constant 0.000000e+00 : f32
    %28 = vector.broadcast %cst_11 : f32 to vector<128x256xf32>
    %29 = arith.maximumf %27, %28 : vector<128x256xf32>
    %c0_12 = arith.constant 0 : index
    %c0_13 = arith.constant 0 : index
    %30 = vector.load %arg5[%c0_12, %c0_13] : memref<256x128xf32, #tpu.memory_space<vmem>>, vector<256x128xf32>
    %cst_14 = arith.constant dense<0.000000e+00> : vector<128x128xf32>
    %31 = tpu.matmul %29, %30, %cst_14 {dimension_numbers = #tpu.dot_dimension_numbers<[1], [0], [0], [1], [0, 0, 1, 1], [], []>, precision = #tpu.contract_precision<fp32>} : vector<128x256xf32>, vector<256x128xf32>, vector<128x128xf32> -> vector<128x128xf32>
    %c0_15 = arith.constant 0 : index
    %c0_16 = arith.constant 0 : index
    %32 = vector.load %arg6[%c0_15, %c0_16] : memref<1x128xf32, #tpu.memory_space<vmem>>, vector<1x128xf32>
    %33 = vector.broadcast %32 : vector<1x128xf32> to vector<128x128xf32>
    %34 = arith.addf %31, %33 : vector<128x128xf32>
    %cst_17 = arith.constant dense<0xFF800000> : vector<128xf32>
    %35 = vector.multi_reduction <maximumf>, %34, %cst_17 [1] : vector<128x128xf32> to vector<128xf32>
    %36 = vector.shape_cast %35 : vector<128xf32> to vector<128x1xf32>
    %37 = vector.broadcast %36 : vector<128x1xf32> to vector<128x128xf32>
    %38 = arith.subf %34, %37 : vector<128x128xf32>
    %39 = math.exp %38 : vector<128x128xf32>
    %cst_18 = arith.constant dense<0.000000e+00> : vector<128xf32>
    %40 = vector.multi_reduction <add>, %39, %cst_18 [1] : vector<128x128xf32> to vector<128xf32>
    %41 = vector.shape_cast %40 : vector<128xf32> to vector<128x1xf32>
    %42 = math.log %41 : vector<128x1xf32>
    %43 = vector.broadcast %42 : vector<128x1xf32> to vector<128x128xf32>
    %44 = arith.subf %38, %43 : vector<128x128xf32>
    %c0_19 = arith.constant 0 : index
    %c0_20 = arith.constant 0 : index
    %45 = vector.load %arg7[%c0_19, %c0_20] : memref<128x128xf32, #tpu.memory_space<vmem>>, vector<128x128xf32>
    tpu.vector_store %arg7[%c0_19, %c0_20], %44 {strides = array<i32>} : memref<128x128xf32, #tpu.memory_space<vmem>>, vector<128x128xf32>,
    return
  }
  func.func @transform_0(%arg0: i32) -> (i32, i32) {
    %c0_i32 = arith.constant 0 : i32
    %c0_i32_0 = arith.constant 0 : i32
    return %arg0, %c0_i32 : i32, i32
  }
  func.func @transform_1(%arg0: i32) -> (i32, i32) {
    %c0_i32 = arith.constant 0 : i32
    %c0_i32_0 = arith.constant 0 : i32
    %c0_i32_1 = arith.constant 0 : i32
    return %c0_i32, %c0_i32_0 : i32, i32
  }
  func.func @transform_2(%arg0: i32) -> (i32, i32) {
    %c0_i32 = arith.constant 0 : i32
    %c0_i32_0 = arith.constant 0 : i32
    %c0_i32_1 = arith.constant 0 : i32
    return %c0_i32, %c0_i32_0 : i32, i32
  }
  func.func @transform_3(%arg0: i32) -> (i32, i32) {
    %c0_i32 = arith.constant 0 : i32
    %c0_i32_0 = arith.constant 0 : i32
    %c0_i32_1 = arith.constant 0 : i32
    return %c0_i32, %c0_i32_0 : i32, i32
  }
  func.func @transform_4(%arg0: i32) -> (i32, i32) {
    %c0_i32 = arith.constant 0 : i32
    %c0_i32_0 = arith.constant 0 : i32
    %c0_i32_1 = arith.constant 0 : i32
    return %c0_i32, %c0_i32_0 : i32, i32
  }
  func.func @transform_5(%arg0: i32) -> (i32, i32) {
    %c0_i32 = arith.constant 0 : i32
    %c0_i32_0 = arith.constant 0 : i32
    %c0_i32_1 = arith.constant 0 : i32
    return %c0_i32, %c0_i32_0 : i32, i32
  }
  func.func @transform_6(%arg0: i32) -> (i32, i32) {
    %c0_i32 = arith.constant 0 : i32
    %c0_i32_0 = arith.constant 0 : i32
    return %arg0, %c0_i32 : i32, i32
  }
}

</mosaic_0001>

<llo_original>
// kernel: tpu_custom_call.1
$region0: #{tpu_custom_call.1}
  #allocation0 [shape = 'u32[]', space=smem, size = 0x4, offset = 0x4, fixed_abs, tag = 'smem constant byte address 0x4 - core index']
  #allocation1 [shape = 'u32[144,128]{1,0:T(1,128)}', space=vmem, size = 0x12000, scoped, tag = 'internal scratch']
  %s0 = inlined_call_operand.vmem [shape: s32[256,4], index: 0, kind: input, shape index: {}]
  %s1 = inlined_call_operand.hbm [shape: f32[128,128], index: 1, kind: input, shape index: {}]
  %s2 = inlined_call_operand.vmem [shape: f32[128,256], index: 2, kind: input, shape index: {}]
  %s3 = inlined_call_operand.vmem [shape: f32[1,256], index: 3, kind: input, shape index: {}]
  %s4 = inlined_call_operand.hbm [shape: f32[256,128], index: 4, kind: input, shape index: {}]
  %s5 = inlined_call_operand.vmem [shape: f32[1,128], index: 5, kind: input, shape index: {}]
  %s6 = inlined_call_operand.hbm [shape: f32[256,128], index: 6, kind: output, shape index: {}]
  %s7 = sld [smem:[#allocation0]]
  $region65: #{tpu_custom_call.1} parent=0
    _
  %s9 = ssub.s32 1, %s7
  %s10 = scalar_select 0, %s9, %s7
  $region1: #{tpu_custom_call.1} parent=0
    #allocation2 [shape = 'u8[65536]{0}', space=vmem, size = 0x10000, scoped, tag = 'input window, operand 1, single buffered']
    #allocation3 [shape = 's32[2]{0}', space=sflag, size = 0x8, scoped, tag = 'scoped memory for tpu_custom_call.1']
    #allocation4 [shape = 's32[2]{0}', space=sflag, size = 0x8, scoped, tag = 'scoped memory for tpu_custom_call.1']
    #allocation5 [shape = 'u8[131072]{0}', space=vmem, size = 0x20000, scoped, tag = 'input window, operand 4, single buffered']
    #allocation6 [shape = 's32[1]{0}', space=sflag, size = 0x4, scoped, tag = 'scoped memory for tpu_custom_call.1']
    #allocation7 [shape = 'u8[131072]{0}', space=vmem, size = 0x20000, scoped, tag = 'output window, operand 0']
    %11 = vsyncpa [#allocation3], 0
    %12 = vsyncpa [#allocation6], 0
    %13 = vsyncpa [#allocation4], 0
    %s14 = scalar_lea.sflag [#allocation4], 1
    %15 = vsyncpa %s14, 0
    loop: start=0, step=1, limit=4
    $region2: #{tpu_custom_call.1} parent=1 // loop_pre_header
      _
    $region3: #{tpu_custom_call.1} parent=1 // loop_header
      %s17 = sphi 0, %s21
      %p18 = scmp.ge.s32.totalorder %s17, 4
      %s27 = sphi 0, %s29
      %s30 = sphi 0, %s27
      %s31 = sphi 0, %s30
      %s47 = sphi 0, %s31
      %s51 = sphi 0, %s51
      %s53 = sphi 0, %s51
      %s54 = sphi 0, %s53
      %s68 = sphi 0, %s54
      %s72 = sphi 0, %s72
      %s74 = sphi 0, %s72
      %s75 = sphi 0, %s74
      %s89 = sphi 0, %s75
      %s93 = sphi 0, %s93
      %s95 = sphi 0, %s93
      %s96 = sphi 0, %s95
      %s110 = sphi 0, %s96
      %s114 = sphi 0, %s114
      %s116 = sphi 0, %s114
      %s117 = sphi 0, %s116
      %s131 = sphi 0, %s117
      %s135 = sphi 0, %s135
      %s137 = sphi 0, %s135
      %s138 = sphi 0, %s137
      %s152 = sphi 0, %s138
      %s158 = sphi 0, %s160
      %s161 = sphi 0, %s158
      %s162 = sphi 0, %s161
      %s178 = sphi 0, %s162
    $region4: #{tpu_custom_call.1} parent=1 // loop_header_branch
      %20 = sbr.rel (%p18) target = $region8
    $region5: #{tpu_custom_call.1} parent=1 // loop_body
      %s22 = ssub.s32 %s17, 1
      %s23 = ssub.s32 %s17, 2
      %s24 = sadd.s32 %s17, 1
      %s25 = ssub.s32 %s17, %s24
      %p26 = scmp.eq.s32.totalorder %s25, 0
      %s28 = sadd.s32 %s27, 1
      %s29 = scalar_select %p26, %s27, %s28
      %p32 = pneg %p26
      %p33 = scmp.eq.s32.totalorder %s17, 1
      %p34 = por %p32, %p33
      %p35 = scmp.ne.s32.totalorder %s27, %s30
      %p36 = scmp.eq.s32.totalorder %s17, 0
      %p37 = por %p35, %p36
      %p38 = scmp.ne.s32.totalorder %s27, %s30
      %p39 = scmp.eq.s32.totalorder %s22, 1
      %p40 = por %p38, %p39
      %p41 = scmp.ne.s32.totalorder %s30, %s31
      %p42 = scmp.eq.s32.totalorder %s22, 0
      %p43 = por %p41, %p42
      %p44 = scmp.ne.s32.totalorder %s30, %s31
      %p45 = scmp.eq.s32.totalorder %s23, 1
      %p46 = por %p44, %p45
      %p48 = scmp.ne.s32.totalorder %s31, %s47
      %p49 = scmp.eq.s32.totalorder %s23, 0
      %p50 = por %p48, %p49
      %s52 = sadd.s32 %s51, 1
      %p55 = scmp.eq.s32.totalorder %s17, 1
      %p56 = scmp.ne.s32.totalorder %s51, %s53
      %p57 = scmp.eq.s32.totalorder %s17, 0
      %p58 = por %p56, %p57
      %p59 = scmp.ne.s32.totalorder %s51, %s53
      %p60 = scmp.eq.s32.totalorder %s22, 1
      %p61 = por %p59, %p60
      %p62 = scmp.ne.s32.totalorder %s53, %s54
      %p63 = scmp.eq.s32.totalorder %s22, 0
      %p64 = por %p62, %p63
      %p65 = scmp.ne.s32.totalorder %s53, %s54
      %p66 = scmp.eq.s32.totalorder %s23, 1
      %p67 = por %p65, %p66
      %p69 = scmp.ne.s32.totalorder %s54, %s68
      %p70 = scmp.eq.s32.totalorder %s23, 0
      %p71 = por %p69, %p70
      %s73 = sadd.s32 %s72, 1
      %p76 = scmp.eq.s32.totalorder %s17, 1
      %p77 = scmp.ne.s32.totalorder %s72, %s74
      %p78 = scmp.eq.s32.totalorder %s17, 0
      %p79 = por %p77, %p78
      %p80 = scmp.ne.s32.totalorder %s72, %s74
      %p81 = scmp.eq.s32.totalorder %s22, 1
      %p82 = por %p80, %p81
      %p83 = scmp.ne.s32.totalorder %s74, %s75
      %p84 = scmp.eq.s32.totalorder %s22, 0
      %p85 = por %p83, %p84
      %p86 = scmp.ne.s32.totalorder %s74, %s75
      %p87 = scmp.eq.s32.totalorder %s23, 1
      %p88 = por %p86, %p87
      %p90 = scmp.ne.s32.totalorder %s75, %s89
      %p91 = scmp.eq.s32.totalorder %s23, 0
      %p92 = por %p90, %p91
      %s94 = sadd.s32 %s93, 1
      %p97 = scmp.eq.s32.totalorder %s17, 1
      %p98 = scmp.ne.s32.totalorder %s93, %s95
      %p99 = scmp.eq.s32.totalorder %s17, 0
      %p100 = por %p98, %p99
      %p101 = scmp.ne.s32.totalorder %s93, %s95
      %p102 = scmp.eq.s32.totalorder %s22, 1
      %p103 = por %p101, %p102
      %p104 = scmp.ne.s32.totalorder %s95, %s96
      %p105 = scmp.eq.s32.totalorder %s22, 0
      %p106 = por %p104, %p105
      %p107 = scmp.ne.s32.totalorder %s95, %s96
      %p108 = scmp.eq.s32.totalorder %s23, 1
      %p109 = por %p107, %p108
      %p111 = scmp.ne.s32.totalorder %s96, %s110
      %p112 = scmp.eq.s32.totalorder %s23, 0
      %p113 = por %p111, %p112
      %s115 = sadd.s32 %s114, 1
      %p118 = scmp.eq.s32.totalorder %s17, 1
      %p119 = scmp.ne.s32.totalorder %s114, %s116
      %p120 = scmp.eq.s32.totalorder %s17, 0
      %p121 = por %p119, %p120
      %p122 = scmp.ne.s32.totalorder %s114, %s116
      %p123 = scmp.eq.s32.totalorder %s22, 1
      %p124 = por %p122, %p123
      %p125 = scmp.ne.s32.totalorder %s116, %s117
      %p126 = scmp.eq.s32.totalorder %s22, 0
      %p127 = por %p125, %p126
      %p128 = scmp.ne.s32.totalorder %s116, %s117
      %p129 = scmp.eq.s32.totalorder %s23, 1
      %p130 = por %p128, %p129
      %p132 = scmp.ne.s32.totalorder %s117, %s131
      %p133 = scmp.eq.s32.totalorder %s23, 0
      %p134 = por %p132, %p133
      %s136 = sadd.s32 %s135, 1
      %p139 = scmp.eq.s32.totalorder %s17, 1
      %p140 = scmp.ne.s32.totalorder %s135, %s137
      %p141 = scmp.eq.s32.totalorder %s17, 0
      %p142 = por %p140, %p141
      %p143 = scmp.ne.s32.totalorder %s135, %s137
      %p144 = scmp.eq.s32.totalorder %s22, 1
      %p145 = por %p143, %p144
      %p146 = scmp.ne.s32.totalorder %s137, %s138
      %p147 = scmp.eq.s32.totalorder %s22, 0
      %p148 = por %p146, %p147
      %p149 = scmp.ne.s32.totalorder %s137, %s138
      %p150 = scmp.eq.s32.totalorder %s23, 1
      %p151 = por %p149, %p150
      %p153 = scmp.ne.s32.totalorder %s138, %s152
      %p154 = scmp.eq.s32.totalorder %s23, 0
      %p155 = por %p153, %p154
      %s156 = ssub.s32 %s17, %s24
      %p157 = scmp.eq.s32.totalorder %s156, 0
      %s159 = sadd.s32 %s158, 1
      %s160 = scalar_select %p157, %s158, %s159
      %p163 = pneg %p157
      %p164 = scmp.eq.s32.totalorder %s17, 1
      %p165 = por %p163, %p164
      %p166 = scmp.ne.s32.totalorder %s158, %s161
      %p167 = scmp.eq.s32.totalorder %s17, 0
      %p168 = por %p166, %p167
      %p169 = scmp.ne.s32.totalorder %s158, %s161
      %p170 = scmp.eq.s32.totalorder %s22, 1
      %p171 = por %p169, %p170
      %p172 = scmp.ne.s32.totalorder %s161, %s162
      %p173 = scmp.eq.s32.totalorder %s22, 0
      %p174 = por %p172, %p173
      %p175 = scmp.ne.s32.totalorder %s161, %s162
      %p176 = scmp.eq.s32.totalorder %s23, 1
      %p177 = por %p175, %p176
      %p179 = scmp.ne.s32.totalorder %s162, %s178
      %p180 = scmp.eq.s32.totalorder %s23, 0
      %p181 = por %p179, %p180
      %p182 = scmp.le.s32.totalorder 1, %s17
      %p183 = scmp.lt.s32.totalorder %s17, 3
      %p184 = pnand %p182, %p183
      %p185 = pneg %p184
      // Predicated region
      $region9: #{tpu_custom_call.1} parent=5 // pred_check
        _
      $region10: #{tpu_custom_call.1} parent=5 // pred_check_branch
        %187 = sbr.rel (%p184) target = $region12
      $region11: #{tpu_custom_call.1} parent=5 // pred_region
        %s188 = ssub.s32 %s17, 1
        // Predicated region
        $region13: #{tpu_custom_call.1} parent=11 // pred_check
          %p189 = pneg %p64
        $region14: #{tpu_custom_call.1} parent=11 // pred_check_branch
          %191 = sbr.rel (%p189) target = $region16
        $region15: #{tpu_custom_call.1} parent=11 // pred_region
          %s193 = ssub.s32 2048, 2048
          %194 = vsyncadd [#allocation3], %s193
          %s195 = sshll.u32 [#allocation2], 4
          %s196 = int_to_ptr.vmem [resolvable:$true] %s195
          %201 = dma.hbm_to_vmem [thread:$0]  %s1, 2048, %s196, [#allocation3], 128, 128, 8
        $region16: #{tpu_custom_call.1} parent=11 // pred_fallthru
          _
        // Predicated region
        $region17: #{tpu_custom_call.1} parent=11 // pred_check
          %p202 = pneg %p85
        $region18: #{tpu_custom_call.1} parent=11 // pred_check_branch
          %204 = sbr.rel (%p202) target = $region20
        $region19: #{tpu_custom_call.1} parent=11 // pred_region
          _
        $region20: #{tpu_custom_call.1} parent=11 // pred_fallthru
          _
        // Predicated region
        $region21: #{tpu_custom_call.1} parent=11 // pred_check
          %p205 = pneg %p106
        $region22: #{tpu_custom_call.1} parent=11 // pred_check_branch
          %207 = sbr.rel (%p205) target = $region24
        $region23: #{tpu_custom_call.1} parent=11 // pred_region
          _
        $region24: #{tpu_custom_call.1} parent=11 // pred_fallthru
          _
        // Predicated region
        $region25: #{tpu_custom_call.1} parent=11 // pred_check
          %p208 = pneg %p127
        $region26: #{tpu_custom_call.1} parent=11 // pred_check_branch
          %210 = sbr.rel (%p208) target = $region28
        $region27: #{tpu_custom_call.1} parent=11 // pred_region
          %s212 = ssub.s32 4096, 4096
          %213 = vsyncadd [#allocation6], %s212
          %s214 = sshll.u32 [#allocation5], 4
          %s215 = int_to_ptr.vmem [resolvable:$true] %s214
          %220 = dma.hbm_to_vmem [thread:$0]  %s4, 4096, %s215, [#allocation6], 128, 128, 8
        $region28: #{tpu_custom_call.1} parent=11 // pred_fallthru
          _
        // Predicated region
        $region29: #{tpu_custom_call.1} parent=11 // pred_check
          %p221 = pneg %p148
        $region30: #{tpu_custom_call.1} parent=11 // pred_check_branch
          %223 = sbr.rel (%p221) target = $region32
        $region31: #{tpu_custom_call.1} parent=11 // pred_region
          _
        $region32: #{tpu_custom_call.1} parent=11 // pred_fallthru
          _
      $region12: #{tpu_custom_call.1} parent=5 // pred_fallthru
        _
      %p224 = scmp.lt.s32.totalorder %s17, 2
      // Predicated region
      $region33: #{tpu_custom_call.1} parent=5 // pred_check
        %p225 = pneg %p224
      $region34: #{tpu_custom_call.1} parent=5 // pred_check_branch
        %227 = sbr.rel (%p225) target = $region36
      $region35: #{tpu_custom_call.1} parent=5 // pred_region
        // Predicated region
        $region37: #{tpu_custom_call.1} parent=35 // pred_check
          %p228 = pneg %p37
        $region38: #{tpu_custom_call.1} parent=35 // pred_check_branch
          %230 = sbr.rel (%p228) target = $region40
        $region39: #{tpu_custom_call.1} parent=35 // pred_region
          %s231 = smul.u32 16, %s17
          %p232 = scmp.lt.s32.totalorder %s231, 31
          %s233 = scalar_select %p232, %s231, 31
          %s234 = smul.addr %s233, 8
          %s235 = scalar_lea.vmem %s0, %s234
          %s236 = smul.u32 16, %s17
        $region40: #{tpu_custom_call.1} parent=35 // pred_fallthru
          _
      $region36: #{tpu_custom_call.1} parent=5 // pred_fallthru
        _
      %p237 = scmp.le.s32.totalorder 1, %s17
      %p238 = scmp.lt.s32.totalorder %s17, 3
      %p239 = pnand %p237, %p238
      %p240 = pneg %p239
      // Predicated region
      $region41: #{tpu_custom_call.1} parent=5 // pred_check
        _
      $region42: #{tpu_custom_call.1} parent=5 // pred_check_branch
        %242 = sbr.rel (%p239) target = $region44
      $region43: #{tpu_custom_call.1} parent=5 // pred_region
        %s243 = ssub.s32 %s17, 1
        // Predicated region
        $region45: #{tpu_custom_call.1} parent=43 // pred_check
          %p244 = pneg %p64
        $region46: #{tpu_custom_call.1} parent=43 // pred_check_branch
          %246 = sbr.rel (%p244) target = $region48
        $region47: #{tpu_custom_call.1} parent=43 // pred_region
          %247 = dma.done [#allocation3], 2048
        $region48: #{tpu_custom_call.1} parent=43 // pred_fallthru
          _
        // Predicated region
        $region49: #{tpu_custom_call.1} parent=43 // pred_check
          %p248 = pneg %p127
        $region50: #{tpu_custom_call.1} parent=43 // pred_check_branch
          %250 = sbr.rel (%p248) target = $region52
        $region51: #{tpu_custom_call.1} parent=43 // pred_region
          %251 = dma.done [#allocation6], 4096
        $region52: #{tpu_custom_call.1} parent=43 // pred_fallthru
          _
        %s252 = smul.u32 16, %s22
        %p253 = scmp.lt.s32.totalorder %s252, 31
        %s254 = scalar_select %p253, %s252, 31
        %s255 = smul.addr %s254, 8
        %s256 = scalar_lea.vmem %s0, %s255
        %p257 = pneg %p43
        %p258 = pneg %p40
        %p259 = pneg %p64
        %p260 = pneg %p61
        %p261 = pneg %p85
        %p262 = pneg %p82
        %p263 = pneg %p106
        %p264 = pneg %p103
        %p265 = pneg %p127
        %p266 = pneg %p124
        %p267 = pneg %p148
        %p268 = pneg %p145
        %p269 = pneg %p174
        %p270 = pneg %p171
        %s271 = sand.u32 %s161, 1
        %s272 = scalar_lea.sflag [#allocation4], %s271
        %s273 = sand.u32 %s161, 1
        %s274 = smul.addr %s273, 128
        %s275 = scalar_lea.vmem [#allocation7], %s274
        %s276 = smul.u32 16, %s22
        %p277 = scmp.lt.s32.totalorder %s276, 31
        %s278 = scalar_select %p277, %s276, 31
        %s279 = smul.addr %s278, 8
        %s280 = scalar_lea.vmem %s0, %s279
        %s281 = smul.u32 16, %s22
        %s282 = smul.u32 16, %s22
        %v283 = vlaneseq
        %v284 = vand.u32 %v283, 127
        %v285 = vld [vmem:[%s280] sm:$0xff]
        %v286 = vld [vmem:[%s280 + $0x8] sm:$0xff]
        %v287 = vld [vmem:[%s280 + $0x10] sm:$0xff]
        %v288 = vld [vmem:[%s280 + $0x18] sm:$0xff]
        %v289 = vld [vmem:[%s280 + $0x20] sm:$0xff]
        %v290 = vld [vmem:[%s280 + $0x28] sm:$0xff]
        %v291 = vld [vmem:[%s280 + $0x30] sm:$0xff]
        %v292 = vld [vmem:[%s280 + $0x38] sm:$0xff]
        %v293 = vld [vmem:[%s280 + $0x40] sm:$0xff]
        %v294 = vld [vmem:[%s280 + $0x48] sm:$0xff]
        %v295 = vld [vmem:[%s280 + $0x50] sm:$0xff]
        %v296 = vld [vmem:[%s280 + $0x58] sm:$0xff]
        %v297 = vld [vmem:[%s280 + $0x60] sm:$0xff]
        %v298 = vld [vmem:[%s280 + $0x68] sm:$0xff]
        %v299 = vld [vmem:[%s280 + $0x70] sm:$0xff]
        %v300 = vld [vmem:[%s280 + $0x78] sm:$0xff]
        %301 = vset.pattern.permute.xlu0 0
        %302 = vperm.xlu0 %301, %v285
        %v303 = vpop.permute.xlu0 %302
        %304 = vset.pattern.permute.xlu0 0
        %305 = vperm.xlu0 %304, %v286
        %v306 = vpop.permute.xlu0 %305
        %307 = vset.pattern.permute.xlu0 0
        %308 = vperm.xlu0 %307, %v287
        %v309 = vpop.permute.xlu0 %308
        %310 = vset.pattern.permute.xlu0 0
        %311 = vperm.xlu0 %310, %v288
        %v312 = vpop.permute.xlu0 %311
        %313 = vset.pattern.permute.xlu0 0
        %314 = vperm.xlu0 %313, %v289
        %v315 = vpop.permute.xlu0 %314
        %316 = vset.pattern.permute.xlu0 0
        %317 = vperm.xlu0 %316, %v290
        %v318 = vpop.permute.xlu0 %317
        %319 = vset.pattern.permute.xlu0 0
        %320 = vperm.xlu0 %319, %v291
        %v321 = vpop.permute.xlu0 %320
        %322 = vset.pattern.permute.xlu0 0
        %323 = vperm.xlu0 %322, %v292
        %v324 = vpop.permute.xlu0 %323
        %325 = vset.pattern.permute.xlu0 0
        %326 = vperm.xlu0 %325, %v293
        %v327 = vpop.permute.xlu0 %326
        %328 = vset.pattern.permute.xlu0 0
        %329 = vperm.xlu0 %328, %v294
        %v330 = vpop.permute.xlu0 %329
        %331 = vset.pattern.permute.xlu0 0
        %332 = vperm.xlu0 %331, %v295
        %v333 = vpop.permute.xlu0 %332
        %334 = vset.pattern.permute.xlu0 0
        %335 = vperm.xlu0 %334, %v296
        %v336 = vpop.permute.xlu0 %335
        %337 = vset.pattern.permute.xlu0 0
        %338 = vperm.xlu0 %337, %v297
        %v339 = vpop.permute.xlu0 %338
        %340 = vset.pattern.permute.xlu0 0
        %341 = vperm.xlu0 %340, %v298
        %v342 = vpop.permute.xlu0 %341
        %343 = vset.pattern.permute.xlu0 0
        %344 = vperm.xlu0 %343, %v299
        %v345 = vpop.permute.xlu0 %344
        %346 = vset.pattern.permute.xlu0 0
        %347 = vperm.xlu0 %346, %v300
        %v348 = vpop.permute.xlu0 %347
        %vm349 = vcmp.eq.s32.totalorder %v284, %v303
        %vm350 = vcmp.eq.s32.totalorder %v284, %v306
        %vm351 = vcmp.eq.s32.totalorder %v284, %v309
        %vm352 = vcmp.eq.s32.totalorder %v284, %v312
        %vm353 = vcmp.eq.s32.totalorder %v284, %v315
        %vm354 = vcmp.eq.s32.totalorder %v284, %v318
        %vm355 = vcmp.eq.s32.totalorder %v284, %v321
        %vm356 = vcmp.eq.s32.totalorder %v284, %v324
        %vm357 = vcmp.eq.s32.totalorder %v284, %v327
        %vm358 = vcmp.eq.s32.totalorder %v284, %v330
        %vm359 = vcmp.eq.s32.totalorder %v284, %v333
        %vm360 = vcmp.eq.s32.totalorder %v284, %v336
        %vm361 = vcmp.eq.s32.totalorder %v284, %v339
        %vm362 = vcmp.eq.s32.totalorder %v284, %v342
        %vm363 = vcmp.eq.s32.totalorder %v284, %v345
        %vm364 = vcmp.eq.s32.totalorder %v284, %v348
        %v365 = vsel %vm349, 1, 0
        %v366 = vsel %vm350, 1, 0
        %v367 = vsel %vm351, 1, 0
        %v368 = vsel %vm352, 1, 0
        %v369 = vsel %vm353, 1, 0
        %v370 = vsel %vm354, 1, 0
        %v371 = vsel %vm355, 1, 0
        %v372 = vsel %vm356, 1, 0
        %v373 = vsel %vm357, 1, 0
        %v374 = vsel %vm358, 1, 0
        %v375 = vsel %vm359, 1, 0
        %v376 = vsel %vm360, 1, 0
        %v377 = vsel %vm361, 1, 0
        %v378 = vsel %vm362, 1, 0
        %v379 = vsel %vm363, 1, 0
        %v380 = vsel %vm364, 1, 0
        %381 = vset.pattern.permute.xlu0 1
        %382 = vperm.xlu0 %381, %v285
        %v383 = vpop.permute.xlu0 %382
        %384 = vset.pattern.permute.xlu0 1
        %385 = vperm.xlu0 %384, %v286
        %v386 = vpop.permute.xlu0 %385
        %387 = vset.pattern.permute.xlu0 1
        %388 = vperm.xlu0 %387, %v287
        %v389 = vpop.permute.xlu0 %388
        %390 = vset.pattern.permute.xlu0 1
        %391 = vperm.xlu0 %390, %v288
        %v392 = vpop.permute.xlu0 %391
        %393 = vset.pattern.permute.xlu0 1
        %394 = vperm.xlu0 %393, %v289
        %v395 = vpop.permute.xlu0 %394
        %396 = vset.pattern.permute.xlu0 1
        %397 = vperm.xlu0 %396, %v290
        %v398 = vpop.permute.xlu0 %397
        %399 = vset.pattern.permute.xlu0 1
        %400 = vperm.xlu0 %399, %v291
        %v401 = vpop.permute.xlu0 %400
        %402 = vset.pattern.permute.xlu0 1
        %403 = vperm.xlu0 %402, %v292
        %v404 = vpop.permute.xlu0 %403
        %405 = vset.pattern.permute.xlu0 1
        %406 = vperm.xlu0 %405, %v293
        %v407 = vpop.permute.xlu0 %406
        %408 = vset.pattern.permute.xlu0 1
        %409 = vperm.xlu0 %408, %v294
        %v410 = vpop.permute.xlu0 %409
        %411 = vset.pattern.permute.xlu0 1
        %412 = vperm.xlu0 %411, %v295
        %v413 = vpop.permute.xlu0 %412
        %414 = vset.pattern.permute.xlu0 1
        %415 = vperm.xlu0 %414, %v296
        %v416 = vpop.permute.xlu0 %415
        %417 = vset.pattern.permute.xlu0 1
        %418 = vperm.xlu0 %417, %v297
        %v419 = vpop.permute.xlu0 %418
        %420 = vset.pattern.permute.xlu0 1
        %421 = vperm.xlu0 %420, %v298
        %v422 = vpop.permute.xlu0 %421
        %423 = vset.pattern.permute.xlu0 1
        %424 = vperm.xlu0 %423, %v299
        %v425 = vpop.permute.xlu0 %424
        %426 = vset.pattern.permute.xlu0 1
        %427 = vperm.xlu0 %426, %v300
        %v428 = vpop.permute.xlu0 %427
        %vm429 = vcmp.eq.s32.totalorder %v284, %v383
        %vm430 = vcmp.eq.s32.totalorder %v284, %v386
        %vm431 = vcmp.eq.s32.totalorder %v284, %v389
        %vm432 = vcmp.eq.s32.totalorder %v284, %v392
        %vm433 = vcmp.eq.s32.totalorder %v284, %v395
        %vm434 = vcmp.eq.s32.totalorder %v284, %v398
        %vm435 = vcmp.eq.s32.totalorder %v284, %v401
        %vm436 = vcmp.eq.s32.totalorder %v284, %v404
        %vm437 = vcmp.eq.s32.totalorder %v284, %v407
        %vm438 = vcmp.eq.s32.totalorder %v284, %v410
        %vm439 = vcmp.eq.s32.totalorder %v284, %v413
        %vm440 = vcmp.eq.s32.totalorder %v284, %v416
        %vm441 = vcmp.eq.s32.totalorder %v284, %v419
        %vm442 = vcmp.eq.s32.totalorder %v284, %v422
        %vm443 = vcmp.eq.s32.totalorder %v284, %v425
        %vm444 = vcmp.eq.s32.totalorder %v284, %v428
        %v445 = vsel %vm429, 1, 0
        %v446 = vsel %vm430, 1, 0
        %v447 = vsel %vm431, 1, 0
        %v448 = vsel %vm432, 1, 0
        %v449 = vsel %vm433, 1, 0
        %v450 = vsel %vm434, 1, 0
        %v451 = vsel %vm435, 1, 0
        %v452 = vsel %vm436, 1, 0
        %v453 = vsel %vm437, 1, 0
        %v454 = vsel %vm438, 1, 0
        %v455 = vsel %vm439, 1, 0
        %v456 = vsel %vm440, 1, 0
        %v457 = vsel %vm441, 1, 0
        %v458 = vsel %vm442, 1, 0
        %v459 = vsel %vm443, 1, 0
        %v460 = vsel %vm444, 1, 0
        %v461 = vadd.s32 %v365, %v445
        %v462 = vadd.s32 %v366, %v446
        %v463 = vadd.s32 %v367, %v447
        %v464 = vadd.s32 %v368, %v448
        %v465 = vadd.s32 %v369, %v449
        %v466 = vadd.s32 %v370, %v450
        %v467 = vadd.s32 %v371, %v451
        %v468 = vadd.s32 %v372, %v452
        %v469 = vadd.s32 %v373, %v453
        %v470 = vadd.s32 %v374, %v454
        %v471 = vadd.s32 %v375, %v455
        %v472 = vadd.s32 %v376, %v456
        %v473 = vadd.s32 %v377, %v457
        %v474 = vadd.s32 %v378, %v458
        %v475 = vadd.s32 %v379, %v459
        %v476 = vadd.s32 %v380, %v460
        %477 = vset.pattern.permute.xlu0 2
        %478 = vperm.xlu0 %477, %v285
        %v479 = vpop.permute.xlu0 %478
        %480 = vset.pattern.permute.xlu0 2
        %481 = vperm.xlu0 %480, %v286
        %v482 = vpop.permute.xlu0 %481
        %483 = vset.pattern.permute.xlu0 2
        %484 = vperm.xlu0 %483, %v287
        %v485 = vpop.permute.xlu0 %484
        %486 = vset.pattern.permute.xlu0 2
        %487 = vperm.xlu0 %486, %v288
        %v488 = vpop.permute.xlu0 %487
        %489 = vset.pattern.permute.xlu0 2
        %490 = vperm.xlu0 %489, %v289
        %v491 = vpop.permute.xlu0 %490
        %492 = vset.pattern.permute.xlu0 2
        %493 = vperm.xlu0 %492, %v290
        %v494 = vpop.permute.xlu0 %493
        %495 = vset.pattern.permute.xlu0 2
        %496 = vperm.xlu0 %495, %v291
        %v497 = vpop.permute.xlu0 %496
        %498 = vset.pattern.permute.xlu0 2
        %499 = vperm.xlu0 %498, %v292
        %v500 = vpop.permute.xlu0 %499
        %501 = vset.pattern.permute.xlu0 2
        %502 = vperm.xlu0 %501, %v293
        %v503 = vpop.permute.xlu0 %502
        %504 = vset.pattern.permute.xlu0 2
        %505 = vperm.xlu0 %504, %v294
        %v506 = vpop.permute.xlu0 %505
        %507 = vset.pattern.permute.xlu0 2
        %508 = vperm.xlu0 %507, %v295
        %v509 = vpop.permute.xlu0 %508
        %510 = vset.pattern.permute.xlu0 2
        %511 = vperm.xlu0 %510, %v296
        %v512 = vpop.permute.xlu0 %511
        %513 = vset.pattern.permute.xlu0 2
        %514 = vperm.xlu0 %513, %v297
        %v515 = vpop.permute.xlu0 %514
        %516 = vset.pattern.permute.xlu0 2
        %517 = vperm.xlu0 %516, %v298
        %v518 = vpop.permute.xlu0 %517
        %519 = vset.pattern.permute.xlu0 2
        %520 = vperm.xlu0 %519, %v299
        %v521 = vpop.permute.xlu0 %520
        %522 = vset.pattern.permute.xlu0 2
        %523 = vperm.xlu0 %522, %v300
        %v524 = vpop.permute.xlu0 %523
        %vm525 = vcmp.eq.s32.totalorder %v284, %v479
        %vm526 = vcmp.eq.s32.totalorder %v284, %v482
        %vm527 = vcmp.eq.s32.totalorder %v284, %v485
        %vm528 = vcmp.eq.s32.totalorder %v284, %v488
        %vm529 = vcmp.eq.s32.totalorder %v284, %v491
        %vm530 = vcmp.eq.s32.totalorder %v284, %v494
        %vm531 = vcmp.eq.s32.totalorder %v284, %v497
        %vm532 = vcmp.eq.s32.totalorder %v284, %v500
        %vm533 = vcmp.eq.s32.totalorder %v284, %v503
        %vm534 = vcmp.eq.s32.totalorder %v284, %v506
        %vm535 = vcmp.eq.s32.totalorder %v284, %v509
        %vm536 = vcmp.eq.s32.totalorder %v284, %v512
        %vm537 = vcmp.eq.s32.totalorder %v284, %v515
        %vm538 = vcmp.eq.s32.totalorder %v284, %v518
        %vm539 = vcmp.eq.s32.totalorder %v284, %v521
        %vm540 = vcmp.eq.s32.totalorder %v284, %v524
        %v541 = vsel %vm525, 1, 0
        %v542 = vsel %vm526, 1, 0
        %v543 = vsel %vm527, 1, 0
        %v544 = vsel %vm528, 1, 0
        %v545 = vsel %vm529, 1, 0
        %v546 = vsel %vm530, 1, 0
        %v547 = vsel %vm531, 1, 0
        %v548 = vsel %vm532, 1, 0
        %v549 = vsel %vm533, 1, 0
        %v550 = vsel %vm534, 1, 0
        %v551 = vsel %vm535, 1, 0
        %v552 = vsel %vm536, 1, 0
        %v553 = vsel %vm537, 1, 0
        %v554 = vsel %vm538, 1, 0
        %v555 = vsel %vm539, 1, 0
        %v556 = vsel %vm540, 1, 0
        %v557 = vadd.s32 %v461, %v541
        %v558 = vadd.s32 %v462, %v542
        %v559 = vadd.s32 %v463, %v543
        %v560 = vadd.s32 %v464, %v544
        %v561 = vadd.s32 %v465, %v545
        %v562 = vadd.s32 %v466, %v546
        %v563 = vadd.s32 %v467, %v547
        %v564 = vadd.s32 %v468, %v548
        %v565 = vadd.s32 %v469, %v549
        %v566 = vadd.s32 %v470, %v550
        %v567 = vadd.s32 %v471, %v551
        %v568 = vadd.s32 %v472, %v552
        %v569 = vadd.s32 %v473, %v553
        %v570 = vadd.s32 %v474, %v554
        %v571 = vadd.s32 %v475, %v555
        %v572 = vadd.s32 %v476, %v556
        %573 = vset.pattern.permute.xlu0 3
        %574 = vperm.xlu0 %573, %v285
        %v575 = vpop.permute.xlu0 %574
        %576 = vset.pattern.permute.xlu0 3
        %577 = vperm.xlu0 %576, %v286
        %v578 = vpop.permute.xlu0 %577
        %579 = vset.pattern.permute.xlu0 3
        %580 = vperm.xlu0 %579, %v287
        %v581 = vpop.permute.xlu0 %580
        %582 = vset.pattern.permute.xlu0 3
        %583 = vperm.xlu0 %582, %v288
        %v584 = vpop.permute.xlu0 %583
        %585 = vset.pattern.permute.xlu0 3
        %586 = vperm.xlu0 %585, %v289
        %v587 = vpop.permute.xlu0 %586
        %588 = vset.pattern.permute.xlu0 3
        %589 = vperm.xlu0 %588, %v290
        %v590 = vpop.permute.xlu0 %589
        %591 = vset.pattern.permute.xlu0 3
        %592 = vperm.xlu0 %591, %v291
        %v593 = vpop.permute.xlu0 %592
        %594 = vset.pattern.permute.xlu0 3
        %595 = vperm.xlu0 %594, %v292
        %v596 = vpop.permute.xlu0 %595
        %597 = vset.pattern.permute.xlu0 3
        %598 = vperm.xlu0 %597, %v293
        %v599 = vpop.permute.xlu0 %598
        %600 = vset.pattern.permute.xlu0 3
        %601 = vperm.xlu0 %600, %v294
        %v602 = vpop.permute.xlu0 %601
        %603 = vset.pattern.permute.xlu0 3
        %604 = vperm.xlu0 %603, %v295
        %v605 = vpop.permute.xlu0 %604
        %606 = vset.pattern.permute.xlu0 3
        %607 = vperm.xlu0 %606, %v296
        %v608 = vpop.permute.xlu0 %607
        %609 = vset.pattern.permute.xlu0 3
        %610 = vperm.xlu0 %609, %v297
        %v611 = vpop.permute.xlu0 %610
        %612 = vset.pattern.permute.xlu0 3
        %613 = vperm.xlu0 %612, %v298
        %v614 = vpop.permute.xlu0 %613
        %615 = vset.pattern.permute.xlu0 3
        %616 = vperm.xlu0 %615, %v299
        %v617 = vpop.permute.xlu0 %616
        %618 = vset.pattern.permute.xlu0 3
        %619 = vperm.xlu0 %618, %v300
        %v620 = vpop.permute.xlu0 %619
        %vm621 = vcmp.eq.s32.totalorder %v284, %v575
        %vm622 = vcmp.eq.s32.totalorder %v284, %v578
        %vm623 = vcmp.eq.s32.totalorder %v284, %v581
        %vm624 = vcmp.eq.s32.totalorder %v284, %v584
        %vm625 = vcmp.eq.s32.totalorder %v284, %v587
        %vm626 = vcmp.eq.s32.totalorder %v284, %v590
        %vm627 = vcmp.eq.s32.totalorder %v284, %v593
        %vm628 = vcmp.eq.s32.totalorder %v284, %v596
        %vm629 = vcmp.eq.s32.totalorder %v284, %v599
        %vm630 = vcmp.eq.s32.totalorder %v284, %v602
        %vm631 = vcmp.eq.s32.totalorder %v284, %v605
        %vm632 = vcmp.eq.s32.totalorder %v284, %v608
        %vm633 = vcmp.eq.s32.totalorder %v284, %v611
        %vm634 = vcmp.eq.s32.totalorder %v284, %v614
        %vm635 = vcmp.eq.s32.totalorder %v284, %v617
        %vm636 = vcmp.eq.s32.totalorder %v284, %v620
        %v637 = vsel %vm621, 1, 0
        %v638 = vsel %vm622, 1, 0
        %v639 = vsel %vm623, 1, 0
        %v640 = vsel %vm624, 1, 0
        %v641 = vsel %vm625, 1, 0
        %v642 = vsel %vm626, 1, 0
        %v643 = vsel %vm627, 1, 0
        %v644 = vsel %vm628, 1, 0
        %v645 = vsel %vm629, 1, 0
        %v646 = vsel %vm630, 1, 0
        %v647 = vsel %vm631, 1, 0
        %v648 = vsel %vm632, 1, 0
        %v649 = vsel %vm633, 1, 0
        %v650 = vsel %vm634, 1, 0
        %v651 = vsel %vm635, 1, 0
        %v652 = vsel %vm636, 1, 0
        %v653 = vadd.s32 %v557, %v637
        %v654 = vadd.s32 %v558, %v638
        %v655 = vadd.s32 %v559, %v639
        %v656 = vadd.s32 %v560, %v640
        %v657 = vadd.s32 %v561, %v641
        %v658 = vadd.s32 %v562, %v642
        %v659 = vadd.s32 %v563, %v643
        %v660 = vadd.s32 %v564, %v644
        %v661 = vadd.s32 %v565, %v645
        %v662 = vadd.s32 %v566, %v646
        %v663 = vadd.s32 %v567, %v647
        %v664 = vadd.s32 %v568, %v648
        %v665 = vadd.s32 %v569, %v649
        %v666 = vadd.s32 %v570, %v650
        %v667 = vadd.s32 %v571, %v651
        %v668 = vadd.s32 %v572, %v652
        %v669 = vcvt.s32.f32 %v653
        %v670 = vcvt.s32.f32 %v654
        %v671 = vcvt.s32.f32 %v655
        %v672 = vcvt.s32.f32 %v656
        %v673 = vcvt.s32.f32 %v657
        %v674 = vcvt.s32.f32 %v658
        %v675 = vcvt.s32.f32 %v659
        %v676 = vcvt.s32.f32 %v660
        %v677 = vcvt.s32.f32 %v661
        %v678 = vcvt.s32.f32 %v662
        %v679 = vcvt.s32.f32 %v663
        %v680 = vcvt.s32.f32 %v664
        %v681 = vcvt.s32.f32 %v665
        %v682 = vcvt.s32.f32 %v666
        %v683 = vcvt.s32.f32 %v667
        %v684 = vcvt.s32.f32 %v668
        %v685 = vld [vmem:[#allocation2] sm:$0xff]
        %v686 = vld [vmem:[#allocation2 + $0x8] sm:$0xff]
        %v687 = vld [vmem:[#allocation2 + $0x10] sm:$0xff]
        %v688 = vld [vmem:[#allocation2 + $0x18] sm:$0xff]
        %v689 = vld [vmem:[#allocation2 + $0x20] sm:$0xff]
        %v690 = vld [vmem:[#allocation2 + $0x28] sm:$0xff]
        %v691 = vld [vmem:[#allocation2 + $0x30] sm:$0xff]
        %v692 = vld [vmem:[#allocation2 + $0x38] sm:$0xff]
        %v693 = vld [vmem:[#allocation2 + $0x40] sm:$0xff]
        %v694 = vld [vmem:[#allocation2 + $0x48] sm:$0xff]
        %v695 = vld [vmem:[#allocation2 + $0x50] sm:$0xff]
        %v696 = vld [vmem:[#allocation2 + $0x58] sm:$0xff]
        %v697 = vld [vmem:[#allocation2 + $0x60] sm:$0xff]
        %v698 = vld [vmem:[#allocation2 + $0x68] sm:$0xff]
        %v699 = vld [vmem:[#allocation2 + $0x70] sm:$0xff]
        %v700 = vld [vmem:[#allocation2 + $0x78] sm:$0xff]
        %701 = vmatprep.subr.mxu0 0.0
        %v702 = vand.u32 %v685, 4294901760
        %703 = vmatpush1.msra.mxu0 %v702
        %704 = vmatprep.subr.mxu0 0.0
        %v705 = vand.u32 %v686, 4294901760
        %706 = vmatpush1.msra.mxu0 %v705
        %707 = vmatprep.subr.mxu0 0.0
        %v708 = vand.u32 %v687, 4294901760
        %709 = vmatpush1.msra.mxu0 %v708
        %710 = vmatprep.subr.mxu0 0.0
        %v711 = vand.u32 %v688, 4294901760
        %712 = vmatpush1.msra.mxu0 %v711
        %713 = vmatprep.subr.mxu0 0.0
        %v714 = vand.u32 %v689, 4294901760
        %715 = vmatpush1.msra.mxu0 %v714
        %716 = vmatprep.subr.mxu0 0.0
        %v717 = vand.u32 %v690, 4294901760
        %718 = vmatpush1.msra.mxu0 %v717
        %719 = vmatprep.subr.mxu0 0.0
        %v720 = vand.u32 %v691, 4294901760
        %721 = vmatpush1.msra.mxu0 %v720
        %722 = vmatprep.subr.mxu0 0.0
        %v723 = vand.u32 %v692, 4294901760
        %724 = vmatpush1.msra.mxu0 %v723
        %725 = vmatprep.subr.mxu0 0.0
        %v726 = vand.u32 %v693, 4294901760
        %727 = vmatpush1.msra.mxu0 %v726
        %728 = vmatprep.subr.mxu0 0.0
        %v729 = vand.u32 %v694, 4294901760
        %730 = vmatpush1.msra.mxu0 %v729
        %731 = vmatprep.subr.mxu0 0.0
        %v732 = vand.u32 %v695, 4294901760
        %733 = vmatpush1.msra.mxu0 %v732
        %734 = vmatprep.subr.mxu0 0.0
        %v735 = vand.u32 %v696, 4294901760
        %736 = vmatpush1.msra.mxu0 %v735
        %737 = vmatprep.subr.mxu0 0.0
        %v738 = vand.u32 %v697, 4294901760
        %739 = vmatpush1.msra.mxu0 %v738
        %740 = vmatprep.subr.mxu0 0.0
        %v741 = vand.u32 %v698, 4294901760
        %742 = vmatpush1.msra.mxu0 %v741
        %743 = vmatprep.subr.mxu0 0.0
        %v744 = vand.u32 %v699, 4294901760
        %745 = vmatpush1.msra.mxu0 %v744
        %746 = vmatprep.subr.mxu0 0.0
        %v747 = vand.u32 %v700, 4294901760
        %748 = vmatpush1.msra.mxu0 %v747
        %749 = vmatprep.subr.mxu0 0.0
        %750 = vmatpush1.msra.mxu0 0.0
        %751 = vmatprep.subr.mxu0 0.0
        %752 = vmatpush1.msra.mxu0 0.0
        %753 = vmatprep.subr.mxu0 0.0
        %754 = vmatpush1.msra.mxu0 0.0
        %755 = vmatprep.subr.mxu0 0.0
        %756 = vmatpush1.msra.mxu0 0.0
        %757 = vmatprep.subr.mxu0 0.0
        %758 = vmatpush1.msra.mxu0 0.0
        %759 = vmatprep.subr.mxu0 0.0
        %760 = vmatpush1.msra.mxu0 0.0
        %761 = vmatprep.subr.mxu0 0.0
        %762 = vmatpush1.msra.mxu0 0.0
        %763 = vmatprep.subr.mxu0 0.0
        %764 = vmatpush1.msra.mxu0 0.0
        %765 = vmatprep.subr.mxu0 0.0
        %766 = vmatpush1.msra.mxu0 0.0
        %767 = vmatprep.subr.mxu0 0.0
        %768 = vmatpush1.msra.mxu0 0.0
        %769 = vmatprep.subr.mxu0 0.0
        %770 = vmatpush1.msra.mxu0 0.0
        %771 = vmatprep.subr.mxu0 0.0
        %772 = vmatpush1.msra.mxu0 0.0
        %773 = vmatprep.subr.mxu0 0.0
        %774 = vmatpush1.msra.mxu0 0.0
        %775 = vmatprep.subr.mxu0 0.0
        %776 = vmatpush1.msra.mxu0 0.0
        %777 = vmatprep.subr.mxu0 0.0
        %778 = vmatpush1.msra.mxu0 0.0
        %779 = vmatprep.subr.mxu0 0.0
        %780 = vmatpush1.msra.mxu0 0.0
        %781 = vmatprep.mubr.f32.mxu0 0.0
        %v782 = vand.u32 %v669, 4294901760
        %v783 = vsub.f32 %v669, %v782
        %v784 = vand.u32 %v783, 4294901760
        %v785 = vsub.f32 %v783, %v784
        %v786 = vand.u32 %v785, 4294901760
        %787 = vmatmul.mubr.f32.gmra.mrb[0].mxu0 %v786
        %v788 = vpop.f32.mrb[0].mxu0
        %v789 = vadd.f32 0.0, %v788
        %v790 = vpop.f32.mrb[0].mxu0
        %791 = vmatprep.mubr.f32.mxu0 0.0
        %v792 = vand.u32 %v670, 4294901760
        %v793 = vsub.f32 %v670, %v792
        %v794 = vand.u32 %v793, 4294901760
        %v795 = vsub.f32 %v793, %v794
        %v796 = vand.u32 %v795, 4294901760
        %797 = vmatmul.mubr.f32.gmra.mrb[0].mxu0 %v796
        %v798 = vpop.f32.mrb[0].mxu0
        %v799 = vadd.f32 0.0, %v798
        %v800 = vpop.f32.mrb[0].mxu0
        %801 = vmatprep.mubr.f32.mxu0 0.0
        %v802 = vand.u32 %v671, 4294901760
        %v803 = vsub.f32 %v671, %v802
        %v804 = vand.u32 %v803, 4294901760
        %v805 = vsub.f32 %v803, %v804
        %v806 = vand.u32 %v805, 4294901760
        %807 = vmatmul.mubr.f32.gmra.mrb[0].mxu0 %v806
        %v808 = vpop.f32.mrb[0].mxu0
        %v809 = vadd.f32 0.0, %v808
        %v810 = vpop.f32.mrb[0].mxu0
        %811 = vmatprep.mubr.f32.mxu0 0.0
        %v812 = vand.u32 %v672, 4294901760
        %v813 = vsub.f32 %v672, %v812
        %v814 = vand.u32 %v813, 4294901760
        %v815 = vsub.f32 %v813, %v814
        %v816 = vand.u32 %v815, 4294901760
        %817 = vmatmul.mubr.f32.gmra.mrb[0].mxu0 %v816
        %v818 = vpop.f32.mrb[0].mxu0
        %v819 = vadd.f32 0.0, %v818
        %v820 = vpop.f32.mrb[0].mxu0
        %821 = vmatprep.mubr.f32.mxu0 0.0
        %v822 = vand.u32 %v673, 4294901760
        %v823 = vsub.f32 %v673, %v822
        %v824 = vand.u32 %v823, 4294901760
        %v825 = vsub.f32 %v823, %v824
        %v826 = vand.u32 %v825, 4294901760
        %827 = vmatmul.mubr.f32.gmra.mrb[0].mxu0 %v826
        %v828 = vpop.f32.mrb[0].mxu0
        %v829 = vadd.f32 0.0, %v828
        %v830 = vpop.f32.mrb[0].mxu0
        %831 = vmatprep.mubr.f32.mxu0 0.0
        %v832 = vand.u32 %v674, 4294901760
        %v833 = vsub.f32 %v674, %v832
        %v834 = vand.u32 %v833, 4294901760
        %v835 = vsub.f32 %v833, %v834
        %v836 = vand.u32 %v835, 4294901760
        %837 = vmatmul.mubr.f32.gmra.mrb[0].mxu0 %v836
        %v838 = vpop.f32.mrb[0].mxu0
        %v839 = vadd.f32 0.0, %v838
        %v840 = vpop.f32.mrb[0].mxu0
        %841 = vmatprep.mubr.f32.mxu0 0.0
        %v842 = vand.u32 %v675, 4294901760
        %v843 = vsub.f32 %v675, %v842
        %v844 = vand.u32 %v843, 4294901760
        %v845 = vsub.f32 %v843, %v844
        %v846 = vand.u32 %v845, 4294901760
        %847 = vmatmul.mubr.f32.gmra.mrb[0].mxu0 %v846
        %v848 = vpop.f32.mrb[0].mxu0
        %v849 = vadd.f32 0.0, %v848
        %v850 = vpop.f32.mrb[0].mxu0
        %851 = vmatprep.mubr.f32.mxu0 0.0
        %v852 = vand.u32 %v676, 4294901760
        %v853 = vsub.f32 %v676, %v852
        %v854 = vand.u32 %v853, 4294901760
        %v855 = vsub.f32 %v853, %v854
        %v856 = vand.u32 %v855, 4294901760
        %857 = vmatmul.mubr.f32.gmra.mrb[0].mxu0 %v856
        %v858 = vpop.f32.mrb[0].mxu0
        %v859 = vadd.f32 0.0, %v858
        %v860 = vpop.f32.mrb[0].mxu0
        %861 = vmatprep.mubr.f32.mxu0 0.0
        %v862 = vand.u32 %v677, 4294901760
        %v863 = vsub.f32 %v677, %v862
        %v864 = vand.u32 %v863, 4294901760
        %v865 = vsub.f32 %v863, %v864
        %v866 = vand.u32 %v865, 4294901760
        %867 = vmatmul.mubr.f32.gmra.mrb[0].mxu0 %v866
        %v868 = vpop.f32.mrb[0].mxu0
        %v869 = vadd.f32 0.0, %v868
        %v870 = vpop.f32.mrb[0].mxu0
        %871 = vmatprep.mubr.f32.mxu0 0.0
        %v872 = vand.u32 %v678, 4294901760
        %v873 = vsub.f32 %v678, %v872
        %v874 = vand.u32 %v873, 4294901760
        %v875 = vsub.f32 %v873, %v874
        %v876 = vand.u32 %v875, 4294901760
        %877 = vmatmul.mubr.f32.gmra.mrb[0].mxu0 %v876
        %v878 = vpop.f32.mrb[0].mxu0
        %v879 = vadd.f32 0.0, %v878
        %v880 = vpop.f32.mrb[0].mxu0
        %881 = vmatprep.mubr.f32.mxu0 0.0
        %v882 = vand.u32 %v679, 4294901760
        %v883 = vsub.f32 %v679, %v882
        %v884 = vand.u32 %v883, 4294901760
        %v885 = vsub.f32 %v883, %v884
        %v886 = vand.u32 %v885, 4294901760
        %887 = vmatmul.mubr.f32.gmra.mrb[0].mxu0 %v886
        %v888 = vpop.f32.mrb[0].mxu0
        %v889 = vadd.f32 0.0, %v888
        %v890 = vpop.f32.mrb[0].mxu0
        %891 = vmatprep.mubr.f32.mxu0 0.0
        %v892 = vand.u32 %v680, 4294901760
        %v893 = vsub.f32 %v680, %v892
        %v894 = vand.u32 %v893, 4294901760
        %v895 = vsub.f32 %v893, %v894
        %v896 = vand.u32 %v895, 4294901760
        %897 = vmatmul.mubr.f32.gmra.mrb[0].mxu0 %v896
        %v898 = vpop.f32.mrb[0].mxu0
        %v899 = vadd.f32 0.0, %v898
        %v900 = vpop.f32.mrb[0].mxu0
        %901 = vmatprep.mubr.f32.mxu0 0.0
        %v902 = vand.u32 %v681, 4294901760
        %v903 = vsub.f32 %v681, %v902
        %v904 = vand.u32 %v903, 4294901760
        %v905 = vsub.f32 %v903, %v904
        %v906 = vand.u32 %v905, 4294901760
        %907 = vmatmul.mubr.f32.gmra.mrb[0].mxu0 %v906
        %v908 = vpop.f32.mrb[0].mxu0
        %v909 = vadd.f32 0.0, %v908
        %v910 = vpop.f32.mrb[0].mxu0
        %911 = vmatprep.mubr.f32.mxu0 0.0
        %v912 = vand.u32 %v682, 4294901760
        %v913 = vsub.f32 %v682, %v912
        %v914 = vand.u32 %v913, 4294901760
        %v915 = vsub.f32 %v913, %v914
        %v916 = vand.u32 %v915, 4294901760
        %917 = vmatmul.mubr.f32.gmra.mrb[0].mxu0 %v916
        %v918 = vpop.f32.mrb[0].mxu0
        %v919 = vadd.f32 0.0, %v918
        %v920 = vpop.f32.mrb[0].mxu0
        %921 = vmatprep.mubr.f32.mxu0 0.0
        %v922 = vand.u32 %v683, 4294901760
        %v923 = vsub.f32 %v683, %v922
        %v924 = vand.u32 %v923, 4294901760
        %v925 = vsub.f32 %v923, %v924
        %v926 = vand.u32 %v925, 4294901760
        %927 = vmatmul.mubr.f32.gmra.mrb[0].mxu0 %v926
        %v928 = vpop.f32.mrb[0].mxu0
        %v929 = vadd.f32 0.0, %v928
        %v930 = vpop.f32.mrb[0].mxu0
        %931 = vmatprep.mubr.f32.mxu0 0.0
        %v932 = vand.u32 %v684, 4294901760
        %v933 = vsub.f32 %v684, %v932
        %v934 = vand.u32 %v933, 4294901760
        %v935 = vsub.f32 %v933, %v934
        %v936 = vand.u32 %v935, 4294901760
        %937 = vmatmul.mubr.f32.gmra.mrb[0].mxu0 %v936
        %v938 = vpop.f32.mrb[0].mxu0
        %v939 = vadd.f32 0.0, %v938
        %v940 = vpop.f32.mrb[0].mxu0
        %941 = vdwg.mxu0
        %942 = vmatprep.subr.mxu0 0.0
        %v943 = vand.u32 %v685, 4294901760
        %v944 = vsub.f32 %v685, %v943
        %v945 = vand.u32 %v944, 4294901760
        %v946 = vsub.f32 %v944, %v945
        %v947 = vand.u32 %v946, 4294901760
        %948 = vmatpush1.msra.mxu0 %v947
        %949 = vmatprep.subr.mxu0 0.0
        %v950 = vand.u32 %v686, 4294901760
        %v951 = vsub.f32 %v686, %v950
        %v952 = vand.u32 %v951, 4294901760
        %v953 = vsub.f32 %v951, %v952
        %v954 = vand.u32 %v953, 4294901760
        %955 = vmatpush1.msra.mxu0 %v954
        %956 = vmatprep.subr.mxu0 0.0
        %v957 = vand.u32 %v687, 4294901760
        %v958 = vsub.f32 %v687, %v957
        %v959 = vand.u32 %v958, 4294901760
        %v960 = vsub.f32 %v958, %v959
        %v961 = vand.u32 %v960, 4294901760
        %962 = vmatpush1.msra.mxu0 %v961
        %963 = vmatprep.subr.mxu0 0.0
        %v964 = vand.u32 %v688, 4294901760
        %v965 = vsub.f32 %v688, %v964
        %v966 = vand.u32 %v965, 4294901760
        %v967 = vsub.f32 %v965, %v966
        %v968 = vand.u32 %v967, 4294901760
        %969 = vmatpush1.msra.mxu0 %v968
        %970 = vmatprep.subr.mxu0 0.0
        %v971 = vand.u32 %v689, 4294901760
        %v972 = vsub.f32 %v689, %v971
        %v973 = vand.u32 %v972, 4294901760
        %v974 = vsub.f32 %v972, %v973
        %v975 = vand.u32 %v974, 4294901760
        %976 = vmatpush1.msra.mxu0 %v975
        %977 = vmatprep.subr.mxu0 0.0
        %v978 = vand.u32 %v690, 4294901760
        %v979 = vsub.f32 %v690, %v978
        %v980 = vand.u32 %v979, 4294901760
        %v981 = vsub.f32 %v979, %v980
        %v982 = vand.u32 %v981, 4294901760
        %983 = vmatpush1.msra.mxu0 %v982
        %984 = vmatprep.subr.mxu0 0.0
        %v985 = vand.u32 %v691, 4294901760
        %v986 = vsub.f32 %v691, %v985
        %v987 = vand.u32 %v986, 4294901760
        %v988 = vsub.f32 %v986, %v987
        %v989 = vand.u32 %v988, 4294901760
        %990 = vmatpush1.msra.mxu0 %v989
        %991 = vmatprep.subr.mxu0 0.0
        %v992 = vand.u32 %v692, 4294901760
        %v993 = vsub.f32 %v692, %v992
        %v994 = vand.u32 %v993, 4294901760
        %v995 = vsub.f32 %v993, %v994
        %v996 = vand.u32 %v995, 4294901760
        %997 = vmatpush1.msra.mxu0 %v996
        %998 = vmatprep.subr.mxu0 0.0
        %v999 = vand.u32 %v693, 4294901760
        %v1000 = vsub.f32 %v693, %v999
        %v1001 = vand.u32 %v1000, 4294901760
        %v1002 = vsub.f32 %v1000, %v1001
        %v1003 = vand.u32 %v1002, 4294901760
        %1004 = vmatpush1.msra.mxu0 %v1003
        %1005 = vmatprep.subr.mxu0 0.0
        %v1006 = vand.u32 %v694, 4294901760
        %v1007 = vsub.f32 %v694, %v1006
        %v1008 = vand.u32 %v1007, 4294901760
        %v1009 = vsub.f32 %v1007, %v1008
        %v1010 = vand.u32 %v1009, 4294901760
        %1011 = vmatpush1.msra.mxu0 %v1010
        %1012 = vmatprep.subr.mxu0 0.0
        %v1013 = vand.u32 %v695, 4294901760
        %v1014 = vsub.f32 %v695, %v1013
        %v1015 = vand.u32 %v1014, 4294901760
        %v1016 = vsub.f32 %v1014, %v1015
        %v1017 = vand.u32 %v1016, 4294901760
        %1018 = vmatpush1.msra.mxu0 %v1017
        %1019 = vmatprep.subr.mxu0 0.0
        %v1020 = vand.u32 %v696, 4294901760
        %v1021 = vsub.f32 %v696, %v1020
        %v1022 = vand.u32 %v1021, 4294901760
        %v1023 = vsub.f32 %v1021, %v1022
        %v1024 = vand.u32 %v1023, 4294901760
        %1025 = vmatpush1.msra.mxu0 %v1024
        %1026 = vmatprep.subr.mxu0 0.0
        %v1027 = vand.u32 %v697, 4294901760
        %v1028 = vsub.f32 %v697, %v1027
        %v1029 = vand.u32 %v1028, 4294901760
        %v1030 = vsub.f32 %v1028, %v1029
        %v1031 = vand.u32 %v1030, 4294901760
        %1032 = vmatpush1.msra.mxu0 %v1031
        %1033 = vmatprep.subr.mxu0 0.0
        %v1034 = vand.u32 %v698, 4294901760
        %v1035 = vsub.f32 %v698, %v1034
        %v1036 = vand.u32 %v1035, 4294901760
        %v1037 = vsub.f32 %v1035, %v1036
        %v1038 = vand.u32 %v1037, 4294901760
        %1039 = vmatpush1.msra.mxu0 %v1038
        %1040 = vmatprep.subr.mxu0 0.0
        %v1041 = vand.u32 %v699, 4294901760
        %v1042 = vsub.f32 %v699, %v1041
        %v1043 = vand.u32 %v1042, 4294901760
        %v1044 = vsub.f32 %v1042, %v1043
        %v1045 = vand.u32 %v1044, 4294901760
        %1046 = vmatpush1.msra.mxu0 %v1045
        %1047 = vmatprep.subr.mxu0 0.0
        %v1048 = vand.u32 %v700, 4294901760
        %v1049 = vsub.f32 %v700, %v1048
        %v1050 = vand.u32 %v1049, 4294901760
        %v1051 = vsub.f32 %v1049, %v1050
        %v1052 = vand.u32 %v1051, 4294901760
        %1053 = vmatpush1.msra.mxu0 %v1052
        %1054 = vmatprep.subr.mxu0 0.0
        %1055 = vmatpush1.msra.mxu0 0.0
        %1056 = vmatprep.subr.mxu0 0.0
        %1057 = vmatpush1.msra.mxu0 0.0
        %1058 = vmatprep.subr.mxu0 0.0
        %1059 = vmatpush1.msra.mxu0 0.0
        %1060 = vmatprep.subr.mxu0 0.0
        %1061 = vmatpush1.msra.mxu0 0.0
        %1062 = vmatprep.subr.mxu0 0.0
        %1063 = vmatpush1.msra.mxu0 0.0
        %1064 = vmatprep.subr.mxu0 0.0
        %1065 = vmatpush1.msra.mxu0 0.0
        %1066 = vmatprep.subr.mxu0 0.0
        %1067 = vmatpush1.msra.mxu0 0.0
        %1068 = vmatprep.subr.mxu0 0.0
        %1069 = vmatpush1.msra.mxu0 0.0
        %1070 = vmatprep.subr.mxu0 0.0
        %1071 = vmatpush1.msra.mxu0 0.0
        %1072 = vmatprep.subr.mxu0 0.0
        %1073 = vmatpush1.msra.mxu0 0.0
        %1074 = vmatprep.subr.mxu0 0.0
        %1075 = vmatpush1.msra.mxu0 0.0
        %1076 = vmatprep.subr.mxu0 0.0
        %1077 = vmatpush1.msra.mxu0 0.0
        %1078 = vmatprep.subr.mxu0 0.0
        %1079 = vmatpush1.msra.mxu0 0.0
        %1080 = vmatprep.subr.mxu0 0.0
        %1081 = vmatpush1.msra.mxu0 0.0
        %1082 = vmatprep.subr.mxu0 0.0
        %1083 = vmatpush1.msra.mxu0 0.0
        %1084 = vmatprep.subr.mxu0 0.0
        %1085 = vmatpush1.msra.mxu0 0.0
        %1086 = vmatprep.mubr.f32.mxu0 0.0
        %v1087 = vand.u32 %v669, 4294901760
        %1088 = vmatmul.mubr.f32.gmra.mrb[0].mxu0 %v1087
        %v1089 = vpop.f32.mrb[0].mxu0
        %v1090 = vadd.f32 %v789, %v1089
        %v1091 = vpop.f32.mrb[0].mxu0
        %1092 = vmatprep.mubr.f32.mxu0 0.0
        %v1093 = vand.u32 %v670, 4294901760
        %1094 = vmatmul.mubr.f32.gmra.mrb[0].mxu0 %v1093
        %v1095 = vpop.f32.mrb[0].mxu0
        %v1096 = vadd.f32 %v799, %v1095
        %v1097 = vpop.f32.mrb[0].mxu0
        %1098 = vmatprep.mubr.f32.mxu0 0.0
        %v1099 = vand.u32 %v671, 4294901760
        %1100 = vmatmul.mubr.f32.gmra.mrb[0].mxu0 %v1099
        %v1101 = vpop.f32.mrb[0].mxu0
        %v1102 = vadd.f32 %v809, %v1101
        %v1103 = vpop.f32.mrb[0].mxu0
        %1104 = vmatprep.mubr.f32.mxu0 0.0
        %v1105 = vand.u32 %v672, 4294901760
        %1106 = vmatmul.mubr.f32.gmra.mrb[0].mxu0 %v1105
        %v1107 = vpop.f32.mrb[0].mxu0
        %v1108 = vadd.f32 %v819, %v1107
        %v1109 = vpop.f32.mrb[0].mxu0
        %1110 = vmatprep.mubr.f32.mxu0 0.0
        %v1111 = vand.u32 %v673, 4294901760
        %1112 = vmatmul.mubr.f32.gmra.mrb[0].mxu0 %v1111
        %v1113 = vpop.f32.mrb[0].mxu0
        %v1114 = vadd.f32 %v829, %v1113
        %v1115 = vpop.f32.mrb[0].mxu0
        %1116 = vmatprep.mubr.f32.mxu0 0.0
        %v1117 = vand.u32 %v674, 4294901760
        %1118 = vmatmul.mubr.f32.gmra.mrb[0].mxu0 %v1117
        %v1119 = vpop.f32.mrb[0].mxu0
        %v1120 = vadd.f32 %v839, %v1119
        %v1121 = vpop.f32.mrb[0].mxu0
        %1122 = vmatprep.mubr.f32.mxu0 0.0
        %v1123 = vand.u32 %v675, 4294901760
        %1124 = vmatmul.mubr.f32.gmra.mrb[0].mxu0 %v1123
        %v1125 = vpop.f32.mrb[0].mxu0
        %v1126 = vadd.f32 %v849, %v1125
        %v1127 = vpop.f32.mrb[0].mxu0
        %1128 = vmatprep.mubr.f32.mxu0 0.0
        %v1129 = vand.u32 %v676, 4294901760
        %1130 = vmatmul.mubr.f32.gmra.mrb[0].mxu0 %v1129
        %v1131 = vpop.f32.mrb[0].mxu0
        %v1132 = vadd.f32 %v859, %v1131
        %v1133 = vpop.f32.mrb[0].mxu0
        %1134 = vmatprep.mubr.f32.mxu0 0.0
        %v1135 = vand.u32 %v677, 4294901760
        %1136 = vmatmul.mubr.f32.gmra.mrb[0].mxu0 %v1135
        %v1137 = vpop.f32.mrb[0].mxu0
        %v1138 = vadd.f32 %v869, %v1137
        %v1139 = vpop.f32.mrb[0].mxu0
        %1140 = vmatprep.mubr.f32.mxu0 0.0
        %v1141 = vand.u32 %v678, 4294901760
        %1142 = vmatmul.mubr.f32.gmra.mrb[0].mxu0 %v1141
        %v1143 = vpop.f32.mrb[0].mxu0
        %v1144 = vadd.f32 %v879, %v1143
        %v1145 = vpop.f32.mrb[0].mxu0
        %1146 = vmatprep.mubr.f32.mxu0 0.0
        %v1147 = vand.u32 %v679, 4294901760
        %1148 = vmatmul.mubr.f32.gmra.mrb[0].mxu0 %v1147
        %v1149 = vpop.f32.mrb[0].mxu0
        %v1150 = vadd.f32 %v889, %v1149
        %v1151 = vpop.f32.mrb[0].mxu0
        %1152 = vmatprep.mubr.f32.mxu0 0.0
        %v1153 = vand.u32 %v680, 4294901760
        %1154 = vmatmul.mubr.f32.gmra.mrb[0].mxu0 %v1153
        %v1155 = vpop.f32.mrb[0].mxu0
        %v1156 = vadd.f32 %v899, %v1155
        %v1157 = vpop.f32.mrb[0].mxu0
        %1158 = vmatprep.mubr.f32.mxu0 0.0
        %v1159 = vand.u32 %v681, 4294901760
        %1160 = vmatmul.mubr.f32.gmra.mrb[0].mxu0 %v1159
        %v1161 = vpop.f32.mrb[0].mxu0
        %v1162 = vadd.f32 %v909, %v1161
        %v1163 = vpop.f32.mrb[0].mxu0
        %1164 = vmatprep.mubr.f32.mxu0 0.0
        %v1165 = vand.u32 %v682, 4294901760
        %1166 = vmatmul.mubr.f32.gmra.mrb[0].mxu0 %v1165
        %v1167 = vpop.f32.mrb[0].mxu0
        %v1168 = vadd.f32 %v919, %v1167
        %v1169 = vpop.f32.mrb[0].mxu0
        %1170 = vmatprep.mubr.f32.mxu0 0.0
        %v1171 = vand.u32 %v683, 4294901760
        %1172 = vmatmul.mubr.f32.gmra.mrb[0].mxu0 %v1171
        %v1173 = vpop.f32.mrb[0].mxu0
        %v1174 = vadd.f32 %v929, %v1173
        %v1175 = vpop.f32.mrb[0].mxu0
        %1176 = vmatprep.mubr.f32.mxu0 0.0
        %v1177 = vand.u32 %v684, 4294901760
        %1178 = vmatmul.mubr.f32.gmra.mrb[0].mxu0 %v1177
        %v1179 = vpop.f32.mrb[0].mxu0
        %v1180 = vadd.f32 %v939, %v1179
        %v1181 = vpop.f32.mrb[0].mxu0
        %1182 = vdwg.mxu0
        %1183 = vmatprep.subr.mxu0 0.0
        %v1184 = vand.u32 %v685, 4294901760
        %v1185 = vsub.f32 %v685, %v1184
        %1186 = vmatpush1.msra.mxu0 %v1185
        %1187 = vmatprep.subr.mxu0 0.0
        %v1188 = vand.u32 %v686, 4294901760
        %v1189 = vsub.f32 %v686, %v1188
        %1190 = vmatpush1.msra.mxu0 %v1189
        %1191 = vmatprep.subr.mxu0 0.0
        %v1192 = vand.u32 %v687, 4294901760
        %v1193 = vsub.f32 %v687, %v1192
        %1194 = vmatpush1.msra.mxu0 %v1193
        %1195 = vmatprep.subr.mxu0 0.0
        %v1196 = vand.u32 %v688, 4294901760
        %v1197 = vsub.f32 %v688, %v1196
        %1198 = vmatpush1.msra.mxu0 %v1197
        %1199 = vmatprep.subr.mxu0 0.0
        %v1200 = vand.u32 %v689, 4294901760
        %v1201 = vsub.f32 %v689, %v1200
        %1202 = vmatpush1.msra.mxu0 %v1201
        %1203 = vmatprep.subr.mxu0 0.0
        %v1204 = vand.u32 %v690, 4294901760
        %v1205 = vsub.f32 %v690, %v1204
        %1206 = vmatpush1.msra.mxu0 %v1205
        %1207 = vmatprep.subr.mxu0 0.0
        %v1208 = vand.u32 %v691, 4294901760
        %v1209 = vsub.f32 %v691, %v1208
        %1210 = vmatpush1.msra.mxu0 %v1209
        %1211 = vmatprep.subr.mxu0 0.0
        %v1212 = vand.u32 %v692, 4294901760
        %v1213 = vsub.f32 %v692, %v1212
        %1214 = vmatpush1.msra.mxu0 %v1213
        %1215 = vmatprep.subr.mxu0 0.0
        %v1216 = vand.u32 %v693, 4294901760
        %v1217 = vsub.f32 %v693, %v1216
        %1218 = vmatpush1.msra.mxu0 %v1217
        %1219 = vmatprep.subr.mxu0 0.0
        %v1220 = vand.u32 %v694, 4294901760
        %v1221 = vsub.f32 %v694, %v1220
        %1222 = vmatpush1.msra.mxu0 %v1221
        %1223 = vmatprep.subr.mxu0 0.0
        %v1224 = vand.u32 %v695, 4294901760
        %v1225 = vsub.f32 %v695, %v1224
        %1226 = vmatpush1.msra.mxu0 %v1225
        %1227 = vmatprep.subr.mxu0 0.0
        %v1228 = vand.u32 %v696, 4294901760
        %v1229 = vsub.f32 %v696, %v1228
        %1230 = vmatpush1.msra.mxu0 %v1229
        %1231 = vmatprep.subr.mxu0 0.0
        %v1232 = vand.u32 %v697, 4294901760
        %v1233 = vsub.f32 %v697, %v1232
        %1234 = vmatpush1.msra.mxu0 %v1233
        %1235 = vmatprep.subr.mxu0 0.0
        %v1236 = vand.u32 %v698, 4294901760
        %v1237 = vsub.f32 %v698, %v1236
        %1238 = vmatpush1.msra.mxu0 %v1237
        %1239 = vmatprep.subr.mxu0 0.0
        %v1240 = vand.u32 %v699, 4294901760
        %v1241 = vsub.f32 %v699, %v1240
        %1242 = vmatpush1.msra.mxu0 %v1241
        %1243 = vmatprep.subr.mxu0 0.0
        %v1244 = vand.u32 %v700, 4294901760
        %v1245 = vsub.f32 %v700, %v1244
        %1246 = vmatpush1.msra.mxu0 %v1245
        %1247 = vmatprep.subr.mxu0 0.0
        %1248 = vmatpush1.msra.mxu0 0.0
        %1249 = vmatprep.subr.mxu0 0.0
        %1250 = vmatpush1.msra.mxu0 0.0
        %1251 = vmatprep.subr.mxu0 0.0
        %1252 = vmatpush1.msra.mxu0 0.0
        %1253 = vmatprep.subr.mxu0 0.0
        %1254 = vmatpush1.msra.mxu0 0.0
        %1255 = vmatprep.subr.mxu0 0.0
        %1256 = vmatpush1.msra.mxu0 0.0
        %1257 = vmatprep.subr.mxu0 0.0
        %1258 = vmatpush1.msra.mxu0 0.0
        %1259 = vmatprep.subr.mxu0 0.0
        %1260 = vmatpush1.msra.mxu0 0.0
        %1261 = vmatprep.subr.mxu0 0.0
        %1262 = vmatpush1.msra.mxu0 0.0
        %1263 = vmatprep.subr.mxu0 0.0
        %1264 = vmatpush1.msra.mxu0 0.0
        %1265 = vmatprep.subr.mxu0 0.0
        %1266 = vmatpush1.msra.mxu0 0.0
        %1267 = vmatprep.subr.mxu0 0.0
        %1268 = vmatpush1.msra.mxu0 0.0
        %1269 = vmatprep.subr.mxu0 0.0
        %1270 = vmatpush1.msra.mxu0 0.0
        %1271 = vmatprep.subr.mxu0 0.0
        %1272 = vmatpush1.msra.mxu0 0.0
        %1273 = vmatprep.subr.mxu0 0.0
        %1274 = vmatpush1.msra.mxu0 0.0
        %1275 = vmatprep.subr.mxu0 0.0
        %1276 = vmatpush1.msra.mxu0 0.0
        %1277 = vmatprep.subr.mxu0 0.0
        %1278 = vmatpush1.msra.mxu0 0.0
        %1279 = vmatprep.mubr.f32.mxu0 0.0
        %v1280 = vand.u32 %v669, 4294901760
        %v1281 = vsub.f32 %v669, %v1280
        %1282 = vmatmul.mubr.f32.gmra.mrb[0].mxu0 %v1281
        %v1283 = vpop.f32.mrb[0].mxu0
        %v1284 = vadd.f32 %v1090, %v1283
        %v1285 = vpop.f32.mrb[0].mxu0
        %1286 = vmatprep.mubr.f32.mxu0 0.0
        %v1287 = vand.u32 %v670, 4294901760
        %v1288 = vsub.f32 %v670, %v1287
        %1289 = vmatmul.mubr.f32.gmra.mrb[0].mxu0 %v1288
        %v1290 = vpop.f32.mrb[0].mxu0
        %v1291 = vadd.f32 %v1096, %v1290
        %v1292 = vpop.f32.mrb[0].mxu0
        %1293 = vmatprep.mubr.f32.mxu0 0.0
        %v1294 = vand.u32 %v671, 4294901760
        %v1295 = vsub.f32 %v671, %v1294
        %1296 = vmatmul.mubr.f32.gmra.mrb[0].mxu0 %v1295
        %v1297 = vpop.f32.mrb[0].mxu0
        %v1298 = vadd.f32 %v1102, %v1297
        %v1299 = vpop.f32.mrb[0].mxu0
        %1300 = vmatprep.mubr.f32.mxu0 0.0
        %v1301 = vand.u32 %v672, 4294901760
        %v1302 = vsub.f32 %v672, %v1301
        %1303 = vmatmul.mubr.f32.gmra.mrb[0].mxu0 %v1302
        %v1304 = vpop.f32.mrb[0].mxu0
        %v1305 = vadd.f32 %v1108, %v1304
        %v1306 = vpop.f32.mrb[0].mxu0
        %1307 = vmatprep.mubr.f32.mxu0 0.0
        %v1308 = vand.u32 %v673, 4294901760
        %v1309 = vsub.f32 %v673, %v1308
        %1310 = vmatmul.mubr.f32.gmra.mrb[0].mxu0 %v1309
        %v1311 = vpop.f32.mrb[0].mxu0
        %v1312 = vadd.f32 %v1114, %v1311
        %v1313 = vpop.f32.mrb[0].mxu0
        %1314 = vmatprep.mubr.f32.mxu0 0.0
        %v1315 = vand.u32 %v674, 4294901760
        %v1316 = vsub.f32 %v674, %v1315
        %1317 = vmatmul.mubr.f32.gmra.mrb[0].mxu0 %v1316
        %v1318 = vpop.f32.mrb[0].mxu0
        %v1319 = vadd.f32 %v1120, %v1318
        %v1320 = vpop.f32.mrb[0].mxu0
        %1321 = vmatprep.mubr.f32.mxu0 0.0
        %v1322 = vand.u32 %v675, 4294901760
        %v1323 = vsub.f32 %v675, %v1322
        %1324 = vmatmul.mubr.f32.gmra.mrb[0].mxu0 %v1323
        %v1325 = vpop.f32.mrb[0].mxu0
        %v1326 = vadd.f32 %v1126, %v1325
        %v1327 = vpop.f32.mrb[0].mxu0
        %1328 = vmatprep.mubr.f32.mxu0 0.0
        %v1329 = vand.u32 %v676, 4294901760
        %v1330 = vsub.f32 %v676, %v1329
        %1331 = vmatmul.mubr.f32.gmra.mrb[0].mxu0 %v1330
        %v1332 = vpop.f32.mrb[0].mxu0
        %v1333 = vadd.f32 %v1132, %v1332
        %v1334 = vpop.f32.mrb[0].mxu0
        %1335 = vmatprep.mubr.f32.mxu0 0.0
        %v1336 = vand.u32 %v677, 4294901760
        %v1337 = vsub.f32 %v677, %v1336
        %1338 = vmatmul.mubr.f32.gmra.mrb[0].mxu0 %v1337
        %v1339 = vpop.f32.mrb[0].mxu0
        %v1340 = vadd.f32 %v1138, %v1339
        %v1341 = vpop.f32.mrb[0].mxu0
        %1342 = vmatprep.mubr.f32.mxu0 0.0
        %v1343 = vand.u32 %v678, 4294901760
        %v1344 = vsub.f32 %v678, %v1343
        %1345 = vmatmul.mubr.f32.gmra.mrb[0].mxu0 %v1344
        %v1346 = vpop.f32.mrb[0].mxu0
        %v1347 = vadd.f32 %v1144, %v1346
        %v1348 = vpop.f32.mrb[0].mxu0
        %1349 = vmatprep.mubr.f32.mxu0 0.0
        %v1350 = vand.u32 %v679, 4294901760
        %v1351 = vsub.f32 %v679, %v1350
        %1352 = vmatmul.mubr.f32.gmra.mrb[0].mxu0 %v1351
        %v1353 = vpop.f32.mrb[0].mxu0
        %v1354 = vadd.f32 %v1150, %v1353
        %v1355 = vpop.f32.mrb[0].mxu0
        %1356 = vmatprep.mubr.f32.mxu0 0.0
        %v1357 = vand.u32 %v680, 4294901760
        %v1358 = vsub.f32 %v680, %v1357
        %1359 = vmatmul.mubr.f32.gmra.mrb[0].mxu0 %v1358
        %v1360 = vpop.f32.mrb[0].mxu0
        %v1361 = vadd.f32 %v1156, %v1360
        %v1362 = vpop.f32.mrb[0].mxu0
        %1363 = vmatprep.mubr.f32.mxu0 0.0
        %v1364 = vand.u32 %v681, 4294901760
        %v1365 = vsub.f32 %v681, %v1364
        %1366 = vmatmul.mubr.f32.gmra.mrb[0].mxu0 %v1365
        %v1367 = vpop.f32.mrb[0].mxu0
        %v1368 = vadd.f32 %v1162, %v1367
        %v1369 = vpop.f32.mrb[0].mxu0
        %1370 = vmatprep.mubr.f32.mxu0 0.0
        %v1371 = vand.u32 %v682, 4294901760
        %v1372 = vsub.f32 %v682, %v1371
        %1373 = vmatmul.mubr.f32.gmra.mrb[0].mxu0 %v1372
        %v1374 = vpop.f32.mrb[0].mxu0
        %v1375 = vadd.f32 %v1168, %v1374
        %v1376 = vpop.f32.mrb[0].mxu0
        %1377 = vmatprep.mubr.f32.mxu0 0.0
        %v1378 = vand.u32 %v683, 4294901760
        %v1379 = vsub.f32 %v683, %v1378
        %1380 = vmatmul.mubr.f32.gmra.mrb[0].mxu0 %v1379
        %v1381 = vpop.f32.mrb[0].mxu0
        %v1382 = vadd.f32 %v1174, %v1381
        %v1383 = vpop.f32.mrb[0].mxu0
        %1384 = vmatprep.mubr.f32.mxu0 0.0
        %v1385 = vand.u32 %v684, 4294901760
        %v1386 = vsub.f32 %v684, %v1385
        %1387 = vmatmul.mubr.f32.gmra.mrb[0].mxu0 %v1386
        %v1388 = vpop.f32.mrb[0].mxu0
        %v1389 = vadd.f32 %v1180, %v1388
        %v1390 = vpop.f32.mrb[0].mxu0
        %1391 = vdwg.mxu0
        %1392 = vmatprep.subr.mxu0 0.0
        %v1393 = vand.u32 %v685, 4294901760
        %1394 = vmatpush1.msra.mxu0 %v1393
        %1395 = vmatprep.subr.mxu0 0.0
        %v1396 = vand.u32 %v686, 4294901760
        %1397 = vmatpush1.msra.mxu0 %v1396
        %1398 = vmatprep.subr.mxu0 0.0
        %v1399 = vand.u32 %v687, 4294901760
        %1400 = vmatpush1.msra.mxu0 %v1399
        %1401 = vmatprep.subr.mxu0 0.0
        %v1402 = vand.u32 %v688, 4294901760
        %1403 = vmatpush1.msra.mxu0 %v1402
        %1404 = vmatprep.subr.mxu0 0.0
        %v1405 = vand.u32 %v689, 4294901760
        %1406 = vmatpush1.msra.mxu0 %v1405
        %1407 = vmatprep.subr.mxu0 0.0
        %v1408 = vand.u32 %v690, 4294901760
        %1409 = vmatpush1.msra.mxu0 %v1408
        %1410 = vmatprep.subr.mxu0 0.0
        %v1411 = vand.u32 %v691, 4294901760
        %1412 = vmatpush1.msra.mxu0 %v1411
        %1413 = vmatprep.subr.mxu0 0.0
        %v1414 = vand.u32 %v692, 4294901760
        %1415 = vmatpush1.msra.mxu0 %v1414
        %1416 = vmatprep.subr.mxu0 0.0
        %v1417 = vand.u32 %v693, 4294901760
        %1418 = vmatpush1.msra.mxu0 %v1417
        %1419 = vmatprep.subr.mxu0 0.0
        %v1420 = vand.u32 %v694, 4294901760
        %1421 = vmatpush1.msra.mxu0 %v1420
        %1422 = vmatprep.subr.mxu0 0.0
        %v1423 = vand.u32 %v695, 4294901760
        %1424 = vmatpush1.msra.mxu0 %v1423
        %1425 = vmatprep.subr.mxu0 0.0
        %v1426 = vand.u32 %v696, 4294901760
        %1427 = vmatpush1.msra.mxu0 %v1426
        %1428 = vmatprep.subr.mxu0 0.0
        %v1429 = vand.u32 %v697, 4294901760
        %1430 = vmatpush1.msra.mxu0 %v1429
        %1431 = vmatprep.subr.mxu0 0.0
        %v1432 = vand.u32 %v698, 4294901760
        %1433 = vmatpush1.msra.mxu0 %v1432
        %1434 = vmatprep.subr.mxu0 0.0
        %v1435 = vand.u32 %v699, 4294901760
        %1436 = vmatpush1.msra.mxu0 %v1435
        %1437 = vmatprep.subr.mxu0 0.0
        %v1438 = vand.u32 %v700, 4294901760
        %1439 = vmatpush1.msra.mxu0 %v1438
        %1440 = vmatprep.subr.mxu0 0.0
        %1441 = vmatpush1.msra.mxu0 0.0
        %1442 = vmatprep.subr.mxu0 0.0
        %1443 = vmatpush1.msra.mxu0 0.0
        %1444 = vmatprep.subr.mxu0 0.0
        %1445 = vmatpush1.msra.mxu0 0.0
        %1446 = vmatprep.subr.mxu0 0.0
        %1447 = vmatpush1.msra.mxu0 0.0
        %1448 = vmatprep.subr.mxu0 0.0
        %1449 = vmatpush1.msra.mxu0 0.0
        %1450 = vmatprep.subr.mxu0 0.0
        %1451 = vmatpush1.msra.mxu0 0.0
        %1452 = vmatprep.subr.mxu0 0.0
        %1453 = vmatpush1.msra.mxu0 0.0
        %1454 = vmatprep.subr.mxu0 0.0
        %1455 = vmatpush1.msra.mxu0 0.0
        %1456 = vmatprep.subr.mxu0 0.0
        %1457 = vmatpush1.msra.mxu0 0.0
        %1458 = vmatprep.subr.mxu0 0.0
        %1459 = vmatpush1.msra.mxu0 0.0
        %1460 = vmatprep.subr.mxu0 0.0
        %1461 = vmatpush1.msra.mxu0 0.0
        %1462 = vmatprep.subr.mxu0 0.0
        %1463 = vmatpush1.msra.mxu0 0.0
        %1464 = vmatprep.subr.mxu0 0.0
        %1465 = vmatpush1.msra.mxu0 0.0
        %1466 = vmatprep.subr.mxu0 0.0
        %1467 = vmatpush1.msra.mxu0 0.0
        %1468 = vmatprep.subr.mxu0 0.0
        %1469 = vmatpush1.msra.mxu0 0.0
        %1470 = vmatprep.subr.mxu0 0.0
        %1471 = vmatpush1.msra.mxu0 0.0
        %1472 = vmatprep.mubr.f32.mxu0 0.0
        %v1473 = vand.u32 %v669, 4294901760
        %v1474 = vsub.f32 %v669, %v1473
        %v1475 = vand.u32 %v1474, 4294901760
        %1476 = vmatmul.mubr.f32.gmra.mrb[0].mxu0 %v1475
        %v1477 = vpop.f32.mrb[0].mxu0
        %v1478 = vadd.f32 %v1284, %v1477
        %v1479 = vpop.f32.mrb[0].mxu0
        %1480 = vmatprep.mubr.f32.mxu0 0.0
        %v1481 = vand.u32 %v670, 4294901760
        %v1482 = vsub.f32 %v670, %v1481
        %v1483 = vand.u32 %v1482, 4294901760
        %1484 = vmatmul.mubr.f32.gmra.mrb[0].mxu0 %v1483
        %v1485 = vpop.f32.mrb[0].mxu0
        %v1486 = vadd.f32 %v1291, %v1485
        %v1487 = vpop.f32.mrb[0].mxu0
        %1488 = vmatprep.mubr.f32.mxu0 0.0
        %v1489 = vand.u32 %v671, 4294901760
        %v1490 = vsub.f32 %v671, %v1489
        %v1491 = vand.u32 %v1490, 4294901760
        %1492 = vmatmul.mubr.f32.gmra.mrb[0].mxu0 %v1491
        %v1493 = vpop.f32.mrb[0].mxu0
        %v1494 = vadd.f32 %v1298, %v1493
        %v1495 = vpop.f32.mrb[0].mxu0
        %1496 = vmatprep.mubr.f32.mxu0 0.0
        %v1497 = vand.u32 %v672, 4294901760
        %v1498 = vsub.f32 %v672, %v1497
        %v1499 = vand.u32 %v1498, 4294901760
        %1500 = vmatmul.mubr.f32.gmra.mrb[0].mxu0 %v1499
        %v1501 = vpop.f32.mrb[0].mxu0
        %v1502 = vadd.f32 %v1305, %v1501
        %v1503 = vpop.f32.mrb[0].mxu0
        %1504 = vmatprep.mubr.f32.mxu0 0.0
        %v1505 = vand.u32 %v673, 4294901760
        %v1506 = vsub.f32 %v673, %v1505
        %v1507 = vand.u32 %v1506, 4294901760
        %1508 = vmatmul.mubr.f32.gmra.mrb[0].mxu0 %v1507
        %v1509 = vpop.f32.mrb[0].mxu0
        %v1510 = vadd.f32 %v1312, %v1509
        %v1511 = vpop.f32.mrb[0].mxu0
        %1512 = vmatprep.mubr.f32.mxu0 0.0
        %v1513 = vand.u32 %v674, 4294901760
        %v1514 = vsub.f32 %v674, %v1513
        %v1515 = vand.u32 %v1514, 4294901760
        %1516 = vmatmul.mubr.f32.gmra.mrb[0].mxu0 %v1515
        %v1517 = vpop.f32.mrb[0].mxu0
        %v1518 = vadd.f32 %v1319, %v1517
        %v1519 = vpop.f32.mrb[0].mxu0
        %1520 = vmatprep.mubr.f32.mxu0 0.0
        %v1521 = vand.u32 %v675, 4294901760
        %v1522 = vsub.f32 %v675, %v1521
        %v1523 = vand.u32 %v1522, 4294901760
        %1524 = vmatmul.mubr.f32.gmra.mrb[0].mxu0 %v1523
        %v1525 = vpop.f32.mrb[0].mxu0
        %v1526 = vadd.f32 %v1326, %v1525
        %v1527 = vpop.f32.mrb[0].mxu0
        %1528 = vmatprep.mubr.f32.mxu0 0.0
        %v1529 = vand.u32 %v676, 4294901760
        %v1530 = vsub.f32 %v676, %v1529
        %v1531 = vand.u32 %v1530, 4294901760
        %1532 = vmatmul.mubr.f32.gmra.mrb[0].mxu0 %v1531
        %v1533 = vpop.f32.mrb[0].mxu0
        %v1534 = vadd.f32 %v1333, %v1533
        %v1535 = vpop.f32.mrb[0].mxu0
        %1536 = vmatprep.mubr.f32.mxu0 0.0
        %v1537 = vand.u32 %v677, 4294901760
        %v1538 = vsub.f32 %v677, %v1537
        %v1539 = vand.u32 %v1538, 4294901760
        %1540 = vmatmul.mubr.f32.gmra.mrb[0].mxu0 %v1539
        %v1541 = vpop.f32.mrb[0].mxu0
        %v1542 = vadd.f32 %v1340, %v1541
        %v1543 = vpop.f32.mrb[0].mxu0
        %1544 = vmatprep.mubr.f32.mxu0 0.0
        %v1545 = vand.u32 %v678, 4294901760
        %v1546 = vsub.f32 %v678, %v1545
        %v1547 = vand.u32 %v1546, 4294901760
        %1548 = vmatmul.mubr.f32.gmra.mrb[0].mxu0 %v1547
        %v1549 = vpop.f32.mrb[0].mxu0
        %v1550 = vadd.f32 %v1347, %v1549
        %v1551 = vpop.f32.mrb[0].mxu0
        %1552 = vmatprep.mubr.f32.mxu0 0.0
        %v1553 = vand.u32 %v679, 4294901760
        %v1554 = vsub.f32 %v679, %v1553
        %v1555 = vand.u32 %v1554, 4294901760
        %1556 = vmatmul.mubr.f32.gmra.mrb[0].mxu0 %v1555
        %v1557 = vpop.f32.mrb[0].mxu0
        %v1558 = vadd.f32 %v1354, %v1557
        %v1559 = vpop.f32.mrb[0].mxu0
        %1560 = vmatprep.mubr.f32.mxu0 0.0
        %v1561 = vand.u32 %v680, 4294901760
        %v1562 = vsub.f32 %v680, %v1561
        %v1563 = vand.u32 %v1562, 4294901760
        %1564 = vmatmul.mubr.f32.gmra.mrb[0].mxu0 %v1563
        %v1565 = vpop.f32.mrb[0].mxu0
        %v1566 = vadd.f32 %v1361, %v1565
        %v1567 = vpop.f32.mrb[0].mxu0
        %1568 = vmatprep.mubr.f32.mxu0 0.0
        %v1569 = vand.u32 %v681, 4294901760
        %v1570 = vsub.f32 %v681, %v1569
        %v1571 = vand.u32 %v1570, 4294901760
        %1572 = vmatmul.mubr.f32.gmra.mrb[0].mxu0 %v1571
        %v1573 = vpop.f32.mrb[0].mxu0
        %v1574 = vadd.f32 %v1368, %v1573
        %v1575 = vpop.f32.mrb[0].mxu0
        %1576 = vmatprep.mubr.f32.mxu0 0.0
        %v1577 = vand.u32 %v682, 4294901760
        %v1578 = vsub.f32 %v682, %v1577
        %v1579 = vand.u32 %v1578, 4294901760
        %1580 = vmatmul.mubr.f32.gmra.mrb[0].mxu0 %v1579
        %v1581 = vpop.f32.mrb[0].mxu0
        %v1582 = vadd.f32 %v1375, %v1581
        %v1583 = vpop.f32.mrb[0].mxu0
        %1584 = vmatprep.mubr.f32.mxu0 0.0
        %v1585 = vand.u32 %v683, 4294901760
        %v1586 = vsub.f32 %v683, %v1585
        %v1587 = vand.u32 %v1586, 4294901760
        %1588 = vmatmul.mubr.f32.gmra.mrb[0].mxu0 %v1587
        %v1589 = vpop.f32.mrb[0].mxu0
        %v1590 = vadd.f32 %v1382, %v1589
        %v1591 = vpop.f32.mrb[0].mxu0
        %1592 = vmatprep.mubr.f32.mxu0 0.0
        %v1593 = vand.u32 %v684, 4294901760
        %v1594 = vsub.f32 %v684, %v1593
        %v1595 = vand.u32 %v1594, 4294901760
        %1596 = vmatmul.mubr.f32.gmra.mrb[0].mxu0 %v1595
        %v1597 = vpop.f32.mrb[0].mxu0
        %v1598 = vadd.f32 %v1389, %v1597
        %v1599 = vpop.f32.mrb[0].mxu0
        %1600 = vdwg.mxu0
        %1601 = vmatprep.subr.mxu0 0.0
        %v1602 = vand.u32 %v685, 4294901760
        %v1603 = vsub.f32 %v685, %v1602
        %v1604 = vand.u32 %v1603, 4294901760
        %1605 = vmatpush1.msra.mxu0 %v1604
        %1606 = vmatprep.subr.mxu0 0.0
        %v1607 = vand.u32 %v686, 4294901760
        %v1608 = vsub.f32 %v686, %v1607
        %v1609 = vand.u32 %v1608, 4294901760
        %1610 = vmatpush1.msra.mxu0 %v1609
        %1611 = vmatprep.subr.mxu0 0.0
        %v1612 = vand.u32 %v687, 4294901760
        %v1613 = vsub.f32 %v687, %v1612
        %v1614 = vand.u32 %v1613, 4294901760
        %1615 = vmatpush1.msra.mxu0 %v1614
        %1616 = vmatprep.subr.mxu0 0.0
        %v1617 = vand.u32 %v688, 4294901760
        %v1618 = vsub.f32 %v688, %v1617
        %v1619 = vand.u32 %v1618, 4294901760
        %1620 = vmatpush1.msra.mxu0 %v1619
        %1621 = vmatprep.subr.mxu0 0.0
        %v1622 = vand.u32 %v689, 4294901760
        %v1623 = vsub.f32 %v689, %v1622
        %v1624 = vand.u32 %v1623, 4294901760
        %1625 = vmatpush1.msra.mxu0 %v1624
        %1626 = vmatprep.subr.mxu0 0.0
        %v1627 = vand.u32 %v690, 4294901760
        %v1628 = vsub.f32 %v690, %v1627
        %v1629 = vand.u32 %v1628, 4294901760
        %1630 = vmatpush1.msra.mxu0 %v1629
        %1631 = vmatprep.subr.mxu0 0.0
        %v1632 = vand.u32 %v691, 4294901760
        %v1633 = vsub.f32 %v691, %v1632
        %v1634 = vand.u32 %v1633, 4294901760
        %1635 = vmatpush1.msra.mxu0 %v1634
        %1636 = vmatprep.subr.mxu0 0.0
        %v1637 = vand.u32 %v692, 4294901760
        %v1638 = vsub.f32 %v692, %v1637
        %v1639 = vand.u32 %v1638, 4294901760
        %1640 = vmatpush1.msra.mxu0 %v1639
        %1641 = vmatprep.subr.mxu0 0.0
        %v1642 = vand.u32 %v693, 4294901760
        %v1643 = vsub.f32 %v693, %v1642
        %v1644 = vand.u32 %v1643, 4294901760
        %1645 = vmatpush1.msra.mxu0 %v1644
        %1646 = vmatprep.subr.mxu0 0.0
        %v1647 = vand.u32 %v694, 4294901760
        %v1648 = vsub.f32 %v694, %v1647
        %v1649 = vand.u32 %v1648, 4294901760
        %1650 = vmatpush1.msra.mxu0 %v1649
        %1651 = vmatprep.subr.mxu0 0.0
        %v1652 = vand.u32 %v695, 4294901760
        %v1653 = vsub.f32 %v695, %v1652
        %v1654 = vand.u32 %v1653, 4294901760
        %1655 = vmatpush1.msra.mxu0 %v1654
        %1656 = vmatprep.subr.mxu0 0.0
        %v1657 = vand.u32 %v696, 4294901760
        %v1658 = vsub.f32 %v696, %v1657
        %v1659 = vand.u32 %v1658, 4294901760
        %1660 = vmatpush1.msra.mxu0 %v1659
        %1661 = vmatprep.subr.mxu0 0.0
        %v1662 = vand.u32 %v697, 4294901760
        %v1663 = vsub.f32 %v697, %v1662
        %v1664 = vand.u32 %v1663, 4294901760
        %1665 = vmatpush1.msra.mxu0 %v1664
        %1666 = vmatprep.subr.mxu0 0.0
        %v1667 = vand.u32 %v698, 4294901760
        %v1668 = vsub.f32 %v698, %v1667
        %v1669 = vand.u32 %v1668, 4294901760
        %1670 = vmatpush1.msra.mxu0 %v1669
        %1671 = vmatprep.subr.mxu0 0.0
        %v1672 = vand.u32 %v699, 4294901760
        %v1673 = vsub.f32 %v699, %v1672
        %v1674 = vand.u32 %v1673, 4294901760
        %1675 = vmatpush1.msra.mxu0 %v1674
        %1676 = vmatprep.subr.mxu0 0.0
        %v1677 = vand.u32 %v700, 4294901760
        %v1678 = vsub.f32 %v700, %v1677
        %v1679 = vand.u32 %v1678, 4294901760
        %1680 = vmatpush1.msra.mxu0 %v1679
        %1681 = vmatprep.subr.mxu0 0.0
        %1682 = vmatpush1.msra.mxu0 0.0
        %1683 = vmatprep.subr.mxu0 0.0
        %1684 = vmatpush1.msra.mxu0 0.0
        %1685 = vmatprep.subr.mxu0 0.0
        %1686 = vmatpush1.msra.mxu0 0.0
        %1687 = vmatprep.subr.mxu0 0.0
        %1688 = vmatpush1.msra.mxu0 0.0
        %1689 = vmatprep.subr.mxu0 0.0
        %1690 = vmatpush1.msra.mxu0 0.0
        %1691 = vmatprep.subr.mxu0 0.0
        %1692 = vmatpush1.msra.mxu0 0.0
        %1693 = vmatprep.subr.mxu0 0.0
        %1694 = vmatpush1.msra.mxu0 0.0
        %1695 = vmatprep.subr.mxu0 0.0
        %1696 = vmatpush1.msra.mxu0 0.0
        %1697 = vmatprep.subr.mxu0 0.0
        %1698 = vmatpush1.msra.mxu0 0.0
        %1699 = vmatprep.subr.mxu0 0.0
        %1700 = vmatpush1.msra.mxu0 0.0
        %1701 = vmatprep.subr.mxu0 0.0
        %1702 = vmatpush1.msra.mxu0 0.0
        %1703 = vmatprep.subr.mxu0 0.0
        %1704 = vmatpush1.msra.mxu0 0.0
        %1705 = vmatprep.subr.mxu0 0.0
        %1706 = vmatpush1.msra.mxu0 0.0
        %1707 = vmatprep.subr.mxu0 0.0
        %1708 = vmatpush1.msra.mxu0 0.0
        %1709 = vmatprep.subr.mxu0 0.0
        %1710 = vmatpush1.msra.mxu0 0.0
        %1711 = vmatprep.subr.mxu0 0.0
        %1712 = vmatpush1.msra.mxu0 0.0
        %1713 = vmatprep.mubr.f32.mxu0 0.0
        %v1714 = vand.u32 %v669, 4294901760
        %1715 = vmatmul.mubr.f32.gmra.mrb[0].mxu0 %v1714
        %v1716 = vpop.f32.mrb[0].mxu0
        %v1717 = vadd.f32 %v1478, %v1716
        %v1718 = vpop.f32.mrb[0].mxu0
        %1719 = vmatprep.mubr.f32.mxu0 0.0
        %v1720 = vand.u32 %v670, 4294901760
        %1721 = vmatmul.mubr.f32.gmra.mrb[0].mxu0 %v1720
        %v1722 = vpop.f32.mrb[0].mxu0
        %v1723 = vadd.f32 %v1486, %v1722
        %v1724 = vpop.f32.mrb[0].mxu0
        %1725 = vmatprep.mubr.f32.mxu0 0.0
        %v1726 = vand.u32 %v671, 4294901760
        %1727 = vmatmul.mubr.f32.gmra.mrb[0].mxu0 %v1726
        %v1728 = vpop.f32.mrb[0].mxu0
        %v1729 = vadd.f32 %v1494, %v1728
        %v1730 = vpop.f32.mrb[0].mxu0
        %1731 = vmatprep.mubr.f32.mxu0 0.0
        %v1732 = vand.u32 %v672, 4294901760
        %1733 = vmatmul.mubr.f32.gmra.mrb[0].mxu0 %v1732
        %v1734 = vpop.f32.mrb[0].mxu0
        %v1735 = vadd.f32 %v1502, %v1734
        %v1736 = vpop.f32.mrb[0].mxu0
        %1737 = vmatprep.mubr.f32.mxu0 0.0
        %v1738 = vand.u32 %v673, 4294901760
        %1739 = vmatmul.mubr.f32.gmra.mrb[0].mxu0 %v1738
        %v1740 = vpop.f32.mrb[0].mxu0
        %v1741 = vadd.f32 %v1510, %v1740
        %v1742 = vpop.f32.mrb[0].mxu0
        %1743 = vmatprep.mubr.f32.mxu0 0.0
        %v1744 = vand.u32 %v674, 4294901760
        %1745 = vmatmul.mubr.f32.gmra.mrb[0].mxu0 %v1744
        %v1746 = vpop.f32.mrb[0].mxu0
        %v1747 = vadd.f32 %v1518, %v1746
        %v1748 = vpop.f32.mrb[0].mxu0
        %1749 = vmatprep.mubr.f32.mxu0 0.0
        %v1750 = vand.u32 %v675, 4294901760
        %1751 = vmatmul.mubr.f32.gmra.mrb[0].mxu0 %v1750
        %v1752 = vpop.f32.mrb[0].mxu0
        %v1753 = vadd.f32 %v1526, %v1752
        %v1754 = vpop.f32.mrb[0].mxu0
        %1755 = vmatprep.mubr.f32.mxu0 0.0
        %v1756 = vand.u32 %v676, 4294901760
        %1757 = vmatmul.mubr.f32.gmra.mrb[0].mxu0 %v1756
        %v1758 = vpop.f32.mrb[0].mxu0
        %v1759 = vadd.f32 %v1534, %v1758
        %v1760 = vpop.f32.mrb[0].mxu0
        %1761 = vmatprep.mubr.f32.mxu0 0.0
        %v1762 = vand.u32 %v677, 4294901760
        %1763 = vmatmul.mubr.f32.gmra.mrb[0].mxu0 %v1762
        %v1764 = vpop.f32.mrb[0].mxu0
        %v1765 = vadd.f32 %v1542, %v1764
        %v1766 = vpop.f32.mrb[0].mxu0
        %1767 = vmatprep.mubr.f32.mxu0 0.0
        %v1768 = vand.u32 %v678, 4294901760
        %1769 = vmatmul.mubr.f32.gmra.mrb[0].mxu0 %v1768
        %v1770 = vpop.f32.mrb[0].mxu0
        %v1771 = vadd.f32 %v1550, %v1770
        %v1772 = vpop.f32.mrb[0].mxu0
        %1773 = vmatprep.mubr.f32.mxu0 0.0
        %v1774 = vand.u32 %v679, 4294901760
        %1775 = vmatmul.mubr.f32.gmra.mrb[0].mxu0 %v1774
        %v1776 = vpop.f32.mrb[0].mxu0
        %v1777 = vadd.f32 %v1558, %v1776
        %v1778 = vpop.f32.mrb[0].mxu0
        %1779 = vmatprep.mubr.f32.mxu0 0.0
        %v1780 = vand.u32 %v680, 4294901760
        %1781 = vmatmul.mubr.f32.gmra.mrb[0].mxu0 %v1780
        %v1782 = vpop.f32.mrb[0].mxu0
        %v1783 = vadd.f32 %v1566, %v1782
        %v1784 = vpop.f32.mrb[0].mxu0
        %1785 = vmatprep.mubr.f32.mxu0 0.0
        %v1786 = vand.u32 %v681, 4294901760
        %1787 = vmatmul.mubr.f32.gmra.mrb[0].mxu0 %v1786
        %v1788 = vpop.f32.mrb[0].mxu0
        %v1789 = vadd.f32 %v1574, %v1788
        %v1790 = vpop.f32.mrb[0].mxu0
        %1791 = vmatprep.mubr.f32.mxu0 0.0
        %v1792 = vand.u32 %v682, 4294901760
        %1793 = vmatmul.mubr.f32.gmra.mrb[0].mxu0 %v1792
        %v1794 = vpop.f32.mrb[0].mxu0
        %v1795 = vadd.f32 %v1582, %v1794
        %v1796 = vpop.f32.mrb[0].mxu0
        %1797 = vmatprep.mubr.f32.mxu0 0.0
        %v1798 = vand.u32 %v683, 4294901760
        %1799 = vmatmul.mubr.f32.gmra.mrb[0].mxu0 %v1798
        %v1800 = vpop.f32.mrb[0].mxu0
        %v1801 = vadd.f32 %v1590, %v1800
        %v1802 = vpop.f32.mrb[0].mxu0
        %1803 = vmatprep.mubr.f32.mxu0 0.0
        %v1804 = vand.u32 %v684, 4294901760
        %1805 = vmatmul.mubr.f32.gmra.mrb[0].mxu0 %v1804
        %v1806 = vpop.f32.mrb[0].mxu0
        %v1807 = vadd.f32 %v1598, %v1806
        %v1808 = vpop.f32.mrb[0].mxu0
        %1809 = vdwg.mxu0
        %1810 = vmatprep.subr.mxu0 0.0
        %v1811 = vand.u32 %v685, 4294901760
        %1812 = vmatpush1.msra.mxu0 %v1811
        %1813 = vmatprep.subr.mxu0 0.0
        %v1814 = vand.u32 %v686, 4294901760
        %1815 = vmatpush1.msra.mxu0 %v1814
        %1816 = vmatprep.subr.mxu0 0.0
        %v1817 = vand.u32 %v687, 4294901760
        %1818 = vmatpush1.msra.mxu0 %v1817
        %1819 = vmatprep.subr.mxu0 0.0
        %v1820 = vand.u32 %v688, 4294901760
        %1821 = vmatpush1.msra.mxu0 %v1820
        %1822 = vmatprep.subr.mxu0 0.0
        %v1823 = vand.u32 %v689, 4294901760
        %1824 = vmatpush1.msra.mxu0 %v1823
        %1825 = vmatprep.subr.mxu0 0.0
        %v1826 = vand.u32 %v690, 4294901760
        %1827 = vmatpush1.msra.mxu0 %v1826
        %1828 = vmatprep.subr.mxu0 0.0
        %v1829 = vand.u32 %v691, 4294901760
        %1830 = vmatpush1.msra.mxu0 %v1829
        %1831 = vmatprep.subr.mxu0 0.0
        %v1832 = vand.u32 %v692, 4294901760
        %1833 = vmatpush1.msra.mxu0 %v1832
        %1834 = vmatprep.subr.mxu0 0.0
        %v1835 = vand.u32 %v693, 4294901760
        %1836 = vmatpush1.msra.mxu0 %v1835
        %1837 = vmatprep.subr.mxu0 0.0
        %v1838 = vand.u32 %v694, 4294901760
        %1839 = vmatpush1.msra.mxu0 %v1838
        %1840 = vmatprep.subr.mxu0 0.0
        %v1841 = vand.u32 %v695, 4294901760
        %1842 = vmatpush1.msra.mxu0 %v1841
        %1843 = vmatprep.subr.mxu0 0.0
        %v1844 = vand.u32 %v696, 4294901760
        %1845 = vmatpush1.msra.mxu0 %v1844
        %1846 = vmatprep.subr.mxu0 0.0
        %v1847 = vand.u32 %v697, 4294901760
        %1848 = vmatpush1.msra.mxu0 %v1847
        %1849 = vmatprep.subr.mxu0 0.0
        %v1850 = vand.u32 %v698, 4294901760
        %1851 = vmatpush1.msra.mxu0 %v1850
        %1852 = vmatprep.subr.mxu0 0.0
        %v1853 = vand.u32 %v699, 4294901760
        %1854 = vmatpush1.msra.mxu0 %v1853
        %1855 = vmatprep.subr.mxu0 0.0
        %v1856 = vand.u32 %v700, 4294901760
        %1857 = vmatpush1.msra.mxu0 %v1856
        %1858 = vmatprep.subr.mxu0 0.0
        %1859 = vmatpush1.msra.mxu0 0.0
        %1860 = vmatprep.subr.mxu0 0.0
        %1861 = vmatpush1.msra.mxu0 0.0
        %1862 = vmatprep.subr.mxu0 0.0
        %1863 = vmatpush1.msra.mxu0 0.0
        %1864 = vmatprep.subr.mxu0 0.0
        %1865 = vmatpush1.msra.mxu0 0.0
        %1866 = vmatprep.subr.mxu0 0.0
        %1867 = vmatpush1.msra.mxu0 0.0
        %1868 = vmatprep.subr.mxu0 0.0
        %1869 = vmatpush1.msra.mxu0 0.0
        %1870 = vmatprep.subr.mxu0 0.0
        %1871 = vmatpush1.msra.mxu0 0.0
        %1872 = vmatprep.subr.mxu0 0.0
        %1873 = vmatpush1.msra.mxu0 0.0
        %1874 = vmatprep.subr.mxu0 0.0
        %1875 = vmatpush1.msra.mxu0 0.0
        %1876 = vmatprep.subr.mxu0 0.0
        %1877 = vmatpush1.msra.mxu0 0.0
        %1878 = vmatprep.subr.mxu0 0.0
        %1879 = vmatpush1.msra.mxu0 0.0
        %1880 = vmatprep.subr.mxu0 0.0
        %1881 = vmatpush1.msra.mxu0 0.0
        %1882 = vmatprep.subr.mxu0 0.0
        %1883 = vmatpush1.msra.mxu0 0.0
        %1884 = vmatprep.subr.mxu0 0.0
        %1885 = vmatpush1.msra.mxu0 0.0
        %1886 = vmatprep.subr.mxu0 0.0
        %1887 = vmatpush1.msra.mxu0 0.0
        %1888 = vmatprep.subr.mxu0 0.0
        %1889 = vmatpush1.msra.mxu0 0.0
        %1890 = vmatprep.mubr.f32.mxu0 0.0
        %v1891 = vand.u32 %v669, 4294901760
        %1892 = vmatmul.mubr.f32.gmra.mrb[0].mxu0 %v1891
        %v1893 = vpop.f32.mrb[0].mxu0
        %v1894 = vadd.f32 %v1717, %v1893
        %v1895 = vpop.f32.mrb[0].mxu0
        %1896 = vmatprep.mubr.f32.mxu0 0.0
        %v1897 = vand.u32 %v670, 4294901760
        %1898 = vmatmul.mubr.f32.gmra.mrb[0].mxu0 %v1897
        %v1899 = vpop.f32.mrb[0].mxu0
        %v1900 = vadd.f32 %v1723, %v1899
        %v1901 = vpop.f32.mrb[0].mxu0
        %1902 = vmatprep.mubr.f32.mxu0 0.0
        %v1903 = vand.u32 %v671, 4294901760
        %1904 = vmatmul.mubr.f32.gmra.mrb[0].mxu0 %v1903
        %v1905 = vpop.f32.mrb[0].mxu0
        %v1906 = vadd.f32 %v1729, %v1905
        %v1907 = vpop.f32.mrb[0].mxu0
        %1908 = vmatprep.mubr.f32.mxu0 0.0
        %v1909 = vand.u32 %v672, 4294901760
        %1910 = vmatmul.mubr.f32.gmra.mrb[0].mxu0 %v1909
        %v1911 = vpop.f32.mrb[0].mxu0
        %v1912 = vadd.f32 %v1735, %v1911
        %v1913 = vpop.f32.mrb[0].mxu0
        %1914 = vmatprep.mubr.f32.mxu0 0.0
        %v1915 = vand.u32 %v673, 4294901760
        %1916 = vmatmul.mubr.f32.gmra.mrb[0].mxu0 %v1915
        %v1917 = vpop.f32.mrb[0].mxu0
        %v1918 = vadd.f32 %v1741, %v1917
        %v1919 = vpop.f32.mrb[0].mxu0
        %1920 = vmatprep.mubr.f32.mxu0 0.0
        %v1921 = vand.u32 %v674, 4294901760
        %1922 = vmatmul.mubr.f32.gmra.mrb[0].mxu0 %v1921
        %v1923 = vpop.f32.mrb[0].mxu0
        %v1924 = vadd.f32 %v1747, %v1923
        %v1925 = vpop.f32.mrb[0].mxu0
        %1926 = vmatprep.mubr.f32.mxu0 0.0
        %v1927 = vand.u32 %v675, 4294901760
        %1928 = vmatmul.mubr.f32.gmra.mrb[0].mxu0 %v1927
        %v1929 = vpop.f32.mrb[0].mxu0
        %v1930 = vadd.f32 %v1753, %v1929
        %v1931 = vpop.f32.mrb[0].mxu0
        %1932 = vmatprep.mubr.f32.mxu0 0.0
        %v1933 = vand.u32 %v676, 4294901760
        %1934 = vmatmul.mubr.f32.gmra.mrb[0].mxu0 %v1933
        %v1935 = vpop.f32.mrb[0].mxu0
        %v1936 = vadd.f32 %v1759, %v1935
        %v1937 = vpop.f32.mrb[0].mxu0
        %1938 = vmatprep.mubr.f32.mxu0 0.0
        %v1939 = vand.u32 %v677, 4294901760
        %1940 = vmatmul.mubr.f32.gmra.mrb[0].mxu0 %v1939
        %v1941 = vpop.f32.mrb[0].mxu0
        %v1942 = vadd.f32 %v1765, %v1941
        %v1943 = vpop.f32.mrb[0].mxu0
        %1944 = vmatprep.mubr.f32.mxu0 0.0
        %v1945 = vand.u32 %v678, 4294901760
        %1946 = vmatmul.mubr.f32.gmra.mrb[0].mxu0 %v1945
        %v1947 = vpop.f32.mrb[0].mxu0
        %v1948 = vadd.f32 %v1771, %v1947
        %v1949 = vpop.f32.mrb[0].mxu0
        %1950 = vmatprep.mubr.f32.mxu0 0.0
        %v1951 = vand.u32 %v679, 4294901760
        %1952 = vmatmul.mubr.f32.gmra.mrb[0].mxu0 %v1951
        %v1953 = vpop.f32.mrb[0].mxu0
        %v1954 = vadd.f32 %v1777, %v1953
        %v1955 = vpop.f32.mrb[0].mxu0
        %1956 = vmatprep.mubr.f32.mxu0 0.0
        %v1957 = vand.u32 %v680, 4294901760
        %1958 = vmatmul.mubr.f32.gmra.mrb[0].mxu0 %v1957
        %v1959 = vpop.f32.mrb[0].mxu0
        %v1960 = vadd.f32 %v1783, %v1959
        %v1961 = vpop.f32.mrb[0].mxu0
        %1962 = vmatprep.mubr.f32.mxu0 0.0
        %v1963 = vand.u32 %v681, 4294901760
        %1964 = vmatmul.mubr.f32.gmra.mrb[0].mxu0 %v1963
        %v1965 = vpop.f32.mrb[0].mxu0
        %v1966 = vadd.f32 %v1789, %v1965
        %v1967 = vpop.f32.mrb[0].mxu0
        %1968 = vmatprep.mubr.f32.mxu0 0.0
        %v1969 = vand.u32 %v682, 4294901760
        %1970 = vmatmul.mubr.f32.gmra.mrb[0].mxu0 %v1969
        %v1971 = vpop.f32.mrb[0].mxu0
        %v1972 = vadd.f32 %v1795, %v1971
        %v1973 = vpop.f32.mrb[0].mxu0
        %1974 = vmatprep.mubr.f32.mxu0 0.0
        %v1975 = vand.u32 %v683, 4294901760
        %1976 = vmatmul.mubr.f32.gmra.mrb[0].mxu0 %v1975
        %v1977 = vpop.f32.mrb[0].mxu0
        %v1978 = vadd.f32 %v1801, %v1977
        %v1979 = vpop.f32.mrb[0].mxu0
        %1980 = vmatprep.mubr.f32.mxu0 0.0
        %v1981 = vand.u32 %v684, 4294901760
        %1982 = vmatmul.mubr.f32.gmra.mrb[0].mxu0 %v1981
        %v1983 = vpop.f32.mrb[0].mxu0
        %v1984 = vadd.f32 %v1807, %v1983
        %v1985 = vpop.f32.mrb[0].mxu0
        %1986 = vdwg.mxu0
        %v1987 = vld [vmem:[%s2] sm:$0xff]
        %v1988 = vld [vmem:[%s2 + $0x8] sm:$0xff]
        %v1989 = vld [vmem:[%s2 + $0x10] sm:$0xff]
        %v1990 = vld [vmem:[%s2 + $0x18] sm:$0xff]
        %v1991 = vld [vmem:[%s2 + $0x20] sm:$0xff]
        %v1992 = vld [vmem:[%s2 + $0x28] sm:$0xff]
        %v1993 = vld [vmem:[%s2 + $0x30] sm:$0xff]
        %v1994 = vld [vmem:[%s2 + $0x38] sm:$0xff]
        %v1995 = vld [vmem:[%s2 + $0x40] sm:$0xff]
        %v1996 = vld [vmem:[%s2 + $0x48] sm:$0xff]
        %v1997 = vld [vmem:[%s2 + $0x50] sm:$0xff]
        %v1998 = vld [vmem:[%s2 + $0x58] sm:$0xff]
        %v1999 = vld [vmem:[%s2 + $0x60] sm:$0xff]
        %v2000 = vld [vmem:[%s2 + $0x68] sm:$0xff]
        %v2001 = vld [vmem:[%s2 + $0x70] sm:$0xff]
        %v2002 = vld [vmem:[%s2 + $0x78] sm:$0xff]
        %v2003 = vld [vmem:[%s2 + $0x80] sm:$0xff]
        %v2004 = vld [vmem:[%s2 + $0x88] sm:$0xff]
        %v2005 = vld [vmem:[%s2 + $0x90] sm:$0xff]
        %v2006 = vld [vmem:[%s2 + $0x98] sm:$0xff]
        %v2007 = vld [vmem:[%s2 + $0xa0] sm:$0xff]
        %v2008 = vld [vmem:[%s2 + $0xa8] sm:$0xff]
        %v2009 = vld [vmem:[%s2 + $0xb0] sm:$0xff]
        %v2010 = vld [vmem:[%s2 + $0xb8] sm:$0xff]
        %v2011 = vld [vmem:[%s2 + $0xc0] sm:$0xff]
        %v2012 = vld [vmem:[%s2 + $0xc8] sm:$0xff]
        %v2013 = vld [vmem:[%s2 + $0xd0] sm:$0xff]
        %v2014 = vld [vmem:[%s2 + $0xd8] sm:$0xff]
        %v2015 = vld [vmem:[%s2 + $0xe0] sm:$0xff]
        %v2016 = vld [vmem:[%s2 + $0xe8] sm:$0xff]
        %v2017 = vld [vmem:[%s2 + $0xf0] sm:$0xff]
        %v2018 = vld [vmem:[%s2 + $0xf8] sm:$0xff]
        %v2019 = vld [vmem:[%s3] sm:$0x3]
        %v2021 = vlaneseq
        %v2022 = vshrl.u32 %v2021, 7
        %v2023 = vsub.s32 0, %v2022
        %v2024 = vrot.slane %v2019, %v2023
        %v2025 = vlaneseq
        %v2026 = vshrl.u32 %v2025, 7
        %v2027 = vsub.s32 1, %v2026
        %v2028 = vrot.slane %v2019, %v2027
        %v2031 = vand.u32 %v1988, 4294901760
        %2032 = vmatprep.subr.mxu0 %v2031
        %v2033 = vand.u32 %v1987, 4294901760
        %2034 = vmatpush1.msra.mxu0 %v2033
        %v2035 = vand.u32 %v1990, 4294901760
        %2036 = vmatprep.subr.mxu0 %v2035
        %v2037 = vand.u32 %v1989, 4294901760
        %2038 = vmatpush1.msra.mxu0 %v2037
        %v2039 = vand.u32 %v1992, 4294901760
        %2040 = vmatprep.subr.mxu0 %v2039
        %v2041 = vand.u32 %v1991, 4294901760
        %2042 = vmatpush1.msra.mxu0 %v2041
        %v2043 = vand.u32 %v1994, 4294901760
        %2044 = vmatprep.subr.mxu0 %v2043
        %v2045 = vand.u32 %v1993, 4294901760
        %2046 = vmatpush1.msra.mxu0 %v2045
        %v2047 = vand.u32 %v1996, 4294901760
        %2048 = vmatprep.subr.mxu0 %v2047
        %v2049 = vand.u32 %v1995, 4294901760
        %2050 = vmatpush1.msra.mxu0 %v2049
        %v2051 = vand.u32 %v1998, 4294901760
        %2052 = vmatprep.subr.mxu0 %v2051
        %v2053 = vand.u32 %v1997, 4294901760
        %2054 = vmatpush1.msra.mxu0 %v2053
        %v2055 = vand.u32 %v2000, 4294901760
        %2056 = vmatprep.subr.mxu0 %v2055
        %v2057 = vand.u32 %v1999, 4294901760
        %2058 = vmatpush1.msra.mxu0 %v2057
        %v2059 = vand.u32 %v2002, 4294901760
        %2060 = vmatprep.subr.mxu0 %v2059
        %v2061 = vand.u32 %v2001, 4294901760
        %2062 = vmatpush1.msra.mxu0 %v2061
        %v2063 = vand.u32 %v2004, 4294901760
        %2064 = vmatprep.subr.mxu0 %v2063
        %v2065 = vand.u32 %v2003, 4294901760
        %2066 = vmatpush1.msra.mxu0 %v2065
        %v2067 = vand.u32 %v2006, 4294901760
        %2068 = vmatprep.subr.mxu0 %v2067
        %v2069 = vand.u32 %v2005, 4294901760
        %2070 = vmatpush1.msra.mxu0 %v2069
        %v2071 = vand.u32 %v2008, 4294901760
        %2072 = vmatprep.subr.mxu0 %v2071
        %v2073 = vand.u32 %v2007, 4294901760
        %2074 = vmatpush1.msra.mxu0 %v2073
        %v2075 = vand.u32 %v2010, 4294901760
        %2076 = vmatprep.subr.mxu0 %v2075
        %v2077 = vand.u32 %v2009, 4294901760
        %2078 = vmatpush1.msra.mxu0 %v2077
        %v2079 = vand.u32 %v2012, 4294901760
        %2080 = vmatprep.subr.mxu0 %v2079
        %v2081 = vand.u32 %v2011, 4294901760
        %2082 = vmatpush1.msra.mxu0 %v2081
        %v2083 = vand.u32 %v2014, 4294901760
        %2084 = vmatprep.subr.mxu0 %v2083
        %v2085 = vand.u32 %v2013, 4294901760
        %2086 = vmatpush1.msra.mxu0 %v2085
        %v2087 = vand.u32 %v2016, 4294901760
        %2088 = vmatprep.subr.mxu0 %v2087
        %v2089 = vand.u32 %v2015, 4294901760
        %2090 = vmatpush1.msra.mxu0 %v2089
        %v2091 = vand.u32 %v2018, 4294901760
        %2092 = vmatprep.subr.mxu0 %v2091
        %v2093 = vand.u32 %v2017, 4294901760
        %2094 = vmatpush1.msra.mxu0 %v2093
        %2095 = vmatprep.subr.mxu0 0.0
        %2096 = vmatpush1.msra.mxu0 0.0
        %2097 = vmatprep.subr.mxu0 0.0
        %2098 = vmatpush1.msra.mxu0 0.0
        %2099 = vmatprep.subr.mxu0 0.0
        %2100 = vmatpush1.msra.mxu0 0.0
        %2101 = vmatprep.subr.mxu0 0.0
        %2102 = vmatpush1.msra.mxu0 0.0
        %2103 = vmatprep.subr.mxu0 0.0
        %2104 = vmatpush1.msra.mxu0 0.0
        %2105 = vmatprep.subr.mxu0 0.0
        %2106 = vmatpush1.msra.mxu0 0.0
        %2107 = vmatprep.subr.mxu0 0.0
        %2108 = vmatpush1.msra.mxu0 0.0
        %2109 = vmatprep.subr.mxu0 0.0
        %2110 = vmatpush1.msra.mxu0 0.0
        %2111 = vmatprep.subr.mxu0 0.0
        %2112 = vmatpush1.msra.mxu0 0.0
        %2113 = vmatprep.subr.mxu0 0.0
        %2114 = vmatpush1.msra.mxu0 0.0
        %2115 = vmatprep.subr.mxu0 0.0
        %2116 = vmatpush1.msra.mxu0 0.0
        %2117 = vmatprep.subr.mxu0 0.0
        %2118 = vmatpush1.msra.mxu0 0.0
        %2119 = vmatprep.subr.mxu0 0.0
        %2120 = vmatpush1.msra.mxu0 0.0
        %2121 = vmatprep.subr.mxu0 0.0
        %2122 = vmatpush1.msra.mxu0 0.0
        %2123 = vmatprep.subr.mxu0 0.0
        %2124 = vmatpush1.msra.mxu0 0.0
        %2125 = vmatprep.subr.mxu0 0.0
        %2126 = vmatpush1.msra.mxu0 0.0
        %2127 = vmatprep.mubr.f32.mxu0 0.0
        %v2128 = vand.u32 %v1894, 4294901760
        %v2129 = vsub.f32 %v1894, %v2128
        %v2130 = vand.u32 %v2129, 4294901760
        %v2131 = vsub.f32 %v2129, %v2130
        %v2132 = vand.u32 %v2131, 4294901760
        %2133 = vmatmul.mubr.f32.gmra.mrb[0].mxu0 %v2132
        %v2134 = vpop.f32.mrb[0].mxu0
        %v2135 = vadd.f32 %v2024, %v2134
        %v2136 = vpop.f32.mrb[0].mxu0
        %v2137 = vadd.f32 %v2028, %v2136
        %2138 = vmatprep.mubr.f32.mxu0 0.0
        %v2139 = vand.u32 %v1900, 4294901760
        %v2140 = vsub.f32 %v1900, %v2139
        %v2141 = vand.u32 %v2140, 4294901760
        %v2142 = vsub.f32 %v2140, %v2141
        %v2143 = vand.u32 %v2142, 4294901760
        %2144 = vmatmul.mubr.f32.gmra.mrb[0].mxu0 %v2143
        %v2145 = vpop.f32.mrb[0].mxu0
        %v2146 = vadd.f32 %v2024, %v2145
        %v2147 = vpop.f32.mrb[0].mxu0
        %v2148 = vadd.f32 %v2028, %v2147
        %2149 = vmatprep.mubr.f32.mxu0 0.0
        %v2150 = vand.u32 %v1906, 4294901760
        %v2151 = vsub.f32 %v1906, %v2150
        %v2152 = vand.u32 %v2151, 4294901760
        %v2153 = vsub.f32 %v2151, %v2152
        %v2154 = vand.u32 %v2153, 4294901760
        %2155 = vmatmul.mubr.f32.gmra.mrb[0].mxu0 %v2154
        %v2156 = vpop.f32.mrb[0].mxu0
        %v2157 = vadd.f32 %v2024, %v2156
        %v2158 = vpop.f32.mrb[0].mxu0
        %v2159 = vadd.f32 %v2028, %v2158
        %2160 = vmatprep.mubr.f32.mxu0 0.0
        %v2161 = vand.u32 %v1912, 4294901760
        %v2162 = vsub.f32 %v1912, %v2161
        %v2163 = vand.u32 %v2162, 4294901760
        %v2164 = vsub.f32 %v2162, %v2163
        %v2165 = vand.u32 %v2164, 4294901760
        %2166 = vmatmul.mubr.f32.gmra.mrb[0].mxu0 %v2165
        %v2167 = vpop.f32.mrb[0].mxu0
        %v2168 = vadd.f32 %v2024, %v2167
        %v2169 = vpop.f32.mrb[0].mxu0
        %v2170 = vadd.f32 %v2028, %v2169
        %2171 = vmatprep.mubr.f32.mxu0 0.0
        %v2172 = vand.u32 %v1918, 4294901760
        %v2173 = vsub.f32 %v1918, %v2172
        %v2174 = vand.u32 %v2173, 4294901760
        %v2175 = vsub.f32 %v2173, %v2174
        %v2176 = vand.u32 %v2175, 4294901760
        %2177 = vmatmul.mubr.f32.gmra.mrb[0].mxu0 %v2176
        %v2178 = vpop.f32.mrb[0].mxu0
        %v2179 = vadd.f32 %v2024, %v2178
        %v2180 = vpop.f32.mrb[0].mxu0
        %v2181 = vadd.f32 %v2028, %v2180
        %2182 = vmatprep.mubr.f32.mxu0 0.0
        %v2183 = vand.u32 %v1924, 4294901760
        %v2184 = vsub.f32 %v1924, %v2183
        %v2185 = vand.u32 %v2184, 4294901760
        %v2186 = vsub.f32 %v2184, %v2185
        %v2187 = vand.u32 %v2186, 4294901760
        %2188 = vmatmul.mubr.f32.gmra.mrb[0].mxu0 %v2187
        %v2189 = vpop.f32.mrb[0].mxu0
        %v2190 = vadd.f32 %v2024, %v2189
        %v2191 = vpop.f32.mrb[0].mxu0
        %v2192 = vadd.f32 %v2028, %v2191
        %2193 = vmatprep.mubr.f32.mxu0 0.0
        %v2194 = vand.u32 %v1930, 4294901760
        %v2195 = vsub.f32 %v1930, %v2194
        %v2196 = vand.u32 %v2195, 4294901760
        %v2197 = vsub.f32 %v2195, %v2196
        %v2198 = vand.u32 %v2197, 4294901760
        %2199 = vmatmul.mubr.f32.gmra.mrb[0].mxu0 %v2198
        %v2200 = vpop.f32.mrb[0].mxu0
        %v2201 = vadd.f32 %v2024, %v2200
        %v2202 = vpop.f32.mrb[0].mxu0
        %v2203 = vadd.f32 %v2028, %v2202
        %2204 = vmatprep.mubr.f32.mxu0 0.0
        %v2205 = vand.u32 %v1936, 4294901760
        %v2206 = vsub.f32 %v1936, %v2205
        %v2207 = vand.u32 %v2206, 4294901760
        %v2208 = vsub.f32 %v2206, %v2207
        %v2209 = vand.u32 %v2208, 4294901760
        %2210 = vmatmul.mubr.f32.gmra.mrb[0].mxu0 %v2209
        %v2211 = vpop.f32.mrb[0].mxu0
        %v2212 = vadd.f32 %v2024, %v2211
        %v2213 = vpop.f32.mrb[0].mxu0
        %v2214 = vadd.f32 %v2028, %v2213
        %2215 = vmatprep.mubr.f32.mxu0 0.0
        %v2216 = vand.u32 %v1942, 4294901760
        %v2217 = vsub.f32 %v1942, %v2216
        %v2218 = vand.u32 %v2217, 4294901760
        %v2219 = vsub.f32 %v2217, %v2218
        %v2220 = vand.u32 %v2219, 4294901760
        %2221 = vmatmul.mubr.f32.gmra.mrb[0].mxu0 %v2220
        %v2222 = vpop.f32.mrb[0].mxu0
        %v2223 = vadd.f32 %v2024, %v2222
        %v2224 = vpop.f32.mrb[0].mxu0
        %v2225 = vadd.f32 %v2028, %v2224
        %2226 = vmatprep.mubr.f32.mxu0 0.0
        %v2227 = vand.u32 %v1948, 4294901760
        %v2228 = vsub.f32 %v1948, %v2227
        %v2229 = vand.u32 %v2228, 4294901760
        %v2230 = vsub.f32 %v2228, %v2229
        %v2231 = vand.u32 %v2230, 4294901760
        %2232 = vmatmul.mubr.f32.gmra.mrb[0].mxu0 %v2231
        %v2233 = vpop.f32.mrb[0].mxu0
        %v2234 = vadd.f32 %v2024, %v2233
        %v2235 = vpop.f32.mrb[0].mxu0
        %v2236 = vadd.f32 %v2028, %v2235
        %2237 = vmatprep.mubr.f32.mxu0 0.0
        %v2238 = vand.u32 %v1954, 4294901760
        %v2239 = vsub.f32 %v1954, %v2238
        %v2240 = vand.u32 %v2239, 4294901760
        %v2241 = vsub.f32 %v2239, %v2240
        %v2242 = vand.u32 %v2241, 4294901760
        %2243 = vmatmul.mubr.f32.gmra.mrb[0].mxu0 %v2242
        %v2244 = vpop.f32.mrb[0].mxu0
        %v2245 = vadd.f32 %v2024, %v2244
        %v2246 = vpop.f32.mrb[0].mxu0
        %v2247 = vadd.f32 %v2028, %v2246
        %2248 = vmatprep.mubr.f32.mxu0 0.0
        %v2249 = vand.u32 %v1960, 4294901760
        %v2250 = vsub.f32 %v1960, %v2249
        %v2251 = vand.u32 %v2250, 4294901760
        %v2252 = vsub.f32 %v2250, %v2251
        %v2253 = vand.u32 %v2252, 4294901760
        %2254 = vmatmul.mubr.f32.gmra.mrb[0].mxu0 %v2253
        %v2255 = vpop.f32.mrb[0].mxu0
        %v2256 = vadd.f32 %v2024, %v2255
        %v2257 = vpop.f32.mrb[0].mxu0
        %v2258 = vadd.f32 %v2028, %v2257
        %2259 = vmatprep.mubr.f32.mxu0 0.0
        %v2260 = vand.u32 %v1966, 4294901760
        %v2261 = vsub.f32 %v1966, %v2260
        %v2262 = vand.u32 %v2261, 4294901760
        %v2263 = vsub.f32 %v2261, %v2262
        %v2264 = vand.u32 %v2263, 4294901760
        %2265 = vmatmul.mubr.f32.gmra.mrb[0].mxu0 %v2264
        %v2266 = vpop.f32.mrb[0].mxu0
        %v2267 = vadd.f32 %v2024, %v2266
        %v2268 = vpop.f32.mrb[0].mxu0
        %v2269 = vadd.f32 %v2028, %v2268
        %2270 = vmatprep.mubr.f32.mxu0 0.0
        %v2271 = vand.u32 %v1972, 4294901760
        %v2272 = vsub.f32 %v1972, %v2271
        %v2273 = vand.u32 %v2272, 4294901760
        %v2274 = vsub.f32 %v2272, %v2273
        %v2275 = vand.u32 %v2274, 4294901760
        %2276 = vmatmul.mubr.f32.gmra.mrb[0].mxu0 %v2275
        %v2277 = vpop.f32.mrb[0].mxu0
        %v2278 = vadd.f32 %v2024, %v2277
        %v2279 = vpop.f32.mrb[0].mxu0
        %v2280 = vadd.f32 %v2028, %v2279
        %2281 = vmatprep.mubr.f32.mxu0 0.0
        %v2282 = vand.u32 %v1978, 4294901760
        %v2283 = vsub.f32 %v1978, %v2282
        %v2284 = vand.u32 %v2283, 4294901760
        %v2285 = vsub.f32 %v2283, %v2284
        %v2286 = vand.u32 %v2285, 4294901760
        %2287 = vmatmul.mubr.f32.gmra.mrb[0].mxu0 %v2286
        %v2288 = vpop.f32.mrb[0].mxu0
        %v2289 = vadd.f32 %v2024, %v2288
        %v2290 = vpop.f32.mrb[0].mxu0
        %v2291 = vadd.f32 %v2028, %v2290
        %2292 = vmatprep.mubr.f32.mxu0 0.0
        %v2293 = vand.u32 %v1984, 4294901760
        %v2294 = vsub.f32 %v1984, %v2293
        %v2295 = vand.u32 %v2294, 4294901760
        %v2296 = vsub.f32 %v2294, %v2295
        %v2297 = vand.u32 %v2296, 4294901760
        %2298 = vmatmul.mubr.f32.gmra.mrb[0].mxu0 %v2297
        %v2299 = vpop.f32.mrb[0].mxu0
        %v2300 = vadd.f32 %v2024, %v2299
        %v2301 = vpop.f32.mrb[0].mxu0
        %v2302 = vadd.f32 %v2028, %v2301
        %2303 = vdwg.mxu0
        %v2304 = vand.u32 %v1988, 4294901760
        %v2305 = vsub.f32 %v1988, %v2304
        %v2306 = vand.u32 %v2305, 4294901760
        %v2307 = vsub.f32 %v2305, %v2306
        %v2308 = vand.u32 %v2307, 4294901760
        %2309 = vmatprep.subr.mxu0 %v2308
        %v2310 = vand.u32 %v1987, 4294901760
        %v2311 = vsub.f32 %v1987, %v2310
        %v2312 = vand.u32 %v2311, 4294901760
        %v2313 = vsub.f32 %v2311, %v2312
        %v2314 = vand.u32 %v2313, 4294901760
        %2315 = vmatpush1.msra.mxu0 %v2314
        %v2316 = vand.u32 %v1990, 4294901760
        %v2317 = vsub.f32 %v1990, %v2316
        %v2318 = vand.u32 %v2317, 4294901760
        %v2319 = vsub.f32 %v2317, %v2318
        %v2320 = vand.u32 %v2319, 4294901760
        %2321 = vmatprep.subr.mxu0 %v2320
        %v2322 = vand.u32 %v1989, 4294901760
        %v2323 = vsub.f32 %v1989, %v2322
        %v2324 = vand.u32 %v2323, 4294901760
        %v2325 = vsub.f32 %v2323, %v2324
        %v2326 = vand.u32 %v2325, 4294901760
        %2327 = vmatpush1.msra.mxu0 %v2326
        %v2328 = vand.u32 %v1992, 4294901760
        %v2329 = vsub.f32 %v1992, %v2328
        %v2330 = vand.u32 %v2329, 4294901760
        %v2331 = vsub.f32 %v2329, %v2330
        %v2332 = vand.u32 %v2331, 4294901760
        %2333 = vmatprep.subr.mxu0 %v2332
        %v2334 = vand.u32 %v1991, 4294901760
        %v2335 = vsub.f32 %v1991, %v2334
        %v2336 = vand.u32 %v2335, 4294901760
        %v2337 = vsub.f32 %v2335, %v2336
        %v2338 = vand.u32 %v2337, 4294901760
        %2339 = vmatpush1.msra.mxu0 %v2338
        %v2340 = vand.u32 %v1994, 4294901760
        %v2341 = vsub.f32 %v1994, %v2340
        %v2342 = vand.u32 %v2341, 4294901760
        %v2343 = vsub.f32 %v2341, %v2342
        %v2344 = vand.u32 %v2343, 4294901760
        %2345 = vmatprep.subr.mxu0 %v2344
        %v2346 = vand.u32 %v1993, 4294901760
        %v2347 = vsub.f32 %v1993, %v2346
        %v2348 = vand.u32 %v2347, 4294901760
        %v2349 = vsub.f32 %v2347, %v2348
        %v2350 = vand.u32 %v2349, 4294901760
        %2351 = vmatpush1.msra.mxu0 %v2350
        %v2352 = vand.u32 %v1996, 4294901760
        %v2353 = vsub.f32 %v1996, %v2352
        %v2354 = vand.u32 %v2353, 4294901760
        %v2355 = vsub.f32 %v2353, %v2354
        %v2356 = vand.u32 %v2355, 4294901760
        %2357 = vmatprep.subr.mxu0 %v2356
        %v2358 = vand.u32 %v1995, 4294901760
        %v2359 = vsub.f32 %v1995, %v2358
        %v2360 = vand.u32 %v2359, 4294901760
        %v2361 = vsub.f32 %v2359, %v2360
        %v2362 = vand.u32 %v2361, 4294901760
        %2363 = vmatpush1.msra.mxu0 %v2362
        %v2364 = vand.u32 %v1998, 4294901760
        %v2365 = vsub.f32 %v1998, %v2364
        %v2366 = vand.u32 %v2365, 4294901760
        %v2367 = vsub.f32 %v2365, %v2366
        %v2368 = vand.u32 %v2367, 4294901760
        %2369 = vmatprep.subr.mxu0 %v2368
        %v2370 = vand.u32 %v1997, 4294901760
        %v2371 = vsub.f32 %v1997, %v2370
        %v2372 = vand.u32 %v2371, 4294901760
        %v2373 = vsub.f32 %v2371, %v2372
        %v2374 = vand.u32 %v2373, 4294901760
        %2375 = vmatpush1.msra.mxu0 %v2374
        %v2376 = vand.u32 %v2000, 4294901760
        %v2377 = vsub.f32 %v2000, %v2376
        %v2378 = vand.u32 %v2377, 4294901760
        %v2379 = vsub.f32 %v2377, %v2378
        %v2380 = vand.u32 %v2379, 4294901760
        %2381 = vmatprep.subr.mxu0 %v2380
        %v2382 = vand.u32 %v1999, 4294901760
        %v2383 = vsub.f32 %v1999, %v2382
        %v2384 = vand.u32 %v2383, 4294901760
        %v2385 = vsub.f32 %v2383, %v2384
        %v2386 = vand.u32 %v2385, 4294901760
        %2387 = vmatpush1.msra.mxu0 %v2386
        %v2388 = vand.u32 %v2002, 4294901760
        %v2389 = vsub.f32 %v2002, %v2388
        %v2390 = vand.u32 %v2389, 4294901760
        %v2391 = vsub.f32 %v2389, %v2390
        %v2392 = vand.u32 %v2391, 4294901760
        %2393 = vmatprep.subr.mxu0 %v2392
        %v2394 = vand.u32 %v2001, 4294901760
        %v2395 = vsub.f32 %v2001, %v2394
        %v2396 = vand.u32 %v2395, 4294901760
        %v2397 = vsub.f32 %v2395, %v2396
        %v2398 = vand.u32 %v2397, 4294901760
        %2399 = vmatpush1.msra.mxu0 %v2398
        %v2400 = vand.u32 %v2004, 4294901760
        %v2401 = vsub.f32 %v2004, %v2400
        %v2402 = vand.u32 %v2401, 4294901760
        %v2403 = vsub.f32 %v2401, %v2402
        %v2404 = vand.u32 %v2403, 4294901760
        %2405 = vmatprep.subr.mxu0 %v2404
        %v2406 = vand.u32 %v2003, 4294901760
        %v2407 = vsub.f32 %v2003, %v2406
        %v2408 = vand.u32 %v2407, 4294901760
        %v2409 = vsub.f32 %v2407, %v2408
        %v2410 = vand.u32 %v2409, 4294901760
        %2411 = vmatpush1.msra.mxu0 %v2410
        %v2412 = vand.u32 %v2006, 4294901760
        %v2413 = vsub.f32 %v2006, %v2412
        %v2414 = vand.u32 %v2413, 4294901760
        %v2415 = vsub.f32 %v2413, %v2414
        %v2416 = vand.u32 %v2415, 4294901760
        %2417 = vmatprep.subr.mxu0 %v2416
        %v2418 = vand.u32 %v2005, 4294901760
        %v2419 = vsub.f32 %v2005, %v2418
        %v2420 = vand.u32 %v2419, 4294901760
        %v2421 = vsub.f32 %v2419, %v2420
        %v2422 = vand.u32 %v2421, 4294901760
        %2423 = vmatpush1.msra.mxu0 %v2422
        %v2424 = vand.u32 %v2008, 4294901760
        %v2425 = vsub.f32 %v2008, %v2424
        %v2426 = vand.u32 %v2425, 4294901760
        %v2427 = vsub.f32 %v2425, %v2426
        %v2428 = vand.u32 %v2427, 4294901760
        %2429 = vmatprep.subr.mxu0 %v2428
        %v2430 = vand.u32 %v2007, 4294901760
        %v2431 = vsub.f32 %v2007, %v2430
        %v2432 = vand.u32 %v2431, 4294901760
        %v2433 = vsub.f32 %v2431, %v2432
        %v2434 = vand.u32 %v2433, 4294901760
        %2435 = vmatpush1.msra.mxu0 %v2434
        %v2436 = vand.u32 %v2010, 4294901760
        %v2437 = vsub.f32 %v2010, %v2436
        %v2438 = vand.u32 %v2437, 4294901760
        %v2439 = vsub.f32 %v2437, %v2438
        %v2440 = vand.u32 %v2439, 4294901760
        %2441 = vmatprep.subr.mxu0 %v2440
        %v2442 = vand.u32 %v2009, 4294901760
        %v2443 = vsub.f32 %v2009, %v2442
        %v2444 = vand.u32 %v2443, 4294901760
        %v2445 = vsub.f32 %v2443, %v2444
        %v2446 = vand.u32 %v2445, 4294901760
        %2447 = vmatpush1.msra.mxu0 %v2446
        %v2448 = vand.u32 %v2012, 4294901760
        %v2449 = vsub.f32 %v2012, %v2448
        %v2450 = vand.u32 %v2449, 4294901760
        %v2451 = vsub.f32 %v2449, %v2450
        %v2452 = vand.u32 %v2451, 4294901760
        %2453 = vmatprep.subr.mxu0 %v2452
        %v2454 = vand.u32 %v2011, 4294901760
        %v2455 = vsub.f32 %v2011, %v2454
        %v2456 = vand.u32 %v2455, 4294901760
        %v2457 = vsub.f32 %v2455, %v2456
        %v2458 = vand.u32 %v2457, 4294901760
        %2459 = vmatpush1.msra.mxu0 %v2458
        %v2460 = vand.u32 %v2014, 4294901760
        %v2461 = vsub.f32 %v2014, %v2460
        %v2462 = vand.u32 %v2461, 4294901760
        %v2463 = vsub.f32 %v2461, %v2462
        %v2464 = vand.u32 %v2463, 4294901760
        %2465 = vmatprep.subr.mxu0 %v2464
        %v2466 = vand.u32 %v2013, 4294901760
        %v2467 = vsub.f32 %v2013, %v2466
        %v2468 = vand.u32 %v2467, 4294901760
        %v2469 = vsub.f32 %v2467, %v2468
        %v2470 = vand.u32 %v2469, 4294901760
        %2471 = vmatpush1.msra.mxu0 %v2470
        %v2472 = vand.u32 %v2016, 4294901760
        %v2473 = vsub.f32 %v2016, %v2472
        %v2474 = vand.u32 %v2473, 4294901760
        %v2475 = vsub.f32 %v2473, %v2474
        %v2476 = vand.u32 %v2475, 4294901760
        %2477 = vmatprep.subr.mxu0 %v2476
        %v2478 = vand.u32 %v2015, 4294901760
        %v2479 = vsub.f32 %v2015, %v2478
        %v2480 = vand.u32 %v2479, 4294901760
        %v2481 = vsub.f32 %v2479, %v2480
        %v2482 = vand.u32 %v2481, 4294901760
        %2483 = vmatpush1.msra.mxu0 %v2482
        %v2484 = vand.u32 %v2018, 4294901760
        %v2485 = vsub.f32 %v2018, %v2484
        %v2486 = vand.u32 %v2485, 4294901760
        %v2487 = vsub.f32 %v2485, %v2486
        %v2488 = vand.u32 %v2487, 4294901760
        %2489 = vmatprep.subr.mxu0 %v2488
        %v2490 = vand.u32 %v2017, 4294901760
        %v2491 = vsub.f32 %v2017, %v2490
        %v2492 = vand.u32 %v2491, 4294901760
        %v2493 = vsub.f32 %v2491, %v2492
        %v2494 = vand.u32 %v2493, 4294901760
        %2495 = vmatpush1.msra.mxu0 %v2494
        %2496 = vmatprep.subr.mxu0 0.0
        %2497 = vmatpush1.msra.mxu0 0.0
        %2498 = vmatprep.subr.mxu0 0.0
        %2499 = vmatpush1.msra.mxu0 0.0
        %2500 = vmatprep.subr.mxu0 0.0
        %2501 = vmatpush1.msra.mxu0 0.0
        %2502 = vmatprep.subr.mxu0 0.0
        %2503 = vmatpush1.msra.mxu0 0.0
        %2504 = vmatprep.subr.mxu0 0.0
        %2505 = vmatpush1.msra.mxu0 0.0
        %2506 = vmatprep.subr.mxu0 0.0
        %2507 = vmatpush1.msra.mxu0 0.0
        %2508 = vmatprep.subr.mxu0 0.0
        %2509 = vmatpush1.msra.mxu0 0.0
        %2510 = vmatprep.subr.mxu0 0.0
        %2511 = vmatpush1.msra.mxu0 0.0
        %2512 = vmatprep.subr.mxu0 0.0
        %2513 = vmatpush1.msra.mxu0 0.0
        %2514 = vmatprep.subr.mxu0 0.0
        %2515 = vmatpush1.msra.mxu0 0.0
        %2516 = vmatprep.subr.mxu0 0.0
        %2517 = vmatpush1.msra.mxu0 0.0
        %2518 = vmatprep.subr.mxu0 0.0
        %2519 = vmatpush1.msra.mxu0 0.0
        %2520 = vmatprep.subr.mxu0 0.0
        %2521 = vmatpush1.msra.mxu0 0.0
        %2522 = vmatprep.subr.mxu0 0.0
        %2523 = vmatpush1.msra.mxu0 0.0
        %2524 = vmatprep.subr.mxu0 0.0
        %2525 = vmatpush1.msra.mxu0 0.0
        %2526 = vmatprep.subr.mxu0 0.0
        %2527 = vmatpush1.msra.mxu0 0.0
        %2528 = vmatprep.mubr.f32.mxu0 0.0
        %v2529 = vand.u32 %v1894, 4294901760
        %2530 = vmatmul.mubr.f32.gmra.mrb[0].mxu0 %v2529
        %v2531 = vpop.f32.mrb[0].mxu0
        %v2532 = vadd.f32 %v2135, %v2531
        %v2533 = vpop.f32.mrb[0].mxu0
        %v2534 = vadd.f32 %v2137, %v2533
        %2535 = vmatprep.mubr.f32.mxu0 0.0
        %v2536 = vand.u32 %v1900, 4294901760
        %2537 = vmatmul.mubr.f32.gmra.mrb[0].mxu0 %v2536
        %v2538 = vpop.f32.mrb[0].mxu0
        %v2539 = vadd.f32 %v2146, %v2538
        %v2540 = vpop.f32.mrb[0].mxu0
        %v2541 = vadd.f32 %v2148, %v2540
        %2542 = vmatprep.mubr.f32.mxu0 0.0
        %v2543 = vand.u32 %v1906, 4294901760
        %2544 = vmatmul.mubr.f32.gmra.mrb[0].mxu0 %v2543
        %v2545 = vpop.f32.mrb[0].mxu0
        %v2546 = vadd.f32 %v2157, %v2545
        %v2547 = vpop.f32.mrb[0].mxu0
        %v2548 = vadd.f32 %v2159, %v2547
        %2549 = vmatprep.mubr.f32.mxu0 0.0
        %v2550 = vand.u32 %v1912, 4294901760
        %2551 = vmatmul.mubr.f32.gmra.mrb[0].mxu0 %v2550
        %v2552 = vpop.f32.mrb[0].mxu0
        %v2553 = vadd.f32 %v2168, %v2552
        %v2554 = vpop.f32.mrb[0].mxu0
        %v2555 = vadd.f32 %v2170, %v2554
        %2556 = vmatprep.mubr.f32.mxu0 0.0
        %v2557 = vand.u32 %v1918, 4294901760
        %2558 = vmatmul.mubr.f32.gmra.mrb[0].mxu0 %v2557
        %v2559 = vpop.f32.mrb[0].mxu0
        %v2560 = vadd.f32 %v2179, %v2559
        %v2561 = vpop.f32.mrb[0].mxu0
        %v2562 = vadd.f32 %v2181, %v2561
        %2563 = vmatprep.mubr.f32.mxu0 0.0
        %v2564 = vand.u32 %v1924, 4294901760
        %2565 = vmatmul.mubr.f32.gmra.mrb[0].mxu0 %v2564
        %v2566 = vpop.f32.mrb[0].mxu0
        %v2567 = vadd.f32 %v2190, %v2566
        %v2568 = vpop.f32.mrb[0].mxu0
        %v2569 = vadd.f32 %v2192, %v2568
        %2570 = vmatprep.mubr.f32.mxu0 0.0
        %v2571 = vand.u32 %v1930, 4294901760
        %2572 = vmatmul.mubr.f32.gmra.mrb[0].mxu0 %v2571
        %v2573 = vpop.f32.mrb[0].mxu0
        %v2574 = vadd.f32 %v2201, %v2573
        %v2575 = vpop.f32.mrb[0].mxu0
        %v2576 = vadd.f32 %v2203, %v2575
        %2577 = vmatprep.mubr.f32.mxu0 0.0
        %v2578 = vand.u32 %v1936, 4294901760
        %2579 = vmatmul.mubr.f32.gmra.mrb[0].mxu0 %v2578
        %v2580 = vpop.f32.mrb[0].mxu0
        %v2581 = vadd.f32 %v2212, %v2580
        %v2582 = vpop.f32.mrb[0].mxu0
        %v2583 = vadd.f32 %v2214, %v2582
        %2584 = vmatprep.mubr.f32.mxu0 0.0
        %v2585 = vand.u32 %v1942, 4294901760
        %2586 = vmatmul.mubr.f32.gmra.mrb[0].mxu0 %v2585
        %v2587 = vpop.f32.mrb[0].mxu0
        %v2588 = vadd.f32 %v2223, %v2587
        %v2589 = vpop.f32.mrb[0].mxu0
        %v2590 = vadd.f32 %v2225, %v2589
        %2591 = vmatprep.mubr.f32.mxu0 0.0
        %v2592 = vand.u32 %v1948, 4294901760
        %2593 = vmatmul.mubr.f32.gmra.mrb[0].mxu0 %v2592
        %v2594 = vpop.f32.mrb[0].mxu0
        %v2595 = vadd.f32 %v2234, %v2594
        %v2596 = vpop.f32.mrb[0].mxu0
        %v2597 = vadd.f32 %v2236, %v2596
        %2598 = vmatprep.mubr.f32.mxu0 0.0
        %v2599 = vand.u32 %v1954, 4294901760
        %2600 = vmatmul.mubr.f32.gmra.mrb[0].mxu0 %v2599
        %v2601 = vpop.f32.mrb[0].mxu0
        %v2602 = vadd.f32 %v2245, %v2601
        %v2603 = vpop.f32.mrb[0].mxu0
        %v2604 = vadd.f32 %v2247, %v2603
        %2605 = vmatprep.mubr.f32.mxu0 0.0
        %v2606 = vand.u32 %v1960, 4294901760
        %2607 = vmatmul.mubr.f32.gmra.mrb[0].mxu0 %v2606
        %v2608 = vpop.f32.mrb[0].mxu0
        %v2609 = vadd.f32 %v2256, %v2608
        %v2610 = vpop.f32.mrb[0].mxu0
        %v2611 = vadd.f32 %v2258, %v2610
        %2612 = vmatprep.mubr.f32.mxu0 0.0
        %v2613 = vand.u32 %v1966, 4294901760
        %2614 = vmatmul.mubr.f32.gmra.mrb[0].mxu0 %v2613
        %v2615 = vpop.f32.mrb[0].mxu0
        %v2616 = vadd.f32 %v2267, %v2615
        %v2617 = vpop.f32.mrb[0].mxu0
        %v2618 = vadd.f32 %v2269, %v2617
        %2619 = vmatprep.mubr.f32.mxu0 0.0
        %v2620 = vand.u32 %v1972, 4294901760
        %2621 = vmatmul.mubr.f32.gmra.mrb[0].mxu0 %v2620
        %v2622 = vpop.f32.mrb[0].mxu0
        %v2623 = vadd.f32 %v2278, %v2622
        %v2624 = vpop.f32.mrb[0].mxu0
        %v2625 = vadd.f32 %v2280, %v2624
        %2626 = vmatprep.mubr.f32.mxu0 0.0
        %v2627 = vand.u32 %v1978, 4294901760
        %2628 = vmatmul.mubr.f32.gmra.mrb[0].mxu0 %v2627
        %v2629 = vpop.f32.mrb[0].mxu0
        %v2630 = vadd.f32 %v2289, %v2629
        %v2631 = vpop.f32.mrb[0].mxu0
        %v2632 = vadd.f32 %v2291, %v2631
        %2633 = vmatprep.mubr.f32.mxu0 0.0
        %v2634 = vand.u32 %v1984, 4294901760
        %2635 = vmatmul.mubr.f32.gmra.mrb[0].mxu0 %v2634
        %v2636 = vpop.f32.mrb[0].mxu0
        %v2637 = vadd.f32 %v2300, %v2636
        %v2638 = vpop.f32.mrb[0].mxu0
        %v2639 = vadd.f32 %v2302, %v2638
        %2640 = vdwg.mxu0
        %v2641 = vand.u32 %v1988, 4294901760
        %v2642 = vsub.f32 %v1988, %v2641
        %2643 = vmatprep.subr.mxu0 %v2642
        %v2644 = vand.u32 %v1987, 4294901760
        %v2645 = vsub.f32 %v1987, %v2644
        %2646 = vmatpush1.msra.mxu0 %v2645
        %v2647 = vand.u32 %v1990, 4294901760
        %v2648 = vsub.f32 %v1990, %v2647
        %2649 = vmatprep.subr.mxu0 %v2648
        %v2650 = vand.u32 %v1989, 4294901760
        %v2651 = vsub.f32 %v1989, %v2650
        %2652 = vmatpush1.msra.mxu0 %v2651
        %v2653 = vand.u32 %v1992, 4294901760
        %v2654 = vsub.f32 %v1992, %v2653
        %2655 = vmatprep.subr.mxu0 %v2654
        %v2656 = vand.u32 %v1991, 4294901760
        %v2657 = vsub.f32 %v1991, %v2656
        %2658 = vmatpush1.msra.mxu0 %v2657
        %v2659 = vand.u32 %v1994, 4294901760
        %v2660 = vsub.f32 %v1994, %v2659
        %2661 = vmatprep.subr.mxu0 %v2660
        %v2662 = vand.u32 %v1993, 4294901760
        %v2663 = vsub.f32 %v1993, %v2662
        %2664 = vmatpush1.msra.mxu0 %v2663
        %v2665 = vand.u32 %v1996, 4294901760
        %v2666 = vsub.f32 %v1996, %v2665
        %2667 = vmatprep.subr.mxu0 %v2666
        %v2668 = vand.u32 %v1995, 4294901760
        %v2669 = vsub.f32 %v1995, %v2668
        %2670 = vmatpush1.msra.mxu0 %v2669
        %v2671 = vand.u32 %v1998, 4294901760
        %v2672 = vsub.f32 %v1998, %v2671
        %2673 = vmatprep.subr.mxu0 %v2672
        %v2674 = vand.u32 %v1997, 4294901760
        %v2675 = vsub.f32 %v1997, %v2674
        %2676 = vmatpush1.msra.mxu0 %v2675
        %v2677 = vand.u32 %v2000, 4294901760
        %v2678 = vsub.f32 %v2000, %v2677
        %2679 = vmatprep.subr.mxu0 %v2678
        %v2680 = vand.u32 %v1999, 4294901760
        %v2681 = vsub.f32 %v1999, %v2680
        %2682 = vmatpush1.msra.mxu0 %v2681
        %v2683 = vand.u32 %v2002, 4294901760
        %v2684 = vsub.f32 %v2002, %v2683
        %2685 = vmatprep.subr.mxu0 %v2684
        %v2686 = vand.u32 %v2001, 4294901760
        %v2687 = vsub.f32 %v2001, %v2686
        %2688 = vmatpush1.msra.mxu0 %v2687
        %v2689 = vand.u32 %v2004, 4294901760
        %v2690 = vsub.f32 %v2004, %v2689
        %2691 = vmatprep.subr.mxu0 %v2690
        %v2692 = vand.u32 %v2003, 4294901760
        %v2693 = vsub.f32 %v2003, %v2692
        %2694 = vmatpush1.msra.mxu0 %v2693
        %v2695 = vand.u32 %v2006, 4294901760
        %v2696 = vsub.f32 %v2006, %v2695
        %2697 = vmatprep.subr.mxu0 %v2696
        %v2698 = vand.u32 %v2005, 4294901760
        %v2699 = vsub.f32 %v2005, %v2698
        %2700 = vmatpush1.msra.mxu0 %v2699
        %v2701 = vand.u32 %v2008, 4294901760
        %v2702 = vsub.f32 %v2008, %v2701
        %2703 = vmatprep.subr.mxu0 %v2702
        %v2704 = vand.u32 %v2007, 4294901760
        %v2705 = vsub.f32 %v2007, %v2704
        %2706 = vmatpush1.msra.mxu0 %v2705
        %v2707 = vand.u32 %v2010, 4294901760
        %v2708 = vsub.f32 %v2010, %v2707
        %2709 = vmatprep.subr.mxu0 %v2708
        %v2710 = vand.u32 %v2009, 4294901760
        %v2711 = vsub.f32 %v2009, %v2710
        %2712 = vmatpush1.msra.mxu0 %v2711
        %v2713 = vand.u32 %v2012, 4294901760
        %v2714 = vsub.f32 %v2012, %v2713
        %2715 = vmatprep.subr.mxu0 %v2714
        %v2716 = vand.u32 %v2011, 4294901760
        %v2717 = vsub.f32 %v2011, %v2716
        %2718 = vmatpush1.msra.mxu0 %v2717
        %v2719 = vand.u32 %v2014, 4294901760
        %v2720 = vsub.f32 %v2014, %v2719
        %2721 = vmatprep.subr.mxu0 %v2720
        %v2722 = vand.u32 %v2013, 4294901760
        %v2723 = vsub.f32 %v2013, %v2722
        %2724 = vmatpush1.msra.mxu0 %v2723
        %v2725 = vand.u32 %v2016, 4294901760
        %v2726 = vsub.f32 %v2016, %v2725
        %2727 = vmatprep.subr.mxu0 %v2726
        %v2728 = vand.u32 %v2015, 4294901760
        %v2729 = vsub.f32 %v2015, %v2728
        %2730 = vmatpush1.msra.mxu0 %v2729
        %v2731 = vand.u32 %v2018, 4294901760
        %v2732 = vsub.f32 %v2018, %v2731
        %2733 = vmatprep.subr.mxu0 %v2732
        %v2734 = vand.u32 %v2017, 4294901760
        %v2735 = vsub.f32 %v2017, %v2734
        %2736 = vmatpush1.msra.mxu0 %v2735
        %2737 = vmatprep.subr.mxu0 0.0
        %2738 = vmatpush1.msra.mxu0 0.0
        %2739 = vmatprep.subr.mxu0 0.0
        %2740 = vmatpush1.msra.mxu0 0.0
        %2741 = vmatprep.subr.mxu0 0.0
        %2742 = vmatpush1.msra.mxu0 0.0
        %2743 = vmatprep.subr.mxu0 0.0
        %2744 = vmatpush1.msra.mxu0 0.0
        %2745 = vmatprep.subr.mxu0 0.0
        %2746 = vmatpush1.msra.mxu0 0.0
        %2747 = vmatprep.subr.mxu0 0.0
        %2748 = vmatpush1.msra.mxu0 0.0
        %2749 = vmatprep.subr.mxu0 0.0
        %2750 = vmatpush1.msra.mxu0 0.0
        %2751 = vmatprep.subr.mxu0 0.0
        %2752 = vmatpush1.msra.mxu0 0.0
        %2753 = vmatprep.subr.mxu0 0.0
        %2754 = vmatpush1.msra.mxu0 0.0
        %2755 = vmatprep.subr.mxu0 0.0
        %2756 = vmatpush1.msra.mxu0 0.0
        %2757 = vmatprep.subr.mxu0 0.0
        %2758 = vmatpush1.msra.mxu0 0.0
        %2759 = vmatprep.subr.mxu0 0.0
        %2760 = vmatpush1.msra.mxu0 0.0
        %2761 = vmatprep.subr.mxu0 0.0
        %2762 = vmatpush1.msra.mxu0 0.0
        %2763 = vmatprep.subr.mxu0 0.0
        %2764 = vmatpush1.msra.mxu0 0.0
        %2765 = vmatprep.subr.mxu0 0.0
        %2766 = vmatpush1.msra.mxu0 0.0
        %2767 = vmatprep.subr.mxu0 0.0
        %2768 = vmatpush1.msra.mxu0 0.0
        %2769 = vmatprep.mubr.f32.mxu0 0.0
        %v2770 = vand.u32 %v1894, 4294901760
        %v2771 = vsub.f32 %v1894, %v2770
        %2772 = vmatmul.mubr.f32.gmra.mrb[0].mxu0 %v2771
        %v2773 = vpop.f32.mrb[0].mxu0
        %v2774 = vadd.f32 %v2532, %v2773
        %v2775 = vpop.f32.mrb[0].mxu0
        %v2776 = vadd.f32 %v2534, %v2775
        %2777 = vmatprep.mubr.f32.mxu0 0.0
        %v2778 = vand.u32 %v1900, 4294901760
        %v2779 = vsub.f32 %v1900, %v2778
        %2780 = vmatmul.mubr.f32.gmra.mrb[0].mxu0 %v2779
        %v2781 = vpop.f32.mrb[0].mxu0
        %v2782 = vadd.f32 %v2539, %v2781
        %v2783 = vpop.f32.mrb[0].mxu0
        %v2784 = vadd.f32 %v2541, %v2783
        %2785 = vmatprep.mubr.f32.mxu0 0.0
        %v2786 = vand.u32 %v1906, 4294901760
        %v2787 = vsub.f32 %v1906, %v2786
        %2788 = vmatmul.mubr.f32.gmra.mrb[0].mxu0 %v2787
        %v2789 = vpop.f32.mrb[0].mxu0
        %v2790 = vadd.f32 %v2546, %v2789
        %v2791 = vpop.f32.mrb[0].mxu0
        %v2792 = vadd.f32 %v2548, %v2791
        %2793 = vmatprep.mubr.f32.mxu0 0.0
        %v2794 = vand.u32 %v1912, 4294901760
        %v2795 = vsub.f32 %v1912, %v2794
        %2796 = vmatmul.mubr.f32.gmra.mrb[0].mxu0 %v2795
        %v2797 = vpop.f32.mrb[0].mxu0
        %v2798 = vadd.f32 %v2553, %v2797
        %v2799 = vpop.f32.mrb[0].mxu0
        %v2800 = vadd.f32 %v2555, %v2799
        %2801 = vmatprep.mubr.f32.mxu0 0.0
        %v2802 = vand.u32 %v1918, 4294901760
        %v2803 = vsub.f32 %v1918, %v2802
        %2804 = vmatmul.mubr.f32.gmra.mrb[0].mxu0 %v2803
        %v2805 = vpop.f32.mrb[0].mxu0
        %v2806 = vadd.f32 %v2560, %v2805
        %v2807 = vpop.f32.mrb[0].mxu0
        %v2808 = vadd.f32 %v2562, %v2807
        %2809 = vmatprep.mubr.f32.mxu0 0.0
        %v2810 = vand.u32 %v1924, 4294901760
        %v2811 = vsub.f32 %v1924, %v2810
        %2812 = vmatmul.mubr.f32.gmra.mrb[0].mxu0 %v2811
        %v2813 = vpop.f32.mrb[0].mxu0
        %v2814 = vadd.f32 %v2567, %v2813
        %v2815 = vpop.f32.mrb[0].mxu0
        %v2816 = vadd.f32 %v2569, %v2815
        %2817 = vmatprep.mubr.f32.mxu0 0.0
        %v2818 = vand.u32 %v1930, 4294901760
        %v2819 = vsub.f32 %v1930, %v2818
        %2820 = vmatmul.mubr.f32.gmra.mrb[0].mxu0 %v2819
        %v2821 = vpop.f32.mrb[0].mxu0
        %v2822 = vadd.f32 %v2574, %v2821
        %v2823 = vpop.f32.mrb[0].mxu0
        %v2824 = vadd.f32 %v2576, %v2823
        %2825 = vmatprep.mubr.f32.mxu0 0.0
        %v2826 = vand.u32 %v1936, 4294901760
        %v2827 = vsub.f32 %v1936, %v2826
        %2828 = vmatmul.mubr.f32.gmra.mrb[0].mxu0 %v2827
        %v2829 = vpop.f32.mrb[0].mxu0
        %v2830 = vadd.f32 %v2581, %v2829
        %v2831 = vpop.f32.mrb[0].mxu0
        %v2832 = vadd.f32 %v2583, %v2831
        %2833 = vmatprep.mubr.f32.mxu0 0.0
        %v2834 = vand.u32 %v1942, 4294901760
        %v2835 = vsub.f32 %v1942, %v2834
        %2836 = vmatmul.mubr.f32.gmra.mrb[0].mxu0 %v2835
        %v2837 = vpop.f32.mrb[0].mxu0
        %v2838 = vadd.f32 %v2588, %v2837
        %v2839 = vpop.f32.mrb[0].mxu0
        %v2840 = vadd.f32 %v2590, %v2839
        %2841 = vmatprep.mubr.f32.mxu0 0.0
        %v2842 = vand.u32 %v1948, 4294901760
        %v2843 = vsub.f32 %v1948, %v2842
        %2844 = vmatmul.mubr.f32.gmra.mrb[0].mxu0 %v2843
        %v2845 = vpop.f32.mrb[0].mxu0
        %v2846 = vadd.f32 %v2595, %v2845
        %v2847 = vpop.f32.mrb[0].mxu0
        %v2848 = vadd.f32 %v2597, %v2847
        %2849 = vmatprep.mubr.f32.mxu0 0.0
        %v2850 = vand.u32 %v1954, 4294901760
        %v2851 = vsub.f32 %v1954, %v2850
        %2852 = vmatmul.mubr.f32.gmra.mrb[0].mxu0 %v2851
        %v2853 = vpop.f32.mrb[0].mxu0
        %v2854 = vadd.f32 %v2602, %v2853
        %v2855 = vpop.f32.mrb[0].mxu0
        %v2856 = vadd.f32 %v2604, %v2855
        %2857 = vmatprep.mubr.f32.mxu0 0.0
        %v2858 = vand.u32 %v1960, 4294901760
        %v2859 = vsub.f32 %v1960, %v2858
        %2860 = vmatmul.mubr.f32.gmra.mrb[0].mxu0 %v2859
        %v2861 = vpop.f32.mrb[0].mxu0
        %v2862 = vadd.f32 %v2609, %v2861
        %v2863 = vpop.f32.mrb[0].mxu0
        %v2864 = vadd.f32 %v2611, %v2863
        %2865 = vmatprep.mubr.f32.mxu0 0.0
        %v2866 = vand.u32 %v1966, 4294901760
        %v2867 = vsub.f32 %v1966, %v2866
        %2868 = vmatmul.mubr.f32.gmra.mrb[0].mxu0 %v2867
        %v2869 = vpop.f32.mrb[0].mxu0
        %v2870 = vadd.f32 %v2616, %v2869
        %v2871 = vpop.f32.mrb[0].mxu0
        %v2872 = vadd.f32 %v2618, %v2871
        %2873 = vmatprep.mubr.f32.mxu0 0.0
        %v2874 = vand.u32 %v1972, 4294901760
        %v2875 = vsub.f32 %v1972, %v2874
        %2876 = vmatmul.mubr.f32.gmra.mrb[0].mxu0 %v2875
        %v2877 = vpop.f32.mrb[0].mxu0
        %v2878 = vadd.f32 %v2623, %v2877
        %v2879 = vpop.f32.mrb[0].mxu0
        %v2880 = vadd.f32 %v2625, %v2879
        %2881 = vmatprep.mubr.f32.mxu0 0.0
        %v2882 = vand.u32 %v1978, 4294901760
        %v2883 = vsub.f32 %v1978, %v2882
        %2884 = vmatmul.mubr.f32.gmra.mrb[0].mxu0 %v2883
        %v2885 = vpop.f32.mrb[0].mxu0
        %v2886 = vadd.f32 %v2630, %v2885
        %v2887 = vpop.f32.mrb[0].mxu0
        %v2888 = vadd.f32 %v2632, %v2887
        %2889 = vmatprep.mubr.f32.mxu0 0.0
        %v2890 = vand.u32 %v1984, 4294901760
        %v2891 = vsub.f32 %v1984, %v2890
        %2892 = vmatmul.mubr.f32.gmra.mrb[0].mxu0 %v2891
        %v2893 = vpop.f32.mrb[0].mxu0
        %v2894 = vadd.f32 %v2637, %v2893
        %v2895 = vpop.f32.mrb[0].mxu0
        %v2896 = vadd.f32 %v2639, %v2895
        %2897 = vdwg.mxu0
        %v2898 = vand.u32 %v1988, 4294901760
        %2899 = vmatprep.subr.mxu0 %v2898
        %v2900 = vand.u32 %v1987, 4294901760
        %2901 = vmatpush1.msra.mxu0 %v2900
        %v2902 = vand.u32 %v1990, 4294901760
        %2903 = vmatprep.subr.mxu0 %v2902
        %v2904 = vand.u32 %v1989, 4294901760
        %2905 = vmatpush1.msra.mxu0 %v2904
        %v2906 = vand.u32 %v1992, 4294901760
        %2907 = vmatprep.subr.mxu0 %v2906
        %v2908 = vand.u32 %v1991, 4294901760
        %2909 = vmatpush1.msra.mxu0 %v2908
        %v2910 = vand.u32 %v1994, 4294901760
        %2911 = vmatprep.subr.mxu0 %v2910
        %v2912 = vand.u32 %v1993, 4294901760
        %2913 = vmatpush1.msra.mxu0 %v2912
        %v2914 = vand.u32 %v1996, 4294901760
        %2915 = vmatprep.subr.mxu0 %v2914
        %v2916 = vand.u32 %v1995, 4294901760
        %2917 = vmatpush1.msra.mxu0 %v2916
        %v2918 = vand.u32 %v1998, 4294901760
        %2919 = vmatprep.subr.mxu0 %v2918
        %v2920 = vand.u32 %v1997, 4294901760
        %2921 = vmatpush1.msra.mxu0 %v2920
        %v2922 = vand.u32 %v2000, 4294901760
        %2923 = vmatprep.subr.mxu0 %v2922
        %v2924 = vand.u32 %v1999, 4294901760
        %2925 = vmatpush1.msra.mxu0 %v2924
        %v2926 = vand.u32 %v2002, 4294901760
        %2927 = vmatprep.subr.mxu0 %v2926
        %v2928 = vand.u32 %v2001, 4294901760
        %2929 = vmatpush1.msra.mxu0 %v2928
        %v2930 = vand.u32 %v2004, 4294901760
        %2931 = vmatprep.subr.mxu0 %v2930
        %v2932 = vand.u32 %v2003, 4294901760
        %2933 = vmatpush1.msra.mxu0 %v2932
        %v2934 = vand.u32 %v2006, 4294901760
        %2935 = vmatprep.subr.mxu0 %v2934
        %v2936 = vand.u32 %v2005, 4294901760
        %2937 = vmatpush1.msra.mxu0 %v2936
        %v2938 = vand.u32 %v2008, 4294901760
        %2939 = vmatprep.subr.mxu0 %v2938
        %v2940 = vand.u32 %v2007, 4294901760
        %2941 = vmatpush1.msra.mxu0 %v2940
        %v2942 = vand.u32 %v2010, 4294901760
        %2943 = vmatprep.subr.mxu0 %v2942
        %v2944 = vand.u32 %v2009, 4294901760
        %2945 = vmatpush1.msra.mxu0 %v2944
        %v2946 = vand.u32 %v2012, 4294901760
        %2947 = vmatprep.subr.mxu0 %v2946
        %v2948 = vand.u32 %v2011, 4294901760
        %2949 = vmatpush1.msra.mxu0 %v2948
        %v2950 = vand.u32 %v2014, 4294901760
        %2951 = vmatprep.subr.mxu0 %v2950
        %v2952 = vand.u32 %v2013, 4294901760
        %2953 = vmatpush1.msra.mxu0 %v2952
        %v2954 = vand.u32 %v2016, 4294901760
        %2955 = vmatprep.subr.mxu0 %v2954
        %v2956 = vand.u32 %v2015, 4294901760
        %2957 = vmatpush1.msra.mxu0 %v2956
        %v2958 = vand.u32 %v2018, 4294901760
        %2959 = vmatprep.subr.mxu0 %v2958
        %v2960 = vand.u32 %v2017, 4294901760
        %2961 = vmatpush1.msra.mxu0 %v2960
        %2962 = vmatprep.subr.mxu0 0.0
        %2963 = vmatpush1.msra.mxu0 0.0
        %2964 = vmatprep.subr.mxu0 0.0
        %2965 = vmatpush1.msra.mxu0 0.0
        %2966 = vmatprep.subr.mxu0 0.0
        %2967 = vmatpush1.msra.mxu0 0.0
        %2968 = vmatprep.subr.mxu0 0.0
        %2969 = vmatpush1.msra.mxu0 0.0
        %2970 = vmatprep.subr.mxu0 0.0
        %2971 = vmatpush1.msra.mxu0 0.0
        %2972 = vmatprep.subr.mxu0 0.0
        %2973 = vmatpush1.msra.mxu0 0.0
        %2974 = vmatprep.subr.mxu0 0.0
        %2975 = vmatpush1.msra.mxu0 0.0
        %2976 = vmatprep.subr.mxu0 0.0
        %2977 = vmatpush1.msra.mxu0 0.0
        %2978 = vmatprep.subr.mxu0 0.0
        %2979 = vmatpush1.msra.mxu0 0.0
        %2980 = vmatprep.subr.mxu0 0.0
        %2981 = vmatpush1.msra.mxu0 0.0
        %2982 = vmatprep.subr.mxu0 0.0
        %2983 = vmatpush1.msra.mxu0 0.0
        %2984 = vmatprep.subr.mxu0 0.0
        %2985 = vmatpush1.msra.mxu0 0.0
        %2986 = vmatprep.subr.mxu0 0.0
        %2987 = vmatpush1.msra.mxu0 0.0
        %2988 = vmatprep.subr.mxu0 0.0
        %2989 = vmatpush1.msra.mxu0 0.0
        %2990 = vmatprep.subr.mxu0 0.0
        %2991 = vmatpush1.msra.mxu0 0.0
        %2992 = vmatprep.subr.mxu0 0.0
        %2993 = vmatpush1.msra.mxu0 0.0
        %2994 = vmatprep.mubr.f32.mxu0 0.0
        %v2995 = vand.u32 %v1894, 4294901760
        %v2996 = vsub.f32 %v1894, %v2995
        %v2997 = vand.u32 %v2996, 4294901760
        %2998 = vmatmul.mubr.f32.gmra.mrb[0].mxu0 %v2997
        %v2999 = vpop.f32.mrb[0].mxu0
        %v3000 = vadd.f32 %v2774, %v2999
        %v3001 = vpop.f32.mrb[0].mxu0
        %v3002 = vadd.f32 %v2776, %v3001
        %3003 = vmatprep.mubr.f32.mxu0 0.0
        %v3004 = vand.u32 %v1900, 4294901760
        %v3005 = vsub.f32 %v1900, %v3004
        %v3006 = vand.u32 %v3005, 4294901760
        %3007 = vmatmul.mubr.f32.gmra.mrb[0].mxu0 %v3006
        %v3008 = vpop.f32.mrb[0].mxu0
        %v3009 = vadd.f32 %v2782, %v3008
        %v3010 = vpop.f32.mrb[0].mxu0
        %v3011 = vadd.f32 %v2784, %v3010
        %3012 = vmatprep.mubr.f32.mxu0 0.0
        %v3013 = vand.u32 %v1906, 4294901760
        %v3014 = vsub.f32 %v1906, %v3013
        %v3015 = vand.u32 %v3014, 4294901760
        %3016 = vmatmul.mubr.f32.gmra.mrb[0].mxu0 %v3015
        %v3017 = vpop.f32.mrb[0].mxu0
        %v3018 = vadd.f32 %v2790, %v3017
        %v3019 = vpop.f32.mrb[0].mxu0
        %v3020 = vadd.f32 %v2792, %v3019
        %3021 = vmatprep.mubr.f32.mxu0 0.0
        %v3022 = vand.u32 %v1912, 4294901760
        %v3023 = vsub.f32 %v1912, %v3022
        %v3024 = vand.u32 %v3023, 4294901760
        %3025 = vmatmul.mubr.f32.gmra.mrb[0].mxu0 %v3024
        %v3026 = vpop.f32.mrb[0].mxu0
        %v3027 = vadd.f32 %v2798, %v3026
        %v3028 = vpop.f32.mrb[0].mxu0
        %v3029 = vadd.f32 %v2800, %v3028
        %3030 = vmatprep.mubr.f32.mxu0 0.0
        %v3031 = vand.u32 %v1918, 4294901760
        %v3032 = vsub.f32 %v1918, %v3031
        %v3033 = vand.u32 %v3032, 4294901760
        %3034 = vmatmul.mubr.f32.gmra.mrb[0].mxu0 %v3033
        %v3035 = vpop.f32.mrb[0].mxu0
        %v3036 = vadd.f32 %v2806, %v3035
        %v3037 = vpop.f32.mrb[0].mxu0
        %v3038 = vadd.f32 %v2808, %v3037
        %3039 = vmatprep.mubr.f32.mxu0 0.0
        %v3040 = vand.u32 %v1924, 4294901760
        %v3041 = vsub.f32 %v1924, %v3040
        %v3042 = vand.u32 %v3041, 4294901760
        %3043 = vmatmul.mubr.f32.gmra.mrb[0].mxu0 %v3042
        %v3044 = vpop.f32.mrb[0].mxu0
        %v3045 = vadd.f32 %v2814, %v3044
        %v3046 = vpop.f32.mrb[0].mxu0
        %v3047 = vadd.f32 %v2816, %v3046
        %3048 = vmatprep.mubr.f32.mxu0 0.0
        %v3049 = vand.u32 %v1930, 4294901760
        %v3050 = vsub.f32 %v1930, %v3049
        %v3051 = vand.u32 %v3050, 4294901760
        %3052 = vmatmul.mubr.f32.gmra.mrb[0].mxu0 %v3051
        %v3053 = vpop.f32.mrb[0].mxu0
        %v3054 = vadd.f32 %v2822, %v3053
        %v3055 = vpop.f32.mrb[0].mxu0
        %v3056 = vadd.f32 %v2824, %v3055
        %3057 = vmatprep.mubr.f32.mxu0 0.0
        %v3058 = vand.u32 %v1936, 4294901760
        %v3059 = vsub.f32 %v1936, %v3058
        %v3060 = vand.u32 %v3059, 4294901760
        %3061 = vmatmul.mubr.f32.gmra.mrb[0].mxu0 %v3060
        %v3062 = vpop.f32.mrb[0].mxu0
        %v3063 = vadd.f32 %v2830, %v3062
        %v3064 = vpop.f32.mrb[0].mxu0
        %v3065 = vadd.f32 %v2832, %v3064
        %3066 = vmatprep.mubr.f32.mxu0 0.0
        %v3067 = vand.u32 %v1942, 4294901760
        %v3068 = vsub.f32 %v1942, %v3067
        %v3069 = vand.u32 %v3068, 4294901760
        %3070 = vmatmul.mubr.f32.gmra.mrb[0].mxu0 %v3069
        %v3071 = vpop.f32.mrb[0].mxu0
        %v3072 = vadd.f32 %v2838, %v3071
        %v3073 = vpop.f32.mrb[0].mxu0
        %v3074 = vadd.f32 %v2840, %v3073
        %3075 = vmatprep.mubr.f32.mxu0 0.0
        %v3076 = vand.u32 %v1948, 4294901760
        %v3077 = vsub.f32 %v1948, %v3076
        %v3078 = vand.u32 %v3077, 4294901760
        %3079 = vmatmul.mubr.f32.gmra.mrb[0].mxu0 %v3078
        %v3080 = vpop.f32.mrb[0].mxu0
        %v3081 = vadd.f32 %v2846, %v3080
        %v3082 = vpop.f32.mrb[0].mxu0
        %v3083 = vadd.f32 %v2848, %v3082
        %3084 = vmatprep.mubr.f32.mxu0 0.0
        %v3085 = vand.u32 %v1954, 4294901760
        %v3086 = vsub.f32 %v1954, %v3085
        %v3087 = vand.u32 %v3086, 4294901760
        %3088 = vmatmul.mubr.f32.gmra.mrb[0].mxu0 %v3087
        %v3089 = vpop.f32.mrb[0].mxu0
        %v3090 = vadd.f32 %v2854, %v3089
        %v3091 = vpop.f32.mrb[0].mxu0
        %v3092 = vadd.f32 %v2856, %v3091
        %3093 = vmatprep.mubr.f32.mxu0 0.0
        %v3094 = vand.u32 %v1960, 4294901760
        %v3095 = vsub.f32 %v1960, %v3094
        %v3096 = vand.u32 %v3095, 4294901760
        %3097 = vmatmul.mubr.f32.gmra.mrb[0].mxu0 %v3096
        %v3098 = vpop.f32.mrb[0].mxu0
        %v3099 = vadd.f32 %v2862, %v3098
        %v3100 = vpop.f32.mrb[0].mxu0
        %v3101 = vadd.f32 %v2864, %v3100
        %3102 = vmatprep.mubr.f32.mxu0 0.0
        %v3103 = vand.u32 %v1966, 4294901760
        %v3104 = vsub.f32 %v1966, %v3103
        %v3105 = vand.u32 %v3104, 4294901760
        %3106 = vmatmul.mubr.f32.gmra.mrb[0].mxu0 %v3105
        %v3107 = vpop.f32.mrb[0].mxu0
        %v3108 = vadd.f32 %v2870, %v3107
        %v3109 = vpop.f32.mrb[0].mxu0
        %v3110 = vadd.f32 %v2872, %v3109
        %3111 = vmatprep.mubr.f32.mxu0 0.0
        %v3112 = vand.u32 %v1972, 4294901760
        %v3113 = vsub.f32 %v1972, %v3112
        %v3114 = vand.u32 %v3113, 4294901760
        %3115 = vmatmul.mubr.f32.gmra.mrb[0].mxu0 %v3114
        %v3116 = vpop.f32.mrb[0].mxu0
        %v3117 = vadd.f32 %v2878, %v3116
        %v3118 = vpop.f32.mrb[0].mxu0
        %v3119 = vadd.f32 %v2880, %v3118
        %3120 = vmatprep.mubr.f32.mxu0 0.0
        %v3121 = vand.u32 %v1978, 4294901760
        %v3122 = vsub.f32 %v1978, %v3121
        %v3123 = vand.u32 %v3122, 4294901760
        %3124 = vmatmul.mubr.f32.gmra.mrb[0].mxu0 %v3123
        %v3125 = vpop.f32.mrb[0].mxu0
        %v3126 = vadd.f32 %v2886, %v3125
        %v3127 = vpop.f32.mrb[0].mxu0
        %v3128 = vadd.f32 %v2888, %v3127
        %3129 = vmatprep.mubr.f32.mxu0 0.0
        %v3130 = vand.u32 %v1984, 4294901760
        %v3131 = vsub.f32 %v1984, %v3130
        %v3132 = vand.u32 %v3131, 4294901760
        %3133 = vmatmul.mubr.f32.gmra.mrb[0].mxu0 %v3132
        %v3134 = vpop.f32.mrb[0].mxu0
        %v3135 = vadd.f32 %v2894, %v3134
        %v3136 = vpop.f32.mrb[0].mxu0
        %v3137 = vadd.f32 %v2896, %v3136
        %3138 = vdwg.mxu0
        %v3139 = vand.u32 %v1988, 4294901760
        %v3140 = vsub.f32 %v1988, %v3139
        %v3141 = vand.u32 %v3140, 4294901760
        %3142 = vmatprep.subr.mxu0 %v3141
        %v3143 = vand.u32 %v1987, 4294901760
        %v3144 = vsub.f32 %v1987, %v3143
        %v3145 = vand.u32 %v3144, 4294901760
        %3146 = vmatpush1.msra.mxu0 %v3145
        %v3147 = vand.u32 %v1990, 4294901760
        %v3148 = vsub.f32 %v1990, %v3147
        %v3149 = vand.u32 %v3148, 4294901760
        %3150 = vmatprep.subr.mxu0 %v3149
        %v3151 = vand.u32 %v1989, 4294901760
        %v3152 = vsub.f32 %v1989, %v3151
        %v3153 = vand.u32 %v3152, 4294901760
        %3154 = vmatpush1.msra.mxu0 %v3153
        %v3155 = vand.u32 %v1992, 4294901760
        %v3156 = vsub.f32 %v1992, %v3155
        %v3157 = vand.u32 %v3156, 4294901760
        %3158 = vmatprep.subr.mxu0 %v3157
        %v3159 = vand.u32 %v1991, 4294901760
        %v3160 = vsub.f32 %v1991, %v3159
        %v3161 = vand.u32 %v3160, 4294901760
        %3162 = vmatpush1.msra.mxu0 %v3161
        %v3163 = vand.u32 %v1994, 4294901760
        %v3164 = vsub.f32 %v1994, %v3163
        %v3165 = vand.u32 %v3164, 4294901760
        %3166 = vmatprep.subr.mxu0 %v3165
        %v3167 = vand.u32 %v1993, 4294901760
        %v3168 = vsub.f32 %v1993, %v3167
        %v3169 = vand.u32 %v3168, 4294901760
        %3170 = vmatpush1.msra.mxu0 %v3169
        %v3171 = vand.u32 %v1996, 4294901760
        %v3172 = vsub.f32 %v1996, %v3171
        %v3173 = vand.u32 %v3172, 4294901760
        %3174 = vmatprep.subr.mxu0 %v3173
        %v3175 = vand.u32 %v1995, 4294901760
        %v3176 = vsub.f32 %v1995, %v3175
        %v3177 = vand.u32 %v3176, 4294901760
        %3178 = vmatpush1.msra.mxu0 %v3177
        %v3179 = vand.u32 %v1998, 4294901760
        %v3180 = vsub.f32 %v1998, %v3179
        %v3181 = vand.u32 %v3180, 4294901760
        %3182 = vmatprep.subr.mxu0 %v3181
        %v3183 = vand.u32 %v1997, 4294901760
        %v3184 = vsub.f32 %v1997, %v3183
        %v3185 = vand.u32 %v3184, 4294901760
        %3186 = vmatpush1.msra.mxu0 %v3185
        %v3187 = vand.u32 %v2000, 4294901760
        %v3188 = vsub.f32 %v2000, %v3187
        %v3189 = vand.u32 %v3188, 4294901760
        %3190 = vmatprep.subr.mxu0 %v3189
        %v3191 = vand.u32 %v1999, 4294901760
        %v3192 = vsub.f32 %v1999, %v3191
        %v3193 = vand.u32 %v3192, 4294901760
        %3194 = vmatpush1.msra.mxu0 %v3193
        %v3195 = vand.u32 %v2002, 4294901760
        %v3196 = vsub.f32 %v2002, %v3195
        %v3197 = vand.u32 %v3196, 4294901760
        %3198 = vmatprep.subr.mxu0 %v3197
        %v3199 = vand.u32 %v2001, 4294901760
        %v3200 = vsub.f32 %v2001, %v3199
        %v3201 = vand.u32 %v3200, 4294901760
        %3202 = vmatpush1.msra.mxu0 %v3201
        %v3203 = vand.u32 %v2004, 4294901760
        %v3204 = vsub.f32 %v2004, %v3203
        %v3205 = vand.u32 %v3204, 4294901760
        %3206 = vmatprep.subr.mxu0 %v3205
        %v3207 = vand.u32 %v2003, 4294901760
        %v3208 = vsub.f32 %v2003, %v3207
        %v3209 = vand.u32 %v3208, 4294901760
        %3210 = vmatpush1.msra.mxu0 %v3209
        %v3211 = vand.u32 %v2006, 4294901760
        %v3212 = vsub.f32 %v2006, %v3211
        %v3213 = vand.u32 %v3212, 4294901760
        %3214 = vmatprep.subr.mxu0 %v3213
        %v3215 = vand.u32 %v2005, 4294901760
        %v3216 = vsub.f32 %v2005, %v3215
        %v3217 = vand.u32 %v3216, 4294901760
        %3218 = vmatpush1.msra.mxu0 %v3217
        %v3219 = vand.u32 %v2008, 4294901760
        %v3220 = vsub.f32 %v2008, %v3219
        %v3221 = vand.u32 %v3220, 4294901760
        %3222 = vmatprep.subr.mxu0 %v3221
        %v3223 = vand.u32 %v2007, 4294901760
        %v3224 = vsub.f32 %v2007, %v3223
        %v3225 = vand.u32 %v3224, 4294901760
        %3226 = vmatpush1.msra.mxu0 %v3225
        %v3227 = vand.u32 %v2010, 4294901760
        %v3228 = vsub.f32 %v2010, %v3227
        %v3229 = vand.u32 %v3228, 4294901760
        %3230 = vmatprep.subr.mxu0 %v3229
        %v3231 = vand.u32 %v2009, 4294901760
        %v3232 = vsub.f32 %v2009, %v3231
        %v3233 = vand.u32 %v3232, 4294901760
        %3234 = vmatpush1.msra.mxu0 %v3233
        %v3235 = vand.u32 %v2012, 4294901760
        %v3236 = vsub.f32 %v2012, %v3235
        %v3237 = vand.u32 %v3236, 4294901760
        %3238 = vmatprep.subr.mxu0 %v3237
        %v3239 = vand.u32 %v2011, 4294901760
        %v3240 = vsub.f32 %v2011, %v3239
        %v3241 = vand.u32 %v3240, 4294901760
        %3242 = vmatpush1.msra.mxu0 %v3241
        %v3243 = vand.u32 %v2014, 4294901760
        %v3244 = vsub.f32 %v2014, %v3243
        %v3245 = vand.u32 %v3244, 4294901760
        %3246 = vmatprep.subr.mxu0 %v3245
        %v3247 = vand.u32 %v2013, 4294901760
        %v3248 = vsub.f32 %v2013, %v3247
        %v3249 = vand.u32 %v3248, 4294901760
        %3250 = vmatpush1.msra.mxu0 %v3249
        %v3251 = vand.u32 %v2016, 4294901760
        %v3252 = vsub.f32 %v2016, %v3251
        %v3253 = vand.u32 %v3252, 4294901760
        %3254 = vmatprep.subr.mxu0 %v3253
        %v3255 = vand.u32 %v2015, 4294901760
        %v3256 = vsub.f32 %v2015, %v3255
        %v3257 = vand.u32 %v3256, 4294901760
        %3258 = vmatpush1.msra.mxu0 %v3257
        %v3259 = vand.u32 %v2018, 4294901760
        %v3260 = vsub.f32 %v2018, %v3259
        %v3261 = vand.u32 %v3260, 4294901760
        %3262 = vmatprep.subr.mxu0 %v3261
        %v3263 = vand.u32 %v2017, 4294901760
        %v3264 = vsub.f32 %v2017, %v3263
        %v3265 = vand.u32 %v3264, 4294901760
        %3266 = vmatpush1.msra.mxu0 %v3265
        %3267 = vmatprep.subr.mxu0 0.0
        %3268 = vmatpush1.msra.mxu0 0.0
        %3269 = vmatprep.subr.mxu0 0.0
        %3270 = vmatpush1.msra.mxu0 0.0
        %3271 = vmatprep.subr.mxu0 0.0
        %3272 = vmatpush1.msra.mxu0 0.0
        %3273 = vmatprep.subr.mxu0 0.0
        %3274 = vmatpush1.msra.mxu0 0.0
        %3275 = vmatprep.subr.mxu0 0.0
        %3276 = vmatpush1.msra.mxu0 0.0
        %3277 = vmatprep.subr.mxu0 0.0
        %3278 = vmatpush1.msra.mxu0 0.0
        %3279 = vmatprep.subr.mxu0 0.0
        %3280 = vmatpush1.msra.mxu0 0.0
        %3281 = vmatprep.subr.mxu0 0.0
        %3282 = vmatpush1.msra.mxu0 0.0
        %3283 = vmatprep.subr.mxu0 0.0
        %3284 = vmatpush1.msra.mxu0 0.0
        %3285 = vmatprep.subr.mxu0 0.0
        %3286 = vmatpush1.msra.mxu0 0.0
        %3287 = vmatprep.subr.mxu0 0.0
        %3288 = vmatpush1.msra.mxu0 0.0
        %3289 = vmatprep.subr.mxu0 0.0
        %3290 = vmatpush1.msra.mxu0 0.0
        %3291 = vmatprep.subr.mxu0 0.0
        %3292 = vmatpush1.msra.mxu0 0.0
        %3293 = vmatprep.subr.mxu0 0.0
        %3294 = vmatpush1.msra.mxu0 0.0
        %3295 = vmatprep.subr.mxu0 0.0
        %3296 = vmatpush1.msra.mxu0 0.0
        %3297 = vmatprep.subr.mxu0 0.0
        %3298 = vmatpush1.msra.mxu0 0.0
        %3299 = vmatprep.mubr.f32.mxu0 0.0
        %v3300 = vand.u32 %v1894, 4294901760
        %3301 = vmatmul.mubr.f32.gmra.mrb[0].mxu0 %v3300
        %v3302 = vpop.f32.mrb[0].mxu0
        %v3303 = vadd.f32 %v3000, %v3302
        %v3304 = vpop.f32.mrb[0].mxu0
        %v3305 = vadd.f32 %v3002, %v3304
        %3306 = vmatprep.mubr.f32.mxu0 0.0
        %v3307 = vand.u32 %v1900, 4294901760
        %3308 = vmatmul.mubr.f32.gmra.mrb[0].mxu0 %v3307
        %v3309 = vpop.f32.mrb[0].mxu0
        %v3310 = vadd.f32 %v3009, %v3309
        %v3311 = vpop.f32.mrb[0].mxu0
        %v3312 = vadd.f32 %v3011, %v3311
        %3313 = vmatprep.mubr.f32.mxu0 0.0
        %v3314 = vand.u32 %v1906, 4294901760
        %3315 = vmatmul.mubr.f32.gmra.mrb[0].mxu0 %v3314
        %v3316 = vpop.f32.mrb[0].mxu0
        %v3317 = vadd.f32 %v3018, %v3316
        %v3318 = vpop.f32.mrb[0].mxu0
        %v3319 = vadd.f32 %v3020, %v3318
        %3320 = vmatprep.mubr.f32.mxu0 0.0
        %v3321 = vand.u32 %v1912, 4294901760
        %3322 = vmatmul.mubr.f32.gmra.mrb[0].mxu0 %v3321
        %v3323 = vpop.f32.mrb[0].mxu0
        %v3324 = vadd.f32 %v3027, %v3323
        %v3325 = vpop.f32.mrb[0].mxu0
        %v3326 = vadd.f32 %v3029, %v3325
        %3327 = vmatprep.mubr.f32.mxu0 0.0
        %v3328 = vand.u32 %v1918, 4294901760
        %3329 = vmatmul.mubr.f32.gmra.mrb[0].mxu0 %v3328
        %v3330 = vpop.f32.mrb[0].mxu0
        %v3331 = vadd.f32 %v3036, %v3330
        %v3332 = vpop.f32.mrb[0].mxu0
        %v3333 = vadd.f32 %v3038, %v3332
        %3334 = vmatprep.mubr.f32.mxu0 0.0
        %v3335 = vand.u32 %v1924, 4294901760
        %3336 = vmatmul.mubr.f32.gmra.mrb[0].mxu0 %v3335
        %v3337 = vpop.f32.mrb[0].mxu0
        %v3338 = vadd.f32 %v3045, %v3337
        %v3339 = vpop.f32.mrb[0].mxu0
        %v3340 = vadd.f32 %v3047, %v3339
        %3341 = vmatprep.mubr.f32.mxu0 0.0
        %v3342 = vand.u32 %v1930, 4294901760
        %3343 = vmatmul.mubr.f32.gmra.mrb[0].mxu0 %v3342
        %v3344 = vpop.f32.mrb[0].mxu0
        %v3345 = vadd.f32 %v3054, %v3344
        %v3346 = vpop.f32.mrb[0].mxu0
        %v3347 = vadd.f32 %v3056, %v3346
        %3348 = vmatprep.mubr.f32.mxu0 0.0
        %v3349 = vand.u32 %v1936, 4294901760
        %3350 = vmatmul.mubr.f32.gmra.mrb[0].mxu0 %v3349
        %v3351 = vpop.f32.mrb[0].mxu0
        %v3352 = vadd.f32 %v3063, %v3351
        %v3353 = vpop.f32.mrb[0].mxu0
        %v3354 = vadd.f32 %v3065, %v3353
        %3355 = vmatprep.mubr.f32.mxu0 0.0
        %v3356 = vand.u32 %v1942, 4294901760
        %3357 = vmatmul.mubr.f32.gmra.mrb[0].mxu0 %v3356
        %v3358 = vpop.f32.mrb[0].mxu0
        %v3359 = vadd.f32 %v3072, %v3358
        %v3360 = vpop.f32.mrb[0].mxu0
        %v3361 = vadd.f32 %v3074, %v3360
        %3362 = vmatprep.mubr.f32.mxu0 0.0
        %v3363 = vand.u32 %v1948, 4294901760
        %3364 = vmatmul.mubr.f32.gmra.mrb[0].mxu0 %v3363
        %v3365 = vpop.f32.mrb[0].mxu0
        %v3366 = vadd.f32 %v3081, %v3365
        %v3367 = vpop.f32.mrb[0].mxu0
        %v3368 = vadd.f32 %v3083, %v3367
        %3369 = vmatprep.mubr.f32.mxu0 0.0
        %v3370 = vand.u32 %v1954, 4294901760
        %3371 = vmatmul.mubr.f32.gmra.mrb[0].mxu0 %v3370
        %v3372 = vpop.f32.mrb[0].mxu0
        %v3373 = vadd.f32 %v3090, %v3372
        %v3374 = vpop.f32.mrb[0].mxu0
        %v3375 = vadd.f32 %v3092, %v3374
        %3376 = vmatprep.mubr.f32.mxu0 0.0
        %v3377 = vand.u32 %v1960, 4294901760
        %3378 = vmatmul.mubr.f32.gmra.mrb[0].mxu0 %v3377
        %v3379 = vpop.f32.mrb[0].mxu0
        %v3380 = vadd.f32 %v3099, %v3379
        %v3381 = vpop.f32.mrb[0].mxu0
        %v3382 = vadd.f32 %v3101, %v3381
        %3383 = vmatprep.mubr.f32.mxu0 0.0
        %v3384 = vand.u32 %v1966, 4294901760
        %3385 = vmatmul.mubr.f32.gmra.mrb[0].mxu0 %v3384
        %v3386 = vpop.f32.mrb[0].mxu0
        %v3387 = vadd.f32 %v3108, %v3386
        %v3388 = vpop.f32.mrb[0].mxu0
        %v3389 = vadd.f32 %v3110, %v3388
        %3390 = vmatprep.mubr.f32.mxu0 0.0
        %v3391 = vand.u32 %v1972, 4294901760
        %3392 = vmatmul.mubr.f32.gmra.mrb[0].mxu0 %v3391
        %v3393 = vpop.f32.mrb[0].mxu0
        %v3394 = vadd.f32 %v3117, %v3393
        %v3395 = vpop.f32.mrb[0].mxu0
        %v3396 = vadd.f32 %v3119, %v3395
        %3397 = vmatprep.mubr.f32.mxu0 0.0
        %v3398 = vand.u32 %v1978, 4294901760
        %3399 = vmatmul.mubr.f32.gmra.mrb[0].mxu0 %v3398
        %v3400 = vpop.f32.mrb[0].mxu0
        %v3401 = vadd.f32 %v3126, %v3400
        %v3402 = vpop.f32.mrb[0].mxu0
        %v3403 = vadd.f32 %v3128, %v3402
        %3404 = vmatprep.mubr.f32.mxu0 0.0
        %v3405 = vand.u32 %v1984, 4294901760
        %3406 = vmatmul.mubr.f32.gmra.mrb[0].mxu0 %v3405
        %v3407 = vpop.f32.mrb[0].mxu0
        %v3408 = vadd.f32 %v3135, %v3407
        %v3409 = vpop.f32.mrb[0].mxu0
        %v3410 = vadd.f32 %v3137, %v3409
        %3411 = vdwg.mxu0
        %v3412 = vand.u32 %v1988, 4294901760
        %3413 = vmatprep.subr.mxu0 %v3412
        %v3414 = vand.u32 %v1987, 4294901760
        %3415 = vmatpush1.msra.mxu0 %v3414
        %v3416 = vand.u32 %v1990, 4294901760
        %3417 = vmatprep.subr.mxu0 %v3416
        %v3418 = vand.u32 %v1989, 4294901760
        %3419 = vmatpush1.msra.mxu0 %v3418
        %v3420 = vand.u32 %v1992, 4294901760
        %3421 = vmatprep.subr.mxu0 %v3420
        %v3422 = vand.u32 %v1991, 4294901760
        %3423 = vmatpush1.msra.mxu0 %v3422
        %v3424 = vand.u32 %v1994, 4294901760
        %3425 = vmatprep.subr.mxu0 %v3424
        %v3426 = vand.u32 %v1993, 4294901760
        %3427 = vmatpush1.msra.mxu0 %v3426
        %v3428 = vand.u32 %v1996, 4294901760
        %3429 = vmatprep.subr.mxu0 %v3428
        %v3430 = vand.u32 %v1995, 4294901760
        %3431 = vmatpush1.msra.mxu0 %v3430
        %v3432 = vand.u32 %v1998, 4294901760
        %3433 = vmatprep.subr.mxu0 %v3432
        %v3434 = vand.u32 %v1997, 4294901760
        %3435 = vmatpush1.msra.mxu0 %v3434
        %v3436 = vand.u32 %v2000, 4294901760
        %3437 = vmatprep.subr.mxu0 %v3436
        %v3438 = vand.u32 %v1999, 4294901760
        %3439 = vmatpush1.msra.mxu0 %v3438
        %v3440 = vand.u32 %v2002, 4294901760
        %3441 = vmatprep.subr.mxu0 %v3440
        %v3442 = vand.u32 %v2001, 4294901760
        %3443 = vmatpush1.msra.mxu0 %v3442
        %v3444 = vand.u32 %v2004, 4294901760
        %3445 = vmatprep.subr.mxu0 %v3444
        %v3446 = vand.u32 %v2003, 4294901760
        %3447 = vmatpush1.msra.mxu0 %v3446
        %v3448 = vand.u32 %v2006, 4294901760
        %3449 = vmatprep.subr.mxu0 %v3448
        %v3450 = vand.u32 %v2005, 4294901760
        %3451 = vmatpush1.msra.mxu0 %v3450
        %v3452 = vand.u32 %v2008, 4294901760
        %3453 = vmatprep.subr.mxu0 %v3452
        %v3454 = vand.u32 %v2007, 4294901760
        %3455 = vmatpush1.msra.mxu0 %v3454
        %v3456 = vand.u32 %v2010, 4294901760
        %3457 = vmatprep.subr.mxu0 %v3456
        %v3458 = vand.u32 %v2009, 4294901760
        %3459 = vmatpush1.msra.mxu0 %v3458
        %v3460 = vand.u32 %v2012, 4294901760
        %3461 = vmatprep.subr.mxu0 %v3460
        %v3462 = vand.u32 %v2011, 4294901760
        %3463 = vmatpush1.msra.mxu0 %v3462
        %v3464 = vand.u32 %v2014, 4294901760
        %3465 = vmatprep.subr.mxu0 %v3464
        %v3466 = vand.u32 %v2013, 4294901760
        %3467 = vmatpush1.msra.mxu0 %v3466
        %v3468 = vand.u32 %v2016, 4294901760
        %3469 = vmatprep.subr.mxu0 %v3468
        %v3470 = vand.u32 %v2015, 4294901760
        %3471 = vmatpush1.msra.mxu0 %v3470
        %v3472 = vand.u32 %v2018, 4294901760
        %3473 = vmatprep.subr.mxu0 %v3472
        %v3474 = vand.u32 %v2017, 4294901760
        %3475 = vmatpush1.msra.mxu0 %v3474
        %3476 = vmatprep.subr.mxu0 0.0
        %3477 = vmatpush1.msra.mxu0 0.0
        %3478 = vmatprep.subr.mxu0 0.0
        %3479 = vmatpush1.msra.mxu0 0.0
        %3480 = vmatprep.subr.mxu0 0.0
        %3481 = vmatpush1.msra.mxu0 0.0
        %3482 = vmatprep.subr.mxu0 0.0
        %3483 = vmatpush1.msra.mxu0 0.0
        %3484 = vmatprep.subr.mxu0 0.0
        %3485 = vmatpush1.msra.mxu0 0.0
        %3486 = vmatprep.subr.mxu0 0.0
        %3487 = vmatpush1.msra.mxu0 0.0
        %3488 = vmatprep.subr.mxu0 0.0
        %3489 = vmatpush1.msra.mxu0 0.0
        %3490 = vmatprep.subr.mxu0 0.0
        %3491 = vmatpush1.msra.mxu0 0.0
        %3492 = vmatprep.subr.mxu0 0.0
        %3493 = vmatpush1.msra.mxu0 0.0
        %3494 = vmatprep.subr.mxu0 0.0
        %3495 = vmatpush1.msra.mxu0 0.0
        %3496 = vmatprep.subr.mxu0 0.0
        %3497 = vmatpush1.msra.mxu0 0.0
        %3498 = vmatprep.subr.mxu0 0.0
        %3499 = vmatpush1.msra.mxu0 0.0
        %3500 = vmatprep.subr.mxu0 0.0
        %3501 = vmatpush1.msra.mxu0 0.0
        %3502 = vmatprep.subr.mxu0 0.0
        %3503 = vmatpush1.msra.mxu0 0.0
        %3504 = vmatprep.subr.mxu0 0.0
        %3505 = vmatpush1.msra.mxu0 0.0
        %3506 = vmatprep.subr.mxu0 0.0
        %3507 = vmatpush1.msra.mxu0 0.0
        %3508 = vmatprep.mubr.f32.mxu0 0.0
        %v3509 = vand.u32 %v1894, 4294901760
        %3510 = vmatmul.mubr.f32.gmra.mrb[0].mxu0 %v3509
        %v3511 = vpop.f32.mrb[0].mxu0
        %v3512 = vadd.f32 %v3303, %v3511
        %v3513 = vpop.f32.mrb[0].mxu0
        %v3514 = vadd.f32 %v3305, %v3513
        %3515 = vmatprep.mubr.f32.mxu0 0.0
        %v3516 = vand.u32 %v1900, 4294901760
        %3517 = vmatmul.mubr.f32.gmra.mrb[0].mxu0 %v3516
        %v3518 = vpop.f32.mrb[0].mxu0
        %v3519 = vadd.f32 %v3310, %v3518
        %v3520 = vpop.f32.mrb[0].mxu0
        %v3521 = vadd.f32 %v3312, %v3520
        %3522 = vmatprep.mubr.f32.mxu0 0.0
        %v3523 = vand.u32 %v1906, 4294901760
        %3524 = vmatmul.mubr.f32.gmra.mrb[0].mxu0 %v3523
        %v3525 = vpop.f32.mrb[0].mxu0
        %v3526 = vadd.f32 %v3317, %v3525
        %v3527 = vpop.f32.mrb[0].mxu0
        %v3528 = vadd.f32 %v3319, %v3527
        %3529 = vmatprep.mubr.f32.mxu0 0.0
        %v3530 = vand.u32 %v1912, 4294901760
        %3531 = vmatmul.mubr.f32.gmra.mrb[0].mxu0 %v3530
        %v3532 = vpop.f32.mrb[0].mxu0
        %v3533 = vadd.f32 %v3324, %v3532
        %v3534 = vpop.f32.mrb[0].mxu0
        %v3535 = vadd.f32 %v3326, %v3534
        %3536 = vmatprep.mubr.f32.mxu0 0.0
        %v3537 = vand.u32 %v1918, 4294901760
        %3538 = vmatmul.mubr.f32.gmra.mrb[0].mxu0 %v3537
        %v3539 = vpop.f32.mrb[0].mxu0
        %v3540 = vadd.f32 %v3331, %v3539
        %v3541 = vpop.f32.mrb[0].mxu0
        %v3542 = vadd.f32 %v3333, %v3541
        %3543 = vmatprep.mubr.f32.mxu0 0.0
        %v3544 = vand.u32 %v1924, 4294901760
        %3545 = vmatmul.mubr.f32.gmra.mrb[0].mxu0 %v3544
        %v3546 = vpop.f32.mrb[0].mxu0
        %v3547 = vadd.f32 %v3338, %v3546
        %v3548 = vpop.f32.mrb[0].mxu0
        %v3549 = vadd.f32 %v3340, %v3548
        %3550 = vmatprep.mubr.f32.mxu0 0.0
        %v3551 = vand.u32 %v1930, 4294901760
        %3552 = vmatmul.mubr.f32.gmra.mrb[0].mxu0 %v3551
        %v3553 = vpop.f32.mrb[0].mxu0
        %v3554 = vadd.f32 %v3345, %v3553
        %v3555 = vpop.f32.mrb[0].mxu0
        %v3556 = vadd.f32 %v3347, %v3555
        %3557 = vmatprep.mubr.f32.mxu0 0.0
        %v3558 = vand.u32 %v1936, 4294901760
        %3559 = vmatmul.mubr.f32.gmra.mrb[0].mxu0 %v3558
        %v3560 = vpop.f32.mrb[0].mxu0
        %v3561 = vadd.f32 %v3352, %v3560
        %v3562 = vpop.f32.mrb[0].mxu0
        %v3563 = vadd.f32 %v3354, %v3562
        %3564 = vmatprep.mubr.f32.mxu0 0.0
        %v3565 = vand.u32 %v1942, 4294901760
        %3566 = vmatmul.mubr.f32.gmra.mrb[0].mxu0 %v3565
        %v3567 = vpop.f32.mrb[0].mxu0
        %v3568 = vadd.f32 %v3359, %v3567
        %v3569 = vpop.f32.mrb[0].mxu0
        %v3570 = vadd.f32 %v3361, %v3569
        %3571 = vmatprep.mubr.f32.mxu0 0.0
        %v3572 = vand.u32 %v1948, 4294901760
        %3573 = vmatmul.mubr.f32.gmra.mrb[0].mxu0 %v3572
        %v3574 = vpop.f32.mrb[0].mxu0
        %v3575 = vadd.f32 %v3366, %v3574
        %v3576 = vpop.f32.mrb[0].mxu0
        %v3577 = vadd.f32 %v3368, %v3576
        %3578 = vmatprep.mubr.f32.mxu0 0.0
        %v3579 = vand.u32 %v1954, 4294901760
        %3580 = vmatmul.mubr.f32.gmra.mrb[0].mxu0 %v3579
        %v3581 = vpop.f32.mrb[0].mxu0
        %v3582 = vadd.f32 %v3373, %v3581
        %v3583 = vpop.f32.mrb[0].mxu0
        %v3584 = vadd.f32 %v3375, %v3583
        %3585 = vmatprep.mubr.f32.mxu0 0.0
        %v3586 = vand.u32 %v1960, 4294901760
        %3587 = vmatmul.mubr.f32.gmra.mrb[0].mxu0 %v3586
        %v3588 = vpop.f32.mrb[0].mxu0
        %v3589 = vadd.f32 %v3380, %v3588
        %v3590 = vpop.f32.mrb[0].mxu0
        %v3591 = vadd.f32 %v3382, %v3590
        %3592 = vmatprep.mubr.f32.mxu0 0.0
        %v3593 = vand.u32 %v1966, 4294901760
        %3594 = vmatmul.mubr.f32.gmra.mrb[0].mxu0 %v3593
        %v3595 = vpop.f32.mrb[0].mxu0
        %v3596 = vadd.f32 %v3387, %v3595
        %v3597 = vpop.f32.mrb[0].mxu0
        %v3598 = vadd.f32 %v3389, %v3597
        %3599 = vmatprep.mubr.f32.mxu0 0.0
        %v3600 = vand.u32 %v1972, 4294901760
        %3601 = vmatmul.mubr.f32.gmra.mrb[0].mxu0 %v3600
        %v3602 = vpop.f32.mrb[0].mxu0
        %v3603 = vadd.f32 %v3394, %v3602
        %v3604 = vpop.f32.mrb[0].mxu0
        %v3605 = vadd.f32 %v3396, %v3604
        %3606 = vmatprep.mubr.f32.mxu0 0.0
        %v3607 = vand.u32 %v1978, 4294901760
        %3608 = vmatmul.mubr.f32.gmra.mrb[0].mxu0 %v3607
        %v3609 = vpop.f32.mrb[0].mxu0
        %v3610 = vadd.f32 %v3401, %v3609
        %v3611 = vpop.f32.mrb[0].mxu0
        %v3612 = vadd.f32 %v3403, %v3611
        %3613 = vmatprep.mubr.f32.mxu0 0.0
        %v3614 = vand.u32 %v1984, 4294901760
        %3615 = vmatmul.mubr.f32.gmra.mrb[0].mxu0 %v3614
        %v3616 = vpop.f32.mrb[0].mxu0
        %v3617 = vadd.f32 %v3408, %v3616
        %v3618 = vpop.f32.mrb[0].mxu0
        %v3619 = vadd.f32 %v3410, %v3618
        %3620 = vdwg.mxu0
        %v3621 = vmax.f32 %v3512, 0.0
        %v3622 = vmax.f32 %v3514, 0.0
        %v3623 = vmax.f32 %v3519, 0.0
        %v3624 = vmax.f32 %v3521, 0.0
        %v3625 = vmax.f32 %v3526, 0.0
        %v3626 = vmax.f32 %v3528, 0.0
        %v3627 = vmax.f32 %v3533, 0.0
        %v3628 = vmax.f32 %v3535, 0.0
        %v3629 = vmax.f32 %v3540, 0.0
        %v3630 = vmax.f32 %v3542, 0.0
        %v3631 = vmax.f32 %v3547, 0.0
        %v3632 = vmax.f32 %v3549, 0.0
        %v3633 = vmax.f32 %v3554, 0.0
        %v3634 = vmax.f32 %v3556, 0.0
        %v3635 = vmax.f32 %v3561, 0.0
        %v3636 = vmax.f32 %v3563, 0.0
        %v3637 = vmax.f32 %v3568, 0.0
        %v3638 = vmax.f32 %v3570, 0.0
        %v3639 = vmax.f32 %v3575, 0.0
        %v3640 = vmax.f32 %v3577, 0.0
        %v3641 = vmax.f32 %v3582, 0.0
        %v3642 = vmax.f32 %v3584, 0.0
        %v3643 = vmax.f32 %v3589, 0.0
        %v3644 = vmax.f32 %v3591, 0.0
        %v3645 = vmax.f32 %v3596, 0.0
        %v3646 = vmax.f32 %v3598, 0.0
        %v3647 = vmax.f32 %v3603, 0.0
        %v3648 = vmax.f32 %v3605, 0.0
        %v3649 = vmax.f32 %v3610, 0.0
        %v3650 = vmax.f32 %v3612, 0.0
        %v3651 = vmax.f32 %v3617, 0.0
        %v3652 = vmax.f32 %v3619, 0.0
        %v3653 = vld [vmem:[#allocation5] sm:$0xff]
        %v3654 = vld [vmem:[#allocation5 + $0x8] sm:$0xff]
        %v3655 = vld [vmem:[#allocation5 + $0x10] sm:$0xff]
        %v3656 = vld [vmem:[#allocation5 + $0x18] sm:$0xff]
        %v3657 = vld [vmem:[#allocation5 + $0x20] sm:$0xff]
        %v3658 = vld [vmem:[#allocation5 + $0x28] sm:$0xff]
        %v3659 = vld [vmem:[#allocation5 + $0x30] sm:$0xff]
        %v3660 = vld [vmem:[#allocation5 + $0x38] sm:$0xff]
        %v3661 = vld [vmem:[#allocation5 + $0x40] sm:$0xff]
        %v3662 = vld [vmem:[#allocation5 + $0x48] sm:$0xff]
        %v3663 = vld [vmem:[#allocation5 + $0x50] sm:$0xff]
        %v3664 = vld [vmem:[#allocation5 + $0x58] sm:$0xff]
        %v3665 = vld [vmem:[#allocation5 + $0x60] sm:$0xff]
        %v3666 = vld [vmem:[#allocation5 + $0x68] sm:$0xff]
        %v3667 = vld [vmem:[#allocation5 + $0x70] sm:$0xff]
        %v3668 = vld [vmem:[#allocation5 + $0x78] sm:$0xff]
        %v3669 = vld [vmem:[#allocation5 + $0x80] sm:$0xff]
        %v3670 = vld [vmem:[#allocation5 + $0x88] sm:$0xff]
        %v3671 = vld [vmem:[#allocation5 + $0x90] sm:$0xff]
        %v3672 = vld [vmem:[#allocation5 + $0x98] sm:$0xff]
        %v3673 = vld [vmem:[#allocation5 + $0xa0] sm:$0xff]
        %v3674 = vld [vmem:[#allocation5 + $0xa8] sm:$0xff]
        %v3675 = vld [vmem:[#allocation5 + $0xb0] sm:$0xff]
        %v3676 = vld [vmem:[#allocation5 + $0xb8] sm:$0xff]
        %v3677 = vld [vmem:[#allocation5 + $0xc0] sm:$0xff]
        %v3678 = vld [vmem:[#allocation5 + $0xc8] sm:$0xff]
        %v3679 = vld [vmem:[#allocation5 + $0xd0] sm:$0xff]
        %v3680 = vld [vmem:[#allocation5 + $0xd8] sm:$0xff]
        %v3681 = vld [vmem:[#allocation5 + $0xe0] sm:$0xff]
        %v3682 = vld [vmem:[#allocation5 + $0xe8] sm:$0xff]
        %v3683 = vld [vmem:[#allocation5 + $0xf0] sm:$0xff]
        %v3684 = vld [vmem:[#allocation5 + $0xf8] sm:$0xff]
        %v3685 = vld [vmem:[%s5] sm:$0x1]
        %v3687 = vlaneseq
        %v3688 = vshrl.u32 %v3687, 7
        %v3689 = vsub.s32 0, %v3688
        %v3690 = vrot.slane %v3685, %v3689
        %3692 = vmatprep.subr.mxu0 0.0
        %v3693 = vand.u32 %v3653, 4294901760
        %3694 = vmatpush1.msra.mxu0 %v3693
        %3695 = vmatprep.subr.mxu0 0.0
        %v3696 = vand.u32 %v3654, 4294901760
        %3697 = vmatpush1.msra.mxu0 %v3696
        %3698 = vmatprep.subr.mxu0 0.0
        %v3699 = vand.u32 %v3655, 4294901760
        %3700 = vmatpush1.msra.mxu0 %v3699
        %3701 = vmatprep.subr.mxu0 0.0
        %v3702 = vand.u32 %v3656, 4294901760
        %3703 = vmatpush1.msra.mxu0 %v3702
        %3704 = vmatprep.subr.mxu0 0.0
        %v3705 = vand.u32 %v3657, 4294901760
        %3706 = vmatpush1.msra.mxu0 %v3705
        %3707 = vmatprep.subr.mxu0 0.0
        %v3708 = vand.u32 %v3658, 4294901760
        %3709 = vmatpush1.msra.mxu0 %v3708
        %3710 = vmatprep.subr.mxu0 0.0
        %v3711 = vand.u32 %v3659, 4294901760
        %3712 = vmatpush1.msra.mxu0 %v3711
        %3713 = vmatprep.subr.mxu0 0.0
        %v3714 = vand.u32 %v3660, 4294901760
        %3715 = vmatpush1.msra.mxu0 %v3714
        %3716 = vmatprep.subr.mxu0 0.0
        %v3717 = vand.u32 %v3661, 4294901760
        %3718 = vmatpush1.msra.mxu0 %v3717
        %3719 = vmatprep.subr.mxu0 0.0
        %v3720 = vand.u32 %v3662, 4294901760
        %3721 = vmatpush1.msra.mxu0 %v3720
        %3722 = vmatprep.subr.mxu0 0.0
        %v3723 = vand.u32 %v3663, 4294901760
        %3724 = vmatpush1.msra.mxu0 %v3723
        %3725 = vmatprep.subr.mxu0 0.0
        %v3726 = vand.u32 %v3664, 4294901760
        %3727 = vmatpush1.msra.mxu0 %v3726
        %3728 = vmatprep.subr.mxu0 0.0
        %v3729 = vand.u32 %v3665, 4294901760
        %3730 = vmatpush1.msra.mxu0 %v3729
        %3731 = vmatprep.subr.mxu0 0.0
        %v3732 = vand.u32 %v3666, 4294901760
        %3733 = vmatpush1.msra.mxu0 %v3732
        %3734 = vmatprep.subr.mxu0 0.0
        %v3735 = vand.u32 %v3667, 4294901760
        %3736 = vmatpush1.msra.mxu0 %v3735
        %3737 = vmatprep.subr.mxu0 0.0
        %v3738 = vand.u32 %v3668, 4294901760
        %3739 = vmatpush1.msra.mxu0 %v3738
        %3740 = vmatprep.subr.mxu0 0.0
        %v3741 = vand.u32 %v3669, 4294901760
        %3742 = vmatpush1.msra.mxu0 %v3741
        %3743 = vmatprep.subr.mxu0 0.0
        %v3744 = vand.u32 %v3670, 4294901760
        %3745 = vmatpush1.msra.mxu0 %v3744
        %3746 = vmatprep.subr.mxu0 0.0
        %v3747 = vand.u32 %v3671, 4294901760
        %3748 = vmatpush1.msra.mxu0 %v3747
        %3749 = vmatprep.subr.mxu0 0.0
        %v3750 = vand.u32 %v3672, 4294901760
        %3751 = vmatpush1.msra.mxu0 %v3750
        %3752 = vmatprep.subr.mxu0 0.0
        %v3753 = vand.u32 %v3673, 4294901760
        %3754 = vmatpush1.msra.mxu0 %v3753
        %3755 = vmatprep.subr.mxu0 0.0
        %v3756 = vand.u32 %v3674, 4294901760
        %3757 = vmatpush1.msra.mxu0 %v3756
        %3758 = vmatprep.subr.mxu0 0.0
        %v3759 = vand.u32 %v3675, 4294901760
        %3760 = vmatpush1.msra.mxu0 %v3759
        %3761 = vmatprep.subr.mxu0 0.0
        %v3762 = vand.u32 %v3676, 4294901760
        %3763 = vmatpush1.msra.mxu0 %v3762
        %3764 = vmatprep.subr.mxu0 0.0
        %v3765 = vand.u32 %v3677, 4294901760
        %3766 = vmatpush1.msra.mxu0 %v3765
        %3767 = vmatprep.subr.mxu0 0.0
        %v3768 = vand.u32 %v3678, 4294901760
        %3769 = vmatpush1.msra.mxu0 %v3768
        %3770 = vmatprep.subr.mxu0 0.0
        %v3771 = vand.u32 %v3679, 4294901760
        %3772 = vmatpush1.msra.mxu0 %v3771
        %3773 = vmatprep.subr.mxu0 0.0
        %v3774 = vand.u32 %v3680, 4294901760
        %3775 = vmatpush1.msra.mxu0 %v3774
        %3776 = vmatprep.subr.mxu0 0.0
        %v3777 = vand.u32 %v3681, 4294901760
        %3778 = vmatpush1.msra.mxu0 %v3777
        %3779 = vmatprep.subr.mxu0 0.0
        %v3780 = vand.u32 %v3682, 4294901760
        %3781 = vmatpush1.msra.mxu0 %v3780
        %3782 = vmatprep.subr.mxu0 0.0
        %v3783 = vand.u32 %v3683, 4294901760
        %3784 = vmatpush1.msra.mxu0 %v3783
        %3785 = vmatprep.subr.mxu0 0.0
        %v3786 = vand.u32 %v3684, 4294901760
        %3787 = vmatpush1.msra.mxu0 %v3786
        %v3788 = vand.u32 %v3622, 4294901760
        %v3789 = vsub.f32 %v3622, %v3788
        %v3790 = vand.u32 %v3789, 4294901760
        %v3791 = vsub.f32 %v3789, %v3790
        %v3792 = vand.u32 %v3791, 4294901760
        %3793 = vmatprep.mubr.f32.mxu0 %v3792
        %v3794 = vand.u32 %v3621, 4294901760
        %v3795 = vsub.f32 %v3621, %v3794
        %v3796 = vand.u32 %v3795, 4294901760
        %v3797 = vsub.f32 %v3795, %v3796
        %v3798 = vand.u32 %v3797, 4294901760
        %3799 = vmatmul.mubr.f32.gmra.mrb[0].mxu0 %v3798
        %v3800 = vpop.f32.mrb[0].mxu0
        %v3801 = vadd.f32 %v3690, %v3800
        %v3802 = vpop.f32.mrb[0].mxu0
        %v3803 = vand.u32 %v3624, 4294901760
        %v3804 = vsub.f32 %v3624, %v3803
        %v3805 = vand.u32 %v3804, 4294901760
        %v3806 = vsub.f32 %v3804, %v3805
        %v3807 = vand.u32 %v3806, 4294901760
        %3808 = vmatprep.mubr.f32.mxu0 %v3807
        %v3809 = vand.u32 %v3623, 4294901760
        %v3810 = vsub.f32 %v3623, %v3809
        %v3811 = vand.u32 %v3810, 4294901760
        %v3812 = vsub.f32 %v3810, %v3811
        %v3813 = vand.u32 %v3812, 4294901760
        %3814 = vmatmul.mubr.f32.gmra.mrb[0].mxu0 %v3813
        %v3815 = vpop.f32.mrb[0].mxu0
        %v3816 = vadd.f32 %v3690, %v3815
        %v3817 = vpop.f32.mrb[0].mxu0
        %v3818 = vand.u32 %v3626, 4294901760
        %v3819 = vsub.f32 %v3626, %v3818
        %v3820 = vand.u32 %v3819, 4294901760
        %v3821 = vsub.f32 %v3819, %v3820
        %v3822 = vand.u32 %v3821, 4294901760
        %3823 = vmatprep.mubr.f32.mxu0 %v3822
        %v3824 = vand.u32 %v3625, 4294901760
        %v3825 = vsub.f32 %v3625, %v3824
        %v3826 = vand.u32 %v3825, 4294901760
        %v3827 = vsub.f32 %v3825, %v3826
        %v3828 = vand.u32 %v3827, 4294901760
        %3829 = vmatmul.mubr.f32.gmra.mrb[0].mxu0 %v3828
        %v3830 = vpop.f32.mrb[0].mxu0
        %v3831 = vadd.f32 %v3690, %v3830
        %v3832 = vpop.f32.mrb[0].mxu0
        %v3833 = vand.u32 %v3628, 4294901760
        %v3834 = vsub.f32 %v3628, %v3833
        %v3835 = vand.u32 %v3834, 4294901760
        %v3836 = vsub.f32 %v3834, %v3835
        %v3837 = vand.u32 %v3836, 4294901760
        %3838 = vmatprep.mubr.f32.mxu0 %v3837
        %v3839 = vand.u32 %v3627, 4294901760
        %v3840 = vsub.f32 %v3627, %v3839
        %v3841 = vand.u32 %v3840, 4294901760
        %v3842 = vsub.f32 %v3840, %v3841
        %v3843 = vand.u32 %v3842, 4294901760
        %3844 = vmatmul.mubr.f32.gmra.mrb[0].mxu0 %v3843
        %v3845 = vpop.f32.mrb[0].mxu0
        %v3846 = vadd.f32 %v3690, %v3845
        %v3847 = vpop.f32.mrb[0].mxu0
        %v3848 = vand.u32 %v3630, 4294901760
        %v3849 = vsub.f32 %v3630, %v3848
        %v3850 = vand.u32 %v3849, 4294901760
        %v3851 = vsub.f32 %v3849, %v3850
        %v3852 = vand.u32 %v3851, 4294901760
        %3853 = vmatprep.mubr.f32.mxu0 %v3852
        %v3854 = vand.u32 %v3629, 4294901760
        %v3855 = vsub.f32 %v3629, %v3854
        %v3856 = vand.u32 %v3855, 4294901760
        %v3857 = vsub.f32 %v3855, %v3856
        %v3858 = vand.u32 %v3857, 4294901760
        %3859 = vmatmul.mubr.f32.gmra.mrb[0].mxu0 %v3858
        %v3860 = vpop.f32.mrb[0].mxu0
        %v3861 = vadd.f32 %v3690, %v3860
        %v3862 = vpop.f32.mrb[0].mxu0
        %v3863 = vand.u32 %v3632, 4294901760
        %v3864 = vsub.f32 %v3632, %v3863
        %v3865 = vand.u32 %v3864, 4294901760
        %v3866 = vsub.f32 %v3864, %v3865
        %v3867 = vand.u32 %v3866, 4294901760
        %3868 = vmatprep.mubr.f32.mxu0 %v3867
        %v3869 = vand.u32 %v3631, 4294901760
        %v3870 = vsub.f32 %v3631, %v3869
        %v3871 = vand.u32 %v3870, 4294901760
        %v3872 = vsub.f32 %v3870, %v3871
        %v3873 = vand.u32 %v3872, 4294901760
        %3874 = vmatmul.mubr.f32.gmra.mrb[0].mxu0 %v3873
        %v3875 = vpop.f32.mrb[0].mxu0
        %v3876 = vadd.f32 %v3690, %v3875
        %v3877 = vpop.f32.mrb[0].mxu0
        %v3878 = vand.u32 %v3634, 4294901760
        %v3879 = vsub.f32 %v3634, %v3878
        %v3880 = vand.u32 %v3879, 4294901760
        %v3881 = vsub.f32 %v3879, %v3880
        %v3882 = vand.u32 %v3881, 4294901760
        %3883 = vmatprep.mubr.f32.mxu0 %v3882
        %v3884 = vand.u32 %v3633, 4294901760
        %v3885 = vsub.f32 %v3633, %v3884
        %v3886 = vand.u32 %v3885, 4294901760
        %v3887 = vsub.f32 %v3885, %v3886
        %v3888 = vand.u32 %v3887, 4294901760
        %3889 = vmatmul.mubr.f32.gmra.mrb[0].mxu0 %v3888
        %v3890 = vpop.f32.mrb[0].mxu0
        %v3891 = vadd.f32 %v3690, %v3890
        %v3892 = vpop.f32.mrb[0].mxu0
        %v3893 = vand.u32 %v3636, 4294901760
        %v3894 = vsub.f32 %v3636, %v3893
        %v3895 = vand.u32 %v3894, 4294901760
        %v3896 = vsub.f32 %v3894, %v3895
        %v3897 = vand.u32 %v3896, 4294901760
        %3898 = vmatprep.mubr.f32.mxu0 %v3897
        %v3899 = vand.u32 %v3635, 4294901760
        %v3900 = vsub.f32 %v3635, %v3899
        %v3901 = vand.u32 %v3900, 4294901760
        %v3902 = vsub.f32 %v3900, %v3901
        %v3903 = vand.u32 %v3902, 4294901760
        %3904 = vmatmul.mubr.f32.gmra.mrb[0].mxu0 %v3903
        %v3905 = vpop.f32.mrb[0].mxu0
        %v3906 = vadd.f32 %v3690, %v3905
        %v3907 = vpop.f32.mrb[0].mxu0
        %v3908 = vand.u32 %v3638, 4294901760
        %v3909 = vsub.f32 %v3638, %v3908
        %v3910 = vand.u32 %v3909, 4294901760
        %v3911 = vsub.f32 %v3909, %v3910
        %v3912 = vand.u32 %v3911, 4294901760
        %3913 = vmatprep.mubr.f32.mxu0 %v3912
        %v3914 = vand.u32 %v3637, 4294901760
        %v3915 = vsub.f32 %v3637, %v3914
        %v3916 = vand.u32 %v3915, 4294901760
        %v3917 = vsub.f32 %v3915, %v3916
        %v3918 = vand.u32 %v3917, 4294901760
        %3919 = vmatmul.mubr.f32.gmra.mrb[0].mxu0 %v3918
        %v3920 = vpop.f32.mrb[0].mxu0
        %v3921 = vadd.f32 %v3690, %v3920
        %v3922 = vpop.f32.mrb[0].mxu0
        %v3923 = vand.u32 %v3640, 4294901760
        %v3924 = vsub.f32 %v3640, %v3923
        %v3925 = vand.u32 %v3924, 4294901760
        %v3926 = vsub.f32 %v3924, %v3925
        %v3927 = vand.u32 %v3926, 4294901760
        %3928 = vmatprep.mubr.f32.mxu0 %v3927
        %v3929 = vand.u32 %v3639, 4294901760
        %v3930 = vsub.f32 %v3639, %v3929
        %v3931 = vand.u32 %v3930, 4294901760
        %v3932 = vsub.f32 %v3930, %v3931
        %v3933 = vand.u32 %v3932, 4294901760
        %3934 = vmatmul.mubr.f32.gmra.mrb[0].mxu0 %v3933
        %v3935 = vpop.f32.mrb[0].mxu0
        %v3936 = vadd.f32 %v3690, %v3935
        %v3937 = vpop.f32.mrb[0].mxu0
        %v3938 = vand.u32 %v3642, 4294901760
        %v3939 = vsub.f32 %v3642, %v3938
        %v3940 = vand.u32 %v3939, 4294901760
        %v3941 = vsub.f32 %v3939, %v3940
        %v3942 = vand.u32 %v3941, 4294901760
        %3943 = vmatprep.mubr.f32.mxu0 %v3942
        %v3944 = vand.u32 %v3641, 4294901760
        %v3945 = vsub.f32 %v3641, %v3944
        %v3946 = vand.u32 %v3945, 4294901760
        %v3947 = vsub.f32 %v3945, %v3946
        %v3948 = vand.u32 %v3947, 4294901760
        %3949 = vmatmul.mubr.f32.gmra.mrb[0].mxu0 %v3948
        %v3950 = vpop.f32.mrb[0].mxu0
        %v3951 = vadd.f32 %v3690, %v3950
        %v3952 = vpop.f32.mrb[0].mxu0
        %v3953 = vand.u32 %v3644, 4294901760
        %v3954 = vsub.f32 %v3644, %v3953
        %v3955 = vand.u32 %v3954, 4294901760
        %v3956 = vsub.f32 %v3954, %v3955
        %v3957 = vand.u32 %v3956, 4294901760
        %3958 = vmatprep.mubr.f32.mxu0 %v3957
        %v3959 = vand.u32 %v3643, 4294901760
        %v3960 = vsub.f32 %v3643, %v3959
        %v3961 = vand.u32 %v3960, 4294901760
        %v3962 = vsub.f32 %v3960, %v3961
        %v3963 = vand.u32 %v3962, 4294901760
        %3964 = vmatmul.mubr.f32.gmra.mrb[0].mxu0 %v3963
        %v3965 = vpop.f32.mrb[0].mxu0
        %v3966 = vadd.f32 %v3690, %v3965
        %v3967 = vpop.f32.mrb[0].mxu0
        %v3968 = vand.u32 %v3646, 4294901760
        %v3969 = vsub.f32 %v3646, %v3968
        %v3970 = vand.u32 %v3969, 4294901760
        %v3971 = vsub.f32 %v3969, %v3970
        %v3972 = vand.u32 %v3971, 4294901760
        %3973 = vmatprep.mubr.f32.mxu0 %v3972
        %v3974 = vand.u32 %v3645, 4294901760
        %v3975 = vsub.f32 %v3645, %v3974
        %v3976 = vand.u32 %v3975, 4294901760
        %v3977 = vsub.f32 %v3975, %v3976
        %v3978 = vand.u32 %v3977, 4294901760
        %3979 = vmatmul.mubr.f32.gmra.mrb[0].mxu0 %v3978
        %v3980 = vpop.f32.mrb[0].mxu0
        %v3981 = vadd.f32 %v3690, %v3980
        %v3982 = vpop.f32.mrb[0].mxu0
        %v3983 = vand.u32 %v3648, 4294901760
        %v3984 = vsub.f32 %v3648, %v3983
        %v3985 = vand.u32 %v3984, 4294901760
        %v3986 = vsub.f32 %v3984, %v3985
        %v3987 = vand.u32 %v3986, 4294901760
        %3988 = vmatprep.mubr.f32.mxu0 %v3987
        %v3989 = vand.u32 %v3647, 4294901760
        %v3990 = vsub.f32 %v3647, %v3989
        %v3991 = vand.u32 %v3990, 4294901760
        %v3992 = vsub.f32 %v3990, %v3991
        %v3993 = vand.u32 %v3992, 4294901760
        %3994 = vmatmul.mubr.f32.gmra.mrb[0].mxu0 %v3993
        %v3995 = vpop.f32.mrb[0].mxu0
        %v3996 = vadd.f32 %v3690, %v3995
        %v3997 = vpop.f32.mrb[0].mxu0
        %v3998 = vand.u32 %v3650, 4294901760
        %v3999 = vsub.f32 %v3650, %v3998
        %v4000 = vand.u32 %v3999, 4294901760
        %v4001 = vsub.f32 %v3999, %v4000
        %v4002 = vand.u32 %v4001, 4294901760
        %4003 = vmatprep.mubr.f32.mxu0 %v4002
        %v4004 = vand.u32 %v3649, 4294901760
        %v4005 = vsub.f32 %v3649, %v4004
        %v4006 = vand.u32 %v4005, 4294901760
        %v4007 = vsub.f32 %v4005, %v4006
        %v4008 = vand.u32 %v4007, 4294901760
        %4009 = vmatmul.mubr.f32.gmra.mrb[0].mxu0 %v4008
        %v4010 = vpop.f32.mrb[0].mxu0
        %v4011 = vadd.f32 %v3690, %v4010
        %v4012 = vpop.f32.mrb[0].mxu0
        %v4013 = vand.u32 %v3652, 4294901760
        %v4014 = vsub.f32 %v3652, %v4013
        %v4015 = vand.u32 %v4014, 4294901760
        %v4016 = vsub.f32 %v4014, %v4015
        %v4017 = vand.u32 %v4016, 4294901760
        %4018 = vmatprep.mubr.f32.mxu0 %v4017
        %v4019 = vand.u32 %v3651, 4294901760
        %v4020 = vsub.f32 %v3651, %v4019
        %v4021 = vand.u32 %v4020, 4294901760
        %v4022 = vsub.f32 %v4020, %v4021
        %v4023 = vand.u32 %v4022, 4294901760
        %4024 = vmatmul.mubr.f32.gmra.mrb[0].mxu0 %v4023
        %v4025 = vpop.f32.mrb[0].mxu0
        %v4026 = vadd.f32 %v3690, %v4025
        %v4027 = vpop.f32.mrb[0].mxu0
        %4028 = vdwg.mxu0
        %4029 = vmatprep.subr.mxu0 0.0
        %v4030 = vand.u32 %v3653, 4294901760
        %v4031 = vsub.f32 %v3653, %v4030
        %v4032 = vand.u32 %v4031, 4294901760
        %v4033 = vsub.f32 %v4031, %v4032
        %v4034 = vand.u32 %v4033, 4294901760
        %4035 = vmatpush1.msra.mxu0 %v4034
        %4036 = vmatprep.subr.mxu0 0.0
        %v4037 = vand.u32 %v3654, 4294901760
        %v4038 = vsub.f32 %v3654, %v4037
        %v4039 = vand.u32 %v4038, 4294901760
        %v4040 = vsub.f32 %v4038, %v4039
        %v4041 = vand.u32 %v4040, 4294901760
        %4042 = vmatpush1.msra.mxu0 %v4041
        %4043 = vmatprep.subr.mxu0 0.0
        %v4044 = vand.u32 %v3655, 4294901760
        %v4045 = vsub.f32 %v3655, %v4044
        %v4046 = vand.u32 %v4045, 4294901760
        %v4047 = vsub.f32 %v4045, %v4046
        %v4048 = vand.u32 %v4047, 4294901760
        %4049 = vmatpush1.msra.mxu0 %v4048
        %4050 = vmatprep.subr.mxu0 0.0
        %v4051 = vand.u32 %v3656, 4294901760
        %v4052 = vsub.f32 %v3656, %v4051
        %v4053 = vand.u32 %v4052, 4294901760
        %v4054 = vsub.f32 %v4052, %v4053
        %v4055 = vand.u32 %v4054, 4294901760
        %4056 = vmatpush1.msra.mxu0 %v4055
        %4057 = vmatprep.subr.mxu0 0.0
        %v4058 = vand.u32 %v3657, 4294901760
        %v4059 = vsub.f32 %v3657, %v4058
        %v4060 = vand.u32 %v4059, 4294901760
        %v4061 = vsub.f32 %v4059, %v4060
        %v4062 = vand.u32 %v4061, 4294901760
        %4063 = vmatpush1.msra.mxu0 %v4062
        %4064 = vmatprep.subr.mxu0 0.0
        %v4065 = vand.u32 %v3658, 4294901760
        %v4066 = vsub.f32 %v3658, %v4065
        %v4067 = vand.u32 %v4066, 4294901760
        %v4068 = vsub.f32 %v4066, %v4067
        %v4069 = vand.u32 %v4068, 4294901760
        %4070 = vmatpush1.msra.mxu0 %v4069
        %4071 = vmatprep.subr.mxu0 0.0
        %v4072 = vand.u32 %v3659, 4294901760
        %v4073 = vsub.f32 %v3659, %v4072
        %v4074 = vand.u32 %v4073, 4294901760
        %v4075 = vsub.f32 %v4073, %v4074
        %v4076 = vand.u32 %v4075, 4294901760
        %4077 = vmatpush1.msra.mxu0 %v4076
        %4078 = vmatprep.subr.mxu0 0.0
        %v4079 = vand.u32 %v3660, 4294901760
        %v4080 = vsub.f32 %v3660, %v4079
        %v4081 = vand.u32 %v4080, 4294901760
        %v4082 = vsub.f32 %v4080, %v4081
        %v4083 = vand.u32 %v4082, 4294901760
        %4084 = vmatpush1.msra.mxu0 %v4083
        %4085 = vmatprep.subr.mxu0 0.0
        %v4086 = vand.u32 %v3661, 4294901760
        %v4087 = vsub.f32 %v3661, %v4086
        %v4088 = vand.u32 %v4087, 4294901760
        %v4089 = vsub.f32 %v4087, %v4088
        %v4090 = vand.u32 %v4089, 4294901760
        %4091 = vmatpush1.msra.mxu0 %v4090
        %4092 = vmatprep.subr.mxu0 0.0
        %v4093 = vand.u32 %v3662, 4294901760
        %v4094 = vsub.f32 %v3662, %v4093
        %v4095 = vand.u32 %v4094, 4294901760
        %v4096 = vsub.f32 %v4094, %v4095
        %v4097 = vand.u32 %v4096, 4294901760
        %4098 = vmatpush1.msra.mxu0 %v4097
        %4099 = vmatprep.subr.mxu0 0.0
        %v4100 = vand.u32 %v3663, 4294901760
        %v4101 = vsub.f32 %v3663, %v4100
        %v4102 = vand.u32 %v4101, 4294901760
        %v4103 = vsub.f32 %v4101, %v4102
        %v4104 = vand.u32 %v4103, 4294901760
        %4105 = vmatpush1.msra.mxu0 %v4104
        %4106 = vmatprep.subr.mxu0 0.0
        %v4107 = vand.u32 %v3664, 4294901760
        %v4108 = vsub.f32 %v3664, %v4107
        %v4109 = vand.u32 %v4108, 4294901760
        %v4110 = vsub.f32 %v4108, %v4109
        %v4111 = vand.u32 %v4110, 4294901760
        %4112 = vmatpush1.msra.mxu0 %v4111
        %4113 = vmatprep.subr.mxu0 0.0
        %v4114 = vand.u32 %v3665, 4294901760
        %v4115 = vsub.f32 %v3665, %v4114
        %v4116 = vand.u32 %v4115, 4294901760
        %v4117 = vsub.f32 %v4115, %v4116
        %v4118 = vand.u32 %v4117, 4294901760
        %4119 = vmatpush1.msra.mxu0 %v4118
        %4120 = vmatprep.subr.mxu0 0.0
        %v4121 = vand.u32 %v3666, 4294901760
        %v4122 = vsub.f32 %v3666, %v4121
        %v4123 = vand.u32 %v4122, 4294901760
        %v4124 = vsub.f32 %v4122, %v4123
        %v4125 = vand.u32 %v4124, 4294901760
        %4126 = vmatpush1.msra.mxu0 %v4125
        %4127 = vmatprep.subr.mxu0 0.0
        %v4128 = vand.u32 %v3667, 4294901760
        %v4129 = vsub.f32 %v3667, %v4128
        %v4130 = vand.u32 %v4129, 4294901760
        %v4131 = vsub.f32 %v4129, %v4130
        %v4132 = vand.u32 %v4131, 4294901760
        %4133 = vmatpush1.msra.mxu0 %v4132
        %4134 = vmatprep.subr.mxu0 0.0
        %v4135 = vand.u32 %v3668, 4294901760
        %v4136 = vsub.f32 %v3668, %v4135
        %v4137 = vand.u32 %v4136, 4294901760
        %v4138 = vsub.f32 %v4136, %v4137
        %v4139 = vand.u32 %v4138, 4294901760
        %4140 = vmatpush1.msra.mxu0 %v4139
        %4141 = vmatprep.subr.mxu0 0.0
        %v4142 = vand.u32 %v3669, 4294901760
        %v4143 = vsub.f32 %v3669, %v4142
        %v4144 = vand.u32 %v4143, 4294901760
        %v4145 = vsub.f32 %v4143, %v4144
        %v4146 = vand.u32 %v4145, 4294901760
        %4147 = vmatpush1.msra.mxu0 %v4146
        %4148 = vmatprep.subr.mxu0 0.0
        %v4149 = vand.u32 %v3670, 4294901760
        %v4150 = vsub.f32 %v3670, %v4149
        %v4151 = vand.u32 %v4150, 4294901760
        %v4152 = vsub.f32 %v4150, %v4151
        %v4153 = vand.u32 %v4152, 4294901760
        %4154 = vmatpush1.msra.mxu0 %v4153
        %4155 = vmatprep.subr.mxu0 0.0
        %v4156 = vand.u32 %v3671, 4294901760
        %v4157 = vsub.f32 %v3671, %v4156
        %v4158 = vand.u32 %v4157, 4294901760
        %v4159 = vsub.f32 %v4157, %v4158
        %v4160 = vand.u32 %v4159, 4294901760
        %4161 = vmatpush1.msra.mxu0 %v4160
        %4162 = vmatprep.subr.mxu0 0.0
        %v4163 = vand.u32 %v3672, 4294901760
        %v4164 = vsub.f32 %v3672, %v4163
        %v4165 = vand.u32 %v4164, 4294901760
        %v4166 = vsub.f32 %v4164, %v4165
        %v4167 = vand.u32 %v4166, 4294901760
        %4168 = vmatpush1.msra.mxu0 %v4167
        %4169 = vmatprep.subr.mxu0 0.0
        %v4170 = vand.u32 %v3673, 4294901760
        %v4171 = vsub.f32 %v3673, %v4170
        %v4172 = vand.u32 %v4171, 4294901760
        %v4173 = vsub.f32 %v4171, %v4172
        %v4174 = vand.u32 %v4173, 4294901760
        %4175 = vmatpush1.msra.mxu0 %v4174
        %4176 = vmatprep.subr.mxu0 0.0
        %v4177 = vand.u32 %v3674, 4294901760
        %v4178 = vsub.f32 %v3674, %v4177
        %v4179 = vand.u32 %v4178, 4294901760
        %v4180 = vsub.f32 %v4178, %v4179
        %v4181 = vand.u32 %v4180, 4294901760
        %4182 = vmatpush1.msra.mxu0 %v4181
        %4183 = vmatprep.subr.mxu0 0.0
        %v4184 = vand.u32 %v3675, 4294901760
        %v4185 = vsub.f32 %v3675, %v4184
        %v4186 = vand.u32 %v4185, 4294901760
        %v4187 = vsub.f32 %v4185, %v4186
        %v4188 = vand.u32 %v4187, 4294901760
        %4189 = vmatpush1.msra.mxu0 %v4188
        %4190 = vmatprep.subr.mxu0 0.0
        %v4191 = vand.u32 %v3676, 4294901760
        %v4192 = vsub.f32 %v3676, %v4191
        %v4193 = vand.u32 %v4192, 4294901760
        %v4194 = vsub.f32 %v4192, %v4193
        %v4195 = vand.u32 %v4194, 4294901760
        %4196 = vmatpush1.msra.mxu0 %v4195
        %4197 = vmatprep.subr.mxu0 0.0
        %v4198 = vand.u32 %v3677, 4294901760
        %v4199 = vsub.f32 %v3677, %v4198
        %v4200 = vand.u32 %v4199, 4294901760
        %v4201 = vsub.f32 %v4199, %v4200
        %v4202 = vand.u32 %v4201, 4294901760
        %4203 = vmatpush1.msra.mxu0 %v4202
        %4204 = vmatprep.subr.mxu0 0.0
        %v4205 = vand.u32 %v3678, 4294901760
        %v4206 = vsub.f32 %v3678, %v4205
        %v4207 = vand.u32 %v4206, 4294901760
        %v4208 = vsub.f32 %v4206, %v4207
        %v4209 = vand.u32 %v4208, 4294901760
        %4210 = vmatpush1.msra.mxu0 %v4209
        %4211 = vmatprep.subr.mxu0 0.0
        %v4212 = vand.u32 %v3679, 4294901760
        %v4213 = vsub.f32 %v3679, %v4212
        %v4214 = vand.u32 %v4213, 4294901760
        %v4215 = vsub.f32 %v4213, %v4214
        %v4216 = vand.u32 %v4215, 4294901760
        %4217 = vmatpush1.msra.mxu0 %v4216
        %4218 = vmatprep.subr.mxu0 0.0
        %v4219 = vand.u32 %v3680, 4294901760
        %v4220 = vsub.f32 %v3680, %v4219
        %v4221 = vand.u32 %v4220, 4294901760
        %v4222 = vsub.f32 %v4220, %v4221
        %v4223 = vand.u32 %v4222, 4294901760
        %4224 = vmatpush1.msra.mxu0 %v4223
        %4225 = vmatprep.subr.mxu0 0.0
        %v4226 = vand.u32 %v3681, 4294901760
        %v4227 = vsub.f32 %v3681, %v4226
        %v4228 = vand.u32 %v4227, 4294901760
        %v4229 = vsub.f32 %v4227, %v4228
        %v4230 = vand.u32 %v4229, 4294901760
        %4231 = vmatpush1.msra.mxu0 %v4230
        %4232 = vmatprep.subr.mxu0 0.0
        %v4233 = vand.u32 %v3682, 4294901760
        %v4234 = vsub.f32 %v3682, %v4233
        %v4235 = vand.u32 %v4234, 4294901760
        %v4236 = vsub.f32 %v4234, %v4235
        %v4237 = vand.u32 %v4236, 4294901760
        %4238 = vmatpush1.msra.mxu0 %v4237
        %4239 = vmatprep.subr.mxu0 0.0
        %v4240 = vand.u32 %v3683, 4294901760
        %v4241 = vsub.f32 %v3683, %v4240
        %v4242 = vand.u32 %v4241, 4294901760
        %v4243 = vsub.f32 %v4241, %v4242
        %v4244 = vand.u32 %v4243, 4294901760
        %4245 = vmatpush1.msra.mxu0 %v4244
        %4246 = vmatprep.subr.mxu0 0.0
        %v4247 = vand.u32 %v3684, 4294901760
        %v4248 = vsub.f32 %v3684, %v4247
        %v4249 = vand.u32 %v4248, 4294901760
        %v4250 = vsub.f32 %v4248, %v4249
        %v4251 = vand.u32 %v4250, 4294901760
        %4252 = vmatpush1.msra.mxu0 %v4251
        %v4253 = vand.u32 %v3622, 4294901760
        %4254 = vmatprep.mubr.f32.mxu0 %v4253
        %v4255 = vand.u32 %v3621, 4294901760
        %4256 = vmatmul.mubr.f32.gmra.mrb[0].mxu0 %v4255
        %v4257 = vpop.f32.mrb[0].mxu0
        %v4258 = vadd.f32 %v3801, %v4257
        %v4259 = vpop.f32.mrb[0].mxu0
        %v4260 = vand.u32 %v3624, 4294901760
        %4261 = vmatprep.mubr.f32.mxu0 %v4260
        %v4262 = vand.u32 %v3623, 4294901760
        %4263 = vmatmul.mubr.f32.gmra.mrb[0].mxu0 %v4262
        %v4264 = vpop.f32.mrb[0].mxu0
        %v4265 = vadd.f32 %v3816, %v4264
        %v4266 = vpop.f32.mrb[0].mxu0
        %v4267 = vand.u32 %v3626, 4294901760
        %4268 = vmatprep.mubr.f32.mxu0 %v4267
        %v4269 = vand.u32 %v3625, 4294901760
        %4270 = vmatmul.mubr.f32.gmra.mrb[0].mxu0 %v4269
        %v4271 = vpop.f32.mrb[0].mxu0
        %v4272 = vadd.f32 %v3831, %v4271
        %v4273 = vpop.f32.mrb[0].mxu0
        %v4274 = vand.u32 %v3628, 4294901760
        %4275 = vmatprep.mubr.f32.mxu0 %v4274
        %v4276 = vand.u32 %v3627, 4294901760
        %4277 = vmatmul.mubr.f32.gmra.mrb[0].mxu0 %v4276
        %v4278 = vpop.f32.mrb[0].mxu0
        %v4279 = vadd.f32 %v3846, %v4278
        %v4280 = vpop.f32.mrb[0].mxu0
        %v4281 = vand.u32 %v3630, 4294901760
        %4282 = vmatprep.mubr.f32.mxu0 %v4281
        %v4283 = vand.u32 %v3629, 4294901760
        %4284 = vmatmul.mubr.f32.gmra.mrb[0].mxu0 %v4283
        %v4285 = vpop.f32.mrb[0].mxu0
        %v4286 = vadd.f32 %v3861, %v4285
        %v4287 = vpop.f32.mrb[0].mxu0
        %v4288 = vand.u32 %v3632, 4294901760
        %4289 = vmatprep.mubr.f32.mxu0 %v4288
        %v4290 = vand.u32 %v3631, 4294901760
        %4291 = vmatmul.mubr.f32.gmra.mrb[0].mxu0 %v4290
        %v4292 = vpop.f32.mrb[0].mxu0
        %v4293 = vadd.f32 %v3876, %v4292
        %v4294 = vpop.f32.mrb[0].mxu0
        %v4295 = vand.u32 %v3634, 4294901760
        %4296 = vmatprep.mubr.f32.mxu0 %v4295
        %v4297 = vand.u32 %v3633, 4294901760
        %4298 = vmatmul.mubr.f32.gmra.mrb[0].mxu0 %v4297
        %v4299 = vpop.f32.mrb[0].mxu0
        %v4300 = vadd.f32 %v3891, %v4299
        %v4301 = vpop.f32.mrb[0].mxu0
        %v4302 = vand.u32 %v3636, 4294901760
        %4303 = vmatprep.mubr.f32.mxu0 %v4302
        %v4304 = vand.u32 %v3635, 4294901760
        %4305 = vmatmul.mubr.f32.gmra.mrb[0].mxu0 %v4304
        %v4306 = vpop.f32.mrb[0].mxu0
        %v4307 = vadd.f32 %v3906, %v4306
        %v4308 = vpop.f32.mrb[0].mxu0
        %v4309 = vand.u32 %v3638, 4294901760
        %4310 = vmatprep.mubr.f32.mxu0 %v4309
        %v4311 = vand.u32 %v3637, 4294901760
        %4312 = vmatmul.mubr.f32.gmra.mrb[0].mxu0 %v4311
        %v4313 = vpop.f32.mrb[0].mxu0
        %v4314 = vadd.f32 %v3921, %v4313
        %v4315 = vpop.f32.mrb[0].mxu0
        %v4316 = vand.u32 %v3640, 4294901760
        %4317 = vmatprep.mubr.f32.mxu0 %v4316
        %v4318 = vand.u32 %v3639, 4294901760
        %4319 = vmatmul.mubr.f32.gmra.mrb[0].mxu0 %v4318
        %v4320 = vpop.f32.mrb[0].mxu0
        %v4321 = vadd.f32 %v3936, %v4320
        %v4322 = vpop.f32.mrb[0].mxu0
        %v4323 = vand.u32 %v3642, 4294901760
        %4324 = vmatprep.mubr.f32.mxu0 %v4323
        %v4325 = vand.u32 %v3641, 4294901760
        %4326 = vmatmul.mubr.f32.gmra.mrb[0].mxu0 %v4325
        %v4327 = vpop.f32.mrb[0].mxu0
        %v4328 = vadd.f32 %v3951, %v4327
        %v4329 = vpop.f32.mrb[0].mxu0
        %v4330 = vand.u32 %v3644, 4294901760
        %4331 = vmatprep.mubr.f32.mxu0 %v4330
        %v4332 = vand.u32 %v3643, 4294901760
        %4333 = vmatmul.mubr.f32.gmra.mrb[0].mxu0 %v4332
        %v4334 = vpop.f32.mrb[0].mxu0
        %v4335 = vadd.f32 %v3966, %v4334
        %v4336 = vpop.f32.mrb[0].mxu0
        %v4337 = vand.u32 %v3646, 4294901760
        %4338 = vmatprep.mubr.f32.mxu0 %v4337
        %v4339 = vand.u32 %v3645, 4294901760
        %4340 = vmatmul.mubr.f32.gmra.mrb[0].mxu0 %v4339
        %v4341 = vpop.f32.mrb[0].mxu0
        %v4342 = vadd.f32 %v3981, %v4341
        %v4343 = vpop.f32.mrb[0].mxu0
        %v4344 = vand.u32 %v3648, 4294901760
        %4345 = vmatprep.mubr.f32.mxu0 %v4344
        %v4346 = vand.u32 %v3647, 4294901760
        %4347 = vmatmul.mubr.f32.gmra.mrb[0].mxu0 %v4346
        %v4348 = vpop.f32.mrb[0].mxu0
        %v4349 = vadd.f32 %v3996, %v4348
        %v4350 = vpop.f32.mrb[0].mxu0
        %v4351 = vand.u32 %v3650, 4294901760
        %4352 = vmatprep.mubr.f32.mxu0 %v4351
        %v4353 = vand.u32 %v3649, 4294901760
        %4354 = vmatmul.mubr.f32.gmra.mrb[0].mxu0 %v4353
        %v4355 = vpop.f32.mrb[0].mxu0
        %v4356 = vadd.f32 %v4011, %v4355
        %v4357 = vpop.f32.mrb[0].mxu0
        %v4358 = vand.u32 %v3652, 4294901760
        %4359 = vmatprep.mubr.f32.mxu0 %v4358
        %v4360 = vand.u32 %v3651, 4294901760
        %4361 = vmatmul.mubr.f32.gmra.mrb[0].mxu0 %v4360
        %v4362 = vpop.f32.mrb[0].mxu0
        %v4363 = vadd.f32 %v4026, %v4362
        %v4364 = vpop.f32.mrb[0].mxu0
        %4365 = vdwg.mxu0
        %4366 = vmatprep.subr.mxu0 0.0
        %v4367 = vand.u32 %v3653, 4294901760
        %v4368 = vsub.f32 %v3653, %v4367
        %4369 = vmatpush1.msra.mxu0 %v4368
        %4370 = vmatprep.subr.mxu0 0.0
        %v4371 = vand.u32 %v3654, 4294901760
        %v4372 = vsub.f32 %v3654, %v4371
        %4373 = vmatpush1.msra.mxu0 %v4372
        %4374 = vmatprep.subr.mxu0 0.0
        %v4375 = vand.u32 %v3655, 4294901760
        %v4376 = vsub.f32 %v3655, %v4375
        %4377 = vmatpush1.msra.mxu0 %v4376
        %4378 = vmatprep.subr.mxu0 0.0
        %v4379 = vand.u32 %v3656, 4294901760
        %v4380 = vsub.f32 %v3656, %v4379
        %4381 = vmatpush1.msra.mxu0 %v4380
        %4382 = vmatprep.subr.mxu0 0.0
        %v4383 = vand.u32 %v3657, 4294901760
        %v4384 = vsub.f32 %v3657, %v4383
        %4385 = vmatpush1.msra.mxu0 %v4384
        %4386 = vmatprep.subr.mxu0 0.0
        %v4387 = vand.u32 %v3658, 4294901760
        %v4388 = vsub.f32 %v3658, %v4387
        %4389 = vmatpush1.msra.mxu0 %v4388
        %4390 = vmatprep.subr.mxu0 0.0
        %v4391 = vand.u32 %v3659, 4294901760
        %v4392 = vsub.f32 %v3659, %v4391
        %4393 = vmatpush1.msra.mxu0 %v4392
        %4394 = vmatprep.subr.mxu0 0.0
        %v4395 = vand.u32 %v3660, 4294901760
        %v4396 = vsub.f32 %v3660, %v4395
        %4397 = vmatpush1.msra.mxu0 %v4396
        %4398 = vmatprep.subr.mxu0 0.0
        %v4399 = vand.u32 %v3661, 4294901760
        %v4400 = vsub.f32 %v3661, %v4399
        %4401 = vmatpush1.msra.mxu0 %v4400
        %4402 = vmatprep.subr.mxu0 0.0
        %v4403 = vand.u32 %v3662, 4294901760
        %v4404 = vsub.f32 %v3662, %v4403
        %4405 = vmatpush1.msra.mxu0 %v4404
        %4406 = vmatprep.subr.mxu0 0.0
        %v4407 = vand.u32 %v3663, 4294901760
        %v4408 = vsub.f32 %v3663, %v4407
        %4409 = vmatpush1.msra.mxu0 %v4408
        %4410 = vmatprep.subr.mxu0 0.0
        %v4411 = vand.u32 %v3664, 4294901760
        %v4412 = vsub.f32 %v3664, %v4411
        %4413 = vmatpush1.msra.mxu0 %v4412
        %4414 = vmatprep.subr.mxu0 0.0
        %v4415 = vand.u32 %v3665, 4294901760
        %v4416 = vsub.f32 %v3665, %v4415
        %4417 = vmatpush1.msra.mxu0 %v4416
        %4418 = vmatprep.subr.mxu0 0.0
        %v4419 = vand.u32 %v3666, 4294901760
        %v4420 = vsub.f32 %v3666, %v4419
        %4421 = vmatpush1.msra.mxu0 %v4420
        %4422 = vmatprep.subr.mxu0 0.0
        %v4423 = vand.u32 %v3667, 4294901760
        %v4424 = vsub.f32 %v3667, %v4423
        %4425 = vmatpush1.msra.mxu0 %v4424
        %4426 = vmatprep.subr.mxu0 0.0
        %v4427 = vand.u32 %v3668, 4294901760
        %v4428 = vsub.f32 %v3668, %v4427
        %4429 = vmatpush1.msra.mxu0 %v4428
        %4430 = vmatprep.subr.mxu0 0.0
        %v4431 = vand.u32 %v3669, 4294901760
        %v4432 = vsub.f32 %v3669, %v4431
        %4433 = vmatpush1.msra.mxu0 %v4432
        %4434 = vmatprep.subr.mxu0 0.0
        %v4435 = vand.u32 %v3670, 4294901760
        %v4436 = vsub.f32 %v3670, %v4435
        %4437 = vmatpush1.msra.mxu0 %v4436
        %4438 = vmatprep.subr.mxu0 0.0
        %v4439 = vand.u32 %v3671, 4294901760
        %v4440 = vsub.f32 %v3671, %v4439
        %4441 = vmatpush1.msra.mxu0 %v4440
        %4442 = vmatprep.subr.mxu0 0.0
        %v4443 = vand.u32 %v3672, 4294901760
        %v4444 = vsub.f32 %v3672, %v4443
        %4445 = vmatpush1.msra.mxu0 %v4444
        %4446 = vmatprep.subr.mxu0 0.0
        %v4447 = vand.u32 %v3673, 4294901760
        %v4448 = vsub.f32 %v3673, %v4447
        %4449 = vmatpush1.msra.mxu0 %v4448
        %4450 = vmatprep.subr.mxu0 0.0
        %v4451 = vand.u32 %v3674, 4294901760
        %v4452 = vsub.f32 %v3674, %v4451
        %4453 = vmatpush1.msra.mxu0 %v4452
        %4454 = vmatprep.subr.mxu0 0.0
        %v4455 = vand.u32 %v3675, 4294901760
        %v4456 = vsub.f32 %v3675, %v4455
        %4457 = vmatpush1.msra.mxu0 %v4456
        %4458 = vmatprep.subr.mxu0 0.0
        %v4459 = vand.u32 %v3676, 4294901760
        %v4460 = vsub.f32 %v3676, %v4459
        %4461 = vmatpush1.msra.mxu0 %v4460
        %4462 = vmatprep.subr.mxu0 0.0
        %v4463 = vand.u32 %v3677, 4294901760
        %v4464 = vsub.f32 %v3677, %v4463
        %4465 = vmatpush1.msra.mxu0 %v4464
        %4466 = vmatprep.subr.mxu0 0.0
        %v4467 = vand.u32 %v3678, 4294901760
        %v4468 = vsub.f32 %v3678, %v4467
        %4469 = vmatpush1.msra.mxu0 %v4468
        %4470 = vmatprep.subr.mxu0 0.0
        %v4471 = vand.u32 %v3679, 4294901760
        %v4472 = vsub.f32 %v3679, %v4471
        %4473 = vmatpush1.msra.mxu0 %v4472
        %4474 = vmatprep.subr.mxu0 0.0
        %v4475 = vand.u32 %v3680, 4294901760
        %v4476 = vsub.f32 %v3680, %v4475
        %4477 = vmatpush1.msra.mxu0 %v4476
        %4478 = vmatprep.subr.mxu0 0.0
        %v4479 = vand.u32 %v3681, 4294901760
        %v4480 = vsub.f32 %v3681, %v4479
        %4481 = vmatpush1.msra.mxu0 %v4480
        %4482 = vmatprep.subr.mxu0 0.0
        %v4483 = vand.u32 %v3682, 4294901760
        %v4484 = vsub.f32 %v3682, %v4483
        %4485 = vmatpush1.msra.mxu0 %v4484
        %4486 = vmatprep.subr.mxu0 0.0
        %v4487 = vand.u32 %v3683, 4294901760
        %v4488 = vsub.f32 %v3683, %v4487
        %4489 = vmatpush1.msra.mxu0 %v4488
        %4490 = vmatprep.subr.mxu0 0.0
        %v4491 = vand.u32 %v3684, 4294901760
        %v4492 = vsub.f32 %v3684, %v4491
        %4493 = vmatpush1.msra.mxu0 %v4492
        %v4494 = vand.u32 %v3622, 4294901760
        %v4495 = vsub.f32 %v3622, %v4494
        %4496 = vmatprep.mubr.f32.mxu0 %v4495
        %v4497 = vand.u32 %v3621, 4294901760
        %v4498 = vsub.f32 %v3621, %v4497
        %4499 = vmatmul.mubr.f32.gmra.mrb[0].mxu0 %v4498
        %v4500 = vpop.f32.mrb[0].mxu0
        %v4501 = vadd.f32 %v4258, %v4500
        %v4502 = vpop.f32.mrb[0].mxu0
        %v4503 = vand.u32 %v3624, 4294901760
        %v4504 = vsub.f32 %v3624, %v4503
        %4505 = vmatprep.mubr.f32.mxu0 %v4504
        %v4506 = vand.u32 %v3623, 4294901760
        %v4507 = vsub.f32 %v3623, %v4506
        %4508 = vmatmul.mubr.f32.gmra.mrb[0].mxu0 %v4507
        %v4509 = vpop.f32.mrb[0].mxu0
        %v4510 = vadd.f32 %v4265, %v4509
        %v4511 = vpop.f32.mrb[0].mxu0
        %v4512 = vand.u32 %v3626, 4294901760
        %v4513 = vsub.f32 %v3626, %v4512
        %4514 = vmatprep.mubr.f32.mxu0 %v4513
        %v4515 = vand.u32 %v3625, 4294901760
        %v4516 = vsub.f32 %v3625, %v4515
        %4517 = vmatmul.mubr.f32.gmra.mrb[0].mxu0 %v4516
        %v4518 = vpop.f32.mrb[0].mxu0
        %v4519 = vadd.f32 %v4272, %v4518
        %v4520 = vpop.f32.mrb[0].mxu0
        %v4521 = vand.u32 %v3628, 4294901760
        %v4522 = vsub.f32 %v3628, %v4521
        %4523 = vmatprep.mubr.f32.mxu0 %v4522
        %v4524 = vand.u32 %v3627, 4294901760
        %v4525 = vsub.f32 %v3627, %v4524
        %4526 = vmatmul.mubr.f32.gmra.mrb[0].mxu0 %v4525
        %v4527 = vpop.f32.mrb[0].mxu0
        %v4528 = vadd.f32 %v4279, %v4527
        %v4529 = vpop.f32.mrb[0].mxu0
        %v4530 = vand.u32 %v3630, 4294901760
        %v4531 = vsub.f32 %v3630, %v4530
        %4532 = vmatprep.mubr.f32.mxu0 %v4531
        %v4533 = vand.u32 %v3629, 4294901760
        %v4534 = vsub.f32 %v3629, %v4533
        %4535 = vmatmul.mubr.f32.gmra.mrb[0].mxu0 %v4534
        %v4536 = vpop.f32.mrb[0].mxu0
        %v4537 = vadd.f32 %v4286, %v4536
        %v4538 = vpop.f32.mrb[0].mxu0
        %v4539 = vand.u32 %v3632, 4294901760
        %v4540 = vsub.f32 %v3632, %v4539
        %4541 = vmatprep.mubr.f32.mxu0 %v4540
        %v4542 = vand.u32 %v3631, 4294901760
        %v4543 = vsub.f32 %v3631, %v4542
        %4544 = vmatmul.mubr.f32.gmra.mrb[0].mxu0 %v4543
        %v4545 = vpop.f32.mrb[0].mxu0
        %v4546 = vadd.f32 %v4293, %v4545
        %v4547 = vpop.f32.mrb[0].mxu0
        %v4548 = vand.u32 %v3634, 4294901760
        %v4549 = vsub.f32 %v3634, %v4548
        %4550 = vmatprep.mubr.f32.mxu0 %v4549
        %v4551 = vand.u32 %v3633, 4294901760
        %v4552 = vsub.f32 %v3633, %v4551
        %4553 = vmatmul.mubr.f32.gmra.mrb[0].mxu0 %v4552
        %v4554 = vpop.f32.mrb[0].mxu0
        %v4555 = vadd.f32 %v4300, %v4554
        %v4556 = vpop.f32.mrb[0].mxu0
        %v4557 = vand.u32 %v3636, 4294901760
        %v4558 = vsub.f32 %v3636, %v4557
        %4559 = vmatprep.mubr.f32.mxu0 %v4558
        %v4560 = vand.u32 %v3635, 4294901760
        %v4561 = vsub.f32 %v3635, %v4560
        %4562 = vmatmul.mubr.f32.gmra.mrb[0].mxu0 %v4561
        %v4563 = vpop.f32.mrb[0].mxu0
        %v4564 = vadd.f32 %v4307, %v4563
        %v4565 = vpop.f32.mrb[0].mxu0
        %v4566 = vand.u32 %v3638, 4294901760
        %v4567 = vsub.f32 %v3638, %v4566
        %4568 = vmatprep.mubr.f32.mxu0 %v4567
        %v4569 = vand.u32 %v3637, 4294901760
        %v4570 = vsub.f32 %v3637, %v4569
        %4571 = vmatmul.mubr.f32.gmra.mrb[0].mxu0 %v4570
        %v4572 = vpop.f32.mrb[0].mxu0
        %v4573 = vadd.f32 %v4314, %v4572
        %v4574 = vpop.f32.mrb[0].mxu0
        %v4575 = vand.u32 %v3640, 4294901760
        %v4576 = vsub.f32 %v3640, %v4575
        %4577 = vmatprep.mubr.f32.mxu0 %v4576
        %v4578 = vand.u32 %v3639, 4294901760
        %v4579 = vsub.f32 %v3639, %v4578
        %4580 = vmatmul.mubr.f32.gmra.mrb[0].mxu0 %v4579
        %v4581 = vpop.f32.mrb[0].mxu0
        %v4582 = vadd.f32 %v4321, %v4581
        %v4583 = vpop.f32.mrb[0].mxu0
        %v4584 = vand.u32 %v3642, 4294901760
        %v4585 = vsub.f32 %v3642, %v4584
        %4586 = vmatprep.mubr.f32.mxu0 %v4585
        %v4587 = vand.u32 %v3641, 4294901760
        %v4588 = vsub.f32 %v3641, %v4587
        %4589 = vmatmul.mubr.f32.gmra.mrb[0].mxu0 %v4588
        %v4590 = vpop.f32.mrb[0].mxu0
        %v4591 = vadd.f32 %v4328, %v4590
        %v4592 = vpop.f32.mrb[0].mxu0
        %v4593 = vand.u32 %v3644, 4294901760
        %v4594 = vsub.f32 %v3644, %v4593
        %4595 = vmatprep.mubr.f32.mxu0 %v4594
        %v4596 = vand.u32 %v3643, 4294901760
        %v4597 = vsub.f32 %v3643, %v4596
        %4598 = vmatmul.mubr.f32.gmra.mrb[0].mxu0 %v4597
        %v4599 = vpop.f32.mrb[0].mxu0
        %v4600 = vadd.f32 %v4335, %v4599
        %v4601 = vpop.f32.mrb[0].mxu0
        %v4602 = vand.u32 %v3646, 4294901760
        %v4603 = vsub.f32 %v3646, %v4602
        %4604 = vmatprep.mubr.f32.mxu0 %v4603
        %v4605 = vand.u32 %v3645, 4294901760
        %v4606 = vsub.f32 %v3645, %v4605
        %4607 = vmatmul.mubr.f32.gmra.mrb[0].mxu0 %v4606
        %v4608 = vpop.f32.mrb[0].mxu0
        %v4609 = vadd.f32 %v4342, %v4608
        %v4610 = vpop.f32.mrb[0].mxu0
        %v4611 = vand.u32 %v3648, 4294901760
        %v4612 = vsub.f32 %v3648, %v4611
        %4613 = vmatprep.mubr.f32.mxu0 %v4612
        %v4614 = vand.u32 %v3647, 4294901760
        %v4615 = vsub.f32 %v3647, %v4614
        %4616 = vmatmul.mubr.f32.gmra.mrb[0].mxu0 %v4615
        %v4617 = vpop.f32.mrb[0].mxu0
        %v4618 = vadd.f32 %v4349, %v4617
        %v4619 = vpop.f32.mrb[0].mxu0
        %v4620 = vand.u32 %v3650, 4294901760
        %v4621 = vsub.f32 %v3650, %v4620
        %4622 = vmatprep.mubr.f32.mxu0 %v4621
        %v4623 = vand.u32 %v3649, 4294901760
        %v4624 = vsub.f32 %v3649, %v4623
        %4625 = vmatmul.mubr.f32.gmra.mrb[0].mxu0 %v4624
        %v4626 = vpop.f32.mrb[0].mxu0
        %v4627 = vadd.f32 %v4356, %v4626
        %v4628 = vpop.f32.mrb[0].mxu0
        %v4629 = vand.u32 %v3652, 4294901760
        %v4630 = vsub.f32 %v3652, %v4629
        %4631 = vmatprep.mubr.f32.mxu0 %v4630
        %v4632 = vand.u32 %v3651, 4294901760
        %v4633 = vsub.f32 %v3651, %v4632
        %4634 = vmatmul.mubr.f32.gmra.mrb[0].mxu0 %v4633
        %v4635 = vpop.f32.mrb[0].mxu0
        %v4636 = vadd.f32 %v4363, %v4635
        %v4637 = vpop.f32.mrb[0].mxu0
        %4638 = vdwg.mxu0
        %4639 = vmatprep.subr.mxu0 0.0
        %v4640 = vand.u32 %v3653, 4294901760
        %4641 = vmatpush1.msra.mxu0 %v4640
        %4642 = vmatprep.subr.mxu0 0.0
        %v4643 = vand.u32 %v3654, 4294901760
        %4644 = vmatpush1.msra.mxu0 %v4643
        %4645 = vmatprep.subr.mxu0 0.0
        %v4646 = vand.u32 %v3655, 4294901760
        %4647 = vmatpush1.msra.mxu0 %v4646
        %4648 = vmatprep.subr.mxu0 0.0
        %v4649 = vand.u32 %v3656, 4294901760
        %4650 = vmatpush1.msra.mxu0 %v4649
        %4651 = vmatprep.subr.mxu0 0.0
        %v4652 = vand.u32 %v3657, 4294901760
        %4653 = vmatpush1.msra.mxu0 %v4652
        %4654 = vmatprep.subr.mxu0 0.0
        %v4655 = vand.u32 %v3658, 4294901760
        %4656 = vmatpush1.msra.mxu0 %v4655
        %4657 = vmatprep.subr.mxu0 0.0
        %v4658 = vand.u32 %v3659, 4294901760
        %4659 = vmatpush1.msra.mxu0 %v4658
        %4660 = vmatprep.subr.mxu0 0.0
        %v4661 = vand.u32 %v3660, 4294901760
        %4662 = vmatpush1.msra.mxu0 %v4661
        %4663 = vmatprep.subr.mxu0 0.0
        %v4664 = vand.u32 %v3661, 4294901760
        %4665 = vmatpush1.msra.mxu0 %v4664
        %4666 = vmatprep.subr.mxu0 0.0
        %v4667 = vand.u32 %v3662, 4294901760
        %4668 = vmatpush1.msra.mxu0 %v4667
        %4669 = vmatprep.subr.mxu0 0.0
        %v4670 = vand.u32 %v3663, 4294901760
        %4671 = vmatpush1.msra.mxu0 %v4670
        %4672 = vmatprep.subr.mxu0 0.0
        %v4673 = vand.u32 %v3664, 4294901760
        %4674 = vmatpush1.msra.mxu0 %v4673
        %4675 = vmatprep.subr.mxu0 0.0
        %v4676 = vand.u32 %v3665, 4294901760
        %4677 = vmatpush1.msra.mxu0 %v4676
        %4678 = vmatprep.subr.mxu0 0.0
        %v4679 = vand.u32 %v3666, 4294901760
        %4680 = vmatpush1.msra.mxu0 %v4679
        %4681 = vmatprep.subr.mxu0 0.0
        %v4682 = vand.u32 %v3667, 4294901760
        %4683 = vmatpush1.msra.mxu0 %v4682
        %4684 = vmatprep.subr.mxu0 0.0
        %v4685 = vand.u32 %v3668, 4294901760
        %4686 = vmatpush1.msra.mxu0 %v4685
        %4687 = vmatprep.subr.mxu0 0.0
        %v4688 = vand.u32 %v3669, 4294901760
        %4689 = vmatpush1.msra.mxu0 %v4688
        %4690 = vmatprep.subr.mxu0 0.0
        %v4691 = vand.u32 %v3670, 4294901760
        %4692 = vmatpush1.msra.mxu0 %v4691
        %4693 = vmatprep.subr.mxu0 0.0
        %v4694 = vand.u32 %v3671, 4294901760
        %4695 = vmatpush1.msra.mxu0 %v4694
        %4696 = vmatprep.subr.mxu0 0.0
        %v4697 = vand.u32 %v3672, 4294901760
        %4698 = vmatpush1.msra.mxu0 %v4697
        %4699 = vmatprep.subr.mxu0 0.0
        %v4700 = vand.u32 %v3673, 4294901760
        %4701 = vmatpush1.msra.mxu0 %v4700
        %4702 = vmatprep.subr.mxu0 0.0
        %v4703 = vand.u32 %v3674, 4294901760
        %4704 = vmatpush1.msra.mxu0 %v4703
        %4705 = vmatprep.subr.mxu0 0.0
        %v4706 = vand.u32 %v3675, 4294901760
        %4707 = vmatpush1.msra.mxu0 %v4706
        %4708 = vmatprep.subr.mxu0 0.0
        %v4709 = vand.u32 %v3676, 4294901760
        %4710 = vmatpush1.msra.mxu0 %v4709
        %4711 = vmatprep.subr.mxu0 0.0
        %v4712 = vand.u32 %v3677, 4294901760
        %4713 = vmatpush1.msra.mxu0 %v4712
        %4714 = vmatprep.subr.mxu0 0.0
        %v4715 = vand.u32 %v3678, 4294901760
        %4716 = vmatpush1.msra.mxu0 %v4715
        %4717 = vmatprep.subr.mxu0 0.0
        %v4718 = vand.u32 %v3679, 4294901760
        %4719 = vmatpush1.msra.mxu0 %v4718
        %4720 = vmatprep.subr.mxu0 0.0
        %v4721 = vand.u32 %v3680, 4294901760
        %4722 = vmatpush1.msra.mxu0 %v4721
        %4723 = vmatprep.subr.mxu0 0.0
        %v4724 = vand.u32 %v3681, 4294901760
        %4725 = vmatpush1.msra.mxu0 %v4724
        %4726 = vmatprep.subr.mxu0 0.0
        %v4727 = vand.u32 %v3682, 4294901760
        %4728 = vmatpush1.msra.mxu0 %v4727
        %4729 = vmatprep.subr.mxu0 0.0
        %v4730 = vand.u32 %v3683, 4294901760
        %4731 = vmatpush1.msra.mxu0 %v4730
        %4732 = vmatprep.subr.mxu0 0.0
        %v4733 = vand.u32 %v3684, 4294901760
        %4734 = vmatpush1.msra.mxu0 %v4733
        %v4735 = vand.u32 %v3622, 4294901760
        %v4736 = vsub.f32 %v3622, %v4735
        %v4737 = vand.u32 %v4736, 4294901760
        %4738 = vmatprep.mubr.f32.mxu0 %v4737
        %v4739 = vand.u32 %v3621, 4294901760
        %v4740 = vsub.f32 %v3621, %v4739
        %v4741 = vand.u32 %v4740, 4294901760
        %4742 = vmatmul.mubr.f32.gmra.mrb[0].mxu0 %v4741
        %v4743 = vpop.f32.mrb[0].mxu0
        %v4744 = vadd.f32 %v4501, %v4743
        %v4745 = vpop.f32.mrb[0].mxu0
        %v4746 = vand.u32 %v3624, 4294901760
        %v4747 = vsub.f32 %v3624, %v4746
        %v4748 = vand.u32 %v4747, 4294901760
        %4749 = vmatprep.mubr.f32.mxu0 %v4748
        %v4750 = vand.u32 %v3623, 4294901760
        %v4751 = vsub.f32 %v3623, %v4750
        %v4752 = vand.u32 %v4751, 4294901760
        %4753 = vmatmul.mubr.f32.gmra.mrb[0].mxu0 %v4752
        %v4754 = vpop.f32.mrb[0].mxu0
        %v4755 = vadd.f32 %v4510, %v4754
        %v4756 = vpop.f32.mrb[0].mxu0
        %v4757 = vand.u32 %v3626, 4294901760
        %v4758 = vsub.f32 %v3626, %v4757
        %v4759 = vand.u32 %v4758, 4294901760
        %4760 = vmatprep.mubr.f32.mxu0 %v4759
        %v4761 = vand.u32 %v3625, 4294901760
        %v4762 = vsub.f32 %v3625, %v4761
        %v4763 = vand.u32 %v4762, 4294901760
        %4764 = vmatmul.mubr.f32.gmra.mrb[0].mxu0 %v4763
        %v4765 = vpop.f32.mrb[0].mxu0
        %v4766 = vadd.f32 %v4519, %v4765
        %v4767 = vpop.f32.mrb[0].mxu0
        %v4768 = vand.u32 %v3628, 4294901760
        %v4769 = vsub.f32 %v3628, %v4768
        %v4770 = vand.u32 %v4769, 4294901760
        %4771 = vmatprep.mubr.f32.mxu0 %v4770
        %v4772 = vand.u32 %v3627, 4294901760
        %v4773 = vsub.f32 %v3627, %v4772
        %v4774 = vand.u32 %v4773, 4294901760
        %4775 = vmatmul.mubr.f32.gmra.mrb[0].mxu0 %v4774
        %v4776 = vpop.f32.mrb[0].mxu0
        %v4777 = vadd.f32 %v4528, %v4776
        %v4778 = vpop.f32.mrb[0].mxu0
        %v4779 = vand.u32 %v3630, 4294901760
        %v4780 = vsub.f32 %v3630, %v4779
        %v4781 = vand.u32 %v4780, 4294901760
        %4782 = vmatprep.mubr.f32.mxu0 %v4781
        %v4783 = vand.u32 %v3629, 4294901760
        %v4784 = vsub.f32 %v3629, %v4783
        %v4785 = vand.u32 %v4784, 4294901760
        %4786 = vmatmul.mubr.f32.gmra.mrb[0].mxu0 %v4785
        %v4787 = vpop.f32.mrb[0].mxu0
        %v4788 = vadd.f32 %v4537, %v4787
        %v4789 = vpop.f32.mrb[0].mxu0
        %v4790 = vand.u32 %v3632, 4294901760
        %v4791 = vsub.f32 %v3632, %v4790
        %v4792 = vand.u32 %v4791, 4294901760
        %4793 = vmatprep.mubr.f32.mxu0 %v4792
        %v4794 = vand.u32 %v3631, 4294901760
        %v4795 = vsub.f32 %v3631, %v4794
        %v4796 = vand.u32 %v4795, 4294901760
        %4797 = vmatmul.mubr.f32.gmra.mrb[0].mxu0 %v4796
        %v4798 = vpop.f32.mrb[0].mxu0
        %v4799 = vadd.f32 %v4546, %v4798
        %v4800 = vpop.f32.mrb[0].mxu0
        %v4801 = vand.u32 %v3634, 4294901760
        %v4802 = vsub.f32 %v3634, %v4801
        %v4803 = vand.u32 %v4802, 4294901760
        %4804 = vmatprep.mubr.f32.mxu0 %v4803
        %v4805 = vand.u32 %v3633, 4294901760
        %v4806 = vsub.f32 %v3633, %v4805
        %v4807 = vand.u32 %v4806, 4294901760
        %4808 = vmatmul.mubr.f32.gmra.mrb[0].mxu0 %v4807
        %v4809 = vpop.f32.mrb[0].mxu0
        %v4810 = vadd.f32 %v4555, %v4809
        %v4811 = vpop.f32.mrb[0].mxu0
        %v4812 = vand.u32 %v3636, 4294901760
        %v4813 = vsub.f32 %v3636, %v4812
        %v4814 = vand.u32 %v4813, 4294901760
        %4815 = vmatprep.mubr.f32.mxu0 %v4814
        %v4816 = vand.u32 %v3635, 4294901760
        %v4817 = vsub.f32 %v3635, %v4816
        %v4818 = vand.u32 %v4817, 4294901760
        %4819 = vmatmul.mubr.f32.gmra.mrb[0].mxu0 %v4818
        %v4820 = vpop.f32.mrb[0].mxu0
        %v4821 = vadd.f32 %v4564, %v4820
        %v4822 = vpop.f32.mrb[0].mxu0
        %v4823 = vand.u32 %v3638, 4294901760
        %v4824 = vsub.f32 %v3638, %v4823
        %v4825 = vand.u32 %v4824, 4294901760
        %4826 = vmatprep.mubr.f32.mxu0 %v4825
        %v4827 = vand.u32 %v3637, 4294901760
        %v4828 = vsub.f32 %v3637, %v4827
        %v4829 = vand.u32 %v4828, 4294901760
        %4830 = vmatmul.mubr.f32.gmra.mrb[0].mxu0 %v4829
        %v4831 = vpop.f32.mrb[0].mxu0
        %v4832 = vadd.f32 %v4573, %v4831
        %v4833 = vpop.f32.mrb[0].mxu0
        %v4834 = vand.u32 %v3640, 4294901760
        %v4835 = vsub.f32 %v3640, %v4834
        %v4836 = vand.u32 %v4835, 4294901760
        %4837 = vmatprep.mubr.f32.mxu0 %v4836
        %v4838 = vand.u32 %v3639, 4294901760
        %v4839 = vsub.f32 %v3639, %v4838
        %v4840 = vand.u32 %v4839, 4294901760
        %4841 = vmatmul.mubr.f32.gmra.mrb[0].mxu0 %v4840
        %v4842 = vpop.f32.mrb[0].mxu0
        %v4843 = vadd.f32 %v4582, %v4842
        %v4844 = vpop.f32.mrb[0].mxu0
        %v4845 = vand.u32 %v3642, 4294901760
        %v4846 = vsub.f32 %v3642, %v4845
        %v4847 = vand.u32 %v4846, 4294901760
        %4848 = vmatprep.mubr.f32.mxu0 %v4847
        %v4849 = vand.u32 %v3641, 4294901760
        %v4850 = vsub.f32 %v3641, %v4849
        %v4851 = vand.u32 %v4850, 4294901760
        %4852 = vmatmul.mubr.f32.gmra.mrb[0].mxu0 %v4851
        %v4853 = vpop.f32.mrb[0].mxu0
        %v4854 = vadd.f32 %v4591, %v4853
        %v4855 = vpop.f32.mrb[0].mxu0
        %v4856 = vand.u32 %v3644, 4294901760
        %v4857 = vsub.f32 %v3644, %v4856
        %v4858 = vand.u32 %v4857, 4294901760
        %4859 = vmatprep.mubr.f32.mxu0 %v4858
        %v4860 = vand.u32 %v3643, 4294901760
        %v4861 = vsub.f32 %v3643, %v4860
        %v4862 = vand.u32 %v4861, 4294901760
        %4863 = vmatmul.mubr.f32.gmra.mrb[0].mxu0 %v4862
        %v4864 = vpop.f32.mrb[0].mxu0
        %v4865 = vadd.f32 %v4600, %v4864
        %v4866 = vpop.f32.mrb[0].mxu0
        %v4867 = vand.u32 %v3646, 4294901760
        %v4868 = vsub.f32 %v3646, %v4867
        %v4869 = vand.u32 %v4868, 4294901760
        %4870 = vmatprep.mubr.f32.mxu0 %v4869
        %v4871 = vand.u32 %v3645, 4294901760
        %v4872 = vsub.f32 %v3645, %v4871
        %v4873 = vand.u32 %v4872, 4294901760
        %4874 = vmatmul.mubr.f32.gmra.mrb[0].mxu0 %v4873
        %v4875 = vpop.f32.mrb[0].mxu0
        %v4876 = vadd.f32 %v4609, %v4875
        %v4877 = vpop.f32.mrb[0].mxu0
        %v4878 = vand.u32 %v3648, 4294901760
        %v4879 = vsub.f32 %v3648, %v4878
        %v4880 = vand.u32 %v4879, 4294901760
        %4881 = vmatprep.mubr.f32.mxu0 %v4880
        %v4882 = vand.u32 %v3647, 4294901760
        %v4883 = vsub.f32 %v3647, %v4882
        %v4884 = vand.u32 %v4883, 4294901760
        %4885 = vmatmul.mubr.f32.gmra.mrb[0].mxu0 %v4884
        %v4886 = vpop.f32.mrb[0].mxu0
        %v4887 = vadd.f32 %v4618, %v4886
        %v4888 = vpop.f32.mrb[0].mxu0
        %v4889 = vand.u32 %v3650, 4294901760
        %v4890 = vsub.f32 %v3650, %v4889
        %v4891 = vand.u32 %v4890, 4294901760
        %4892 = vmatprep.mubr.f32.mxu0 %v4891
        %v4893 = vand.u32 %v3649, 4294901760
        %v4894 = vsub.f32 %v3649, %v4893
        %v4895 = vand.u32 %v4894, 4294901760
        %4896 = vmatmul.mubr.f32.gmra.mrb[0].mxu0 %v4895
        %v4897 = vpop.f32.mrb[0].mxu0
        %v4898 = vadd.f32 %v4627, %v4897
        %v4899 = vpop.f32.mrb[0].mxu0
        %v4900 = vand.u32 %v3652, 4294901760
        %v4901 = vsub.f32 %v3652, %v4900
        %v4902 = vand.u32 %v4901, 4294901760
        %4903 = vmatprep.mubr.f32.mxu0 %v4902
        %v4904 = vand.u32 %v3651, 4294901760
        %v4905 = vsub.f32 %v3651, %v4904
        %v4906 = vand.u32 %v4905, 4294901760
        %4907 = vmatmul.mubr.f32.gmra.mrb[0].mxu0 %v4906
        %v4908 = vpop.f32.mrb[0].mxu0
        %v4909 = vadd.f32 %v4636, %v4908
        %v4910 = vpop.f32.mrb[0].mxu0
        %4911 = vdwg.mxu0
        %4912 = vmatprep.subr.mxu0 0.0
        %v4913 = vand.u32 %v3653, 4294901760
        %v4914 = vsub.f32 %v3653, %v4913
        %v4915 = vand.u32 %v4914, 4294901760
        %4916 = vmatpush1.msra.mxu0 %v4915
        %4917 = vmatprep.subr.mxu0 0.0
        %v4918 = vand.u32 %v3654, 4294901760
        %v4919 = vsub.f32 %v3654, %v4918
        %v4920 = vand.u32 %v4919, 4294901760
        %4921 = vmatpush1.msra.mxu0 %v4920
        %4922 = vmatprep.subr.mxu0 0.0
        %v4923 = vand.u32 %v3655, 4294901760
        %v4924 = vsub.f32 %v3655, %v4923
        %v4925 = vand.u32 %v4924, 4294901760
        %4926 = vmatpush1.msra.mxu0 %v4925
        %4927 = vmatprep.subr.mxu0 0.0
        %v4928 = vand.u32 %v3656, 4294901760
        %v4929 = vsub.f32 %v3656, %v4928
        %v4930 = vand.u32 %v4929, 4294901760
        %4931 = vmatpush1.msra.mxu0 %v4930
        %4932 = vmatprep.subr.mxu0 0.0
        %v4933 = vand.u32 %v3657, 4294901760
        %v4934 = vsub.f32 %v3657, %v4933
        %v4935 = vand.u32 %v4934, 4294901760
        %4936 = vmatpush1.msra.mxu0 %v4935
        %4937 = vmatprep.subr.mxu0 0.0
        %v4938 = vand.u32 %v3658, 4294901760
        %v4939 = vsub.f32 %v3658, %v4938
        %v4940 = vand.u32 %v4939, 4294901760
        %4941 = vmatpush1.msra.mxu0 %v4940
        %4942 = vmatprep.subr.mxu0 0.0
        %v4943 = vand.u32 %v3659, 4294901760
        %v4944 = vsub.f32 %v3659, %v4943
        %v4945 = vand.u32 %v4944, 4294901760
        %4946 = vmatpush1.msra.mxu0 %v4945
        %4947 = vmatprep.subr.mxu0 0.0
        %v4948 = vand.u32 %v3660, 4294901760
        %v4949 = vsub.f32 %v3660, %v4948
        %v4950 = vand.u32 %v4949, 4294901760
        %4951 = vmatpush1.msra.mxu0 %v4950
        %4952 = vmatprep.subr.mxu0 0.0
        %v4953 = vand.u32 %v3661, 4294901760
        %v4954 = vsub.f32 %v3661, %v4953
        %v4955 = vand.u32 %v4954, 4294901760
        %4956 = vmatpush1.msra.mxu0 %v4955
        %4957 = vmatprep.subr.mxu0 0.0
        %v4958 = vand.u32 %v3662, 4294901760
        %v4959 = vsub.f32 %v3662, %v4958
        %v4960 = vand.u32 %v4959, 4294901760
        %4961 = vmatpush1.msra.mxu0 %v4960
        %4962 = vmatprep.subr.mxu0 0.0
        %v4963 = vand.u32 %v3663, 4294901760
        %v4964 = vsub.f32 %v3663, %v4963
        %v4965 = vand.u32 %v4964, 4294901760
        %4966 = vmatpush1.msra.mxu0 %v4965
        %4967 = vmatprep.subr.mxu0 0.0
        %v4968 = vand.u32 %v3664, 4294901760
        %v4969 = vsub.f32 %v3664, %v4968
        %v4970 = vand.u32 %v4969, 4294901760
        %4971 = vmatpush1.msra.mxu0 %v4970
        %4972 = vmatprep.subr.mxu0 0.0
        %v4973 = vand.u32 %v3665, 4294901760
        %v4974 = vsub.f32 %v3665, %v4973
        %v4975 = vand.u32 %v4974, 4294901760
        %4976 = vmatpush1.msra.mxu0 %v4975
        %4977 = vmatprep.subr.mxu0 0.0
        %v4978 = vand.u32 %v3666, 4294901760
        %v4979 = vsub.f32 %v3666, %v4978
        %v4980 = vand.u32 %v4979, 4294901760
        %4981 = vmatpush1.msra.mxu0 %v4980
        %4982 = vmatprep.subr.mxu0 0.0
        %v4983 = vand.u32 %v3667, 4294901760
        %v4984 = vsub.f32 %v3667, %v4983
        %v4985 = vand.u32 %v4984, 4294901760
        %4986 = vmatpush1.msra.mxu0 %v4985
        %4987 = vmatprep.subr.mxu0 0.0
        %v4988 = vand.u32 %v3668, 4294901760
        %v4989 = vsub.f32 %v3668, %v4988
        %v4990 = vand.u32 %v4989, 4294901760
        %4991 = vmatpush1.msra.mxu0 %v4990
        %4992 = vmatprep.subr.mxu0 0.0
        %v4993 = vand.u32 %v3669, 4294901760
        %v4994 = vsub.f32 %v3669, %v4993
        %v4995 = vand.u32 %v4994, 4294901760
        %4996 = vmatpush1.msra.mxu0 %v4995
        %4997 = vmatprep.subr.mxu0 0.0
        %v4998 = vand.u32 %v3670, 4294901760
        %v4999 = vsub.f32 %v3670, %v4998
        %v5000 = vand.u32 %v4999, 4294901760
        %5001 = vmatpush1.msra.mxu0 %v5000
        %5002 = vmatprep.subr.mxu0 0.0
        %v5003 = vand.u32 %v3671, 4294901760
        %v5004 = vsub.f32 %v3671, %v5003
        %v5005 = vand.u32 %v5004, 4294901760
        %5006 = vmatpush1.msra.mxu0 %v5005
        %5007 = vmatprep.subr.mxu0 0.0
        %v5008 = vand.u32 %v3672, 4294901760
        %v5009 = vsub.f32 %v3672, %v5008
        %v5010 = vand.u32 %v5009, 4294901760
        %5011 = vmatpush1.msra.mxu0 %v5010
        %5012 = vmatprep.subr.mxu0 0.0
        %v5013 = vand.u32 %v3673, 4294901760
        %v5014 = vsub.f32 %v3673, %v5013
        %v5015 = vand.u32 %v5014, 4294901760
        %5016 = vmatpush1.msra.mxu0 %v5015
        %5017 = vmatprep.subr.mxu0 0.0
        %v5018 = vand.u32 %v3674, 4294901760
        %v5019 = vsub.f32 %v3674, %v5018
        %v5020 = vand.u32 %v5019, 4294901760
        %5021 = vmatpush1.msra.mxu0 %v5020
        %5022 = vmatprep.subr.mxu0 0.0
        %v5023 = vand.u32 %v3675, 4294901760
        %v5024 = vsub.f32 %v3675, %v5023
        %v5025 = vand.u32 %v5024, 4294901760
        %5026 = vmatpush1.msra.mxu0 %v5025
        %5027 = vmatprep.subr.mxu0 0.0
        %v5028 = vand.u32 %v3676, 4294901760
        %v5029 = vsub.f32 %v3676, %v5028
        %v5030 = vand.u32 %v5029, 4294901760
        %5031 = vmatpush1.msra.mxu0 %v5030
        %5032 = vmatprep.subr.mxu0 0.0
        %v5033 = vand.u32 %v3677, 4294901760
        %v5034 = vsub.f32 %v3677, %v5033
        %v5035 = vand.u32 %v5034, 4294901760
        %5036 = vmatpush1.msra.mxu0 %v5035
        %5037 = vmatprep.subr.mxu0 0.0
        %v5038 = vand.u32 %v3678, 4294901760
        %v5039 = vsub.f32 %v3678, %v5038
        %v5040 = vand.u32 %v5039, 4294901760
        %5041 = vmatpush1.msra.mxu0 %v5040
        %5042 = vmatprep.subr.mxu0 0.0
        %v5043 = vand.u32 %v3679, 4294901760
        %v5044 = vsub.f32 %v3679, %v5043
        %v5045 = vand.u32 %v5044, 4294901760
        %5046 = vmatpush1.msra.mxu0 %v5045
        %5047 = vmatprep.subr.mxu0 0.0
        %v5048 = vand.u32 %v3680, 4294901760
        %v5049 = vsub.f32 %v3680, %v5048
        %v5050 = vand.u32 %v5049, 4294901760
        %5051 = vmatpush1.msra.mxu0 %v5050
        %5052 = vmatprep.subr.mxu0 0.0
        %v5053 = vand.u32 %v3681, 4294901760
        %v5054 = vsub.f32 %v3681, %v5053
        %v5055 = vand.u32 %v5054, 4294901760
        %5056 = vmatpush1.msra.mxu0 %v5055
        %5057 = vmatprep.subr.mxu0 0.0
        %v5058 = vand.u32 %v3682, 4294901760
        %v5059 = vsub.f32 %v3682, %v5058
        %v5060 = vand.u32 %v5059, 4294901760
        %5061 = vmatpush1.msra.mxu0 %v5060
        %5062 = vmatprep.subr.mxu0 0.0
        %v5063 = vand.u32 %v3683, 4294901760
        %v5064 = vsub.f32 %v3683, %v5063
        %v5065 = vand.u32 %v5064, 4294901760
        %5066 = vmatpush1.msra.mxu0 %v5065
        %5067 = vmatprep.subr.mxu0 0.0
        %v5068 = vand.u32 %v3684, 4294901760
        %v5069 = vsub.f32 %v3684, %v5068
        %v5070 = vand.u32 %v5069, 4294901760
        %5071 = vmatpush1.msra.mxu0 %v5070
        %v5072 = vand.u32 %v3622, 4294901760
        %5073 = vmatprep.mubr.f32.mxu0 %v5072
        %v5074 = vand.u32 %v3621, 4294901760
        %5075 = vmatmul.mubr.f32.gmra.mrb[0].mxu0 %v5074
        %v5076 = vpop.f32.mrb[0].mxu0
        %v5077 = vadd.f32 %v4744, %v5076
        %v5078 = vpop.f32.mrb[0].mxu0
        %v5079 = vand.u32 %v3624, 4294901760
        %5080 = vmatprep.mubr.f32.mxu0 %v5079
        %v5081 = vand.u32 %v3623, 4294901760
        %5082 = vmatmul.mubr.f32.gmra.mrb[0].mxu0 %v5081
        %v5083 = vpop.f32.mrb[0].mxu0
        %v5084 = vadd.f32 %v4755, %v5083
        %v5085 = vpop.f32.mrb[0].mxu0
        %v5086 = vand.u32 %v3626, 4294901760
        %5087 = vmatprep.mubr.f32.mxu0 %v5086
        %v5088 = vand.u32 %v3625, 4294901760
        %5089 = vmatmul.mubr.f32.gmra.mrb[0].mxu0 %v5088
        %v5090 = vpop.f32.mrb[0].mxu0
        %v5091 = vadd.f32 %v4766, %v5090
        %v5092 = vpop.f32.mrb[0].mxu0
        %v5093 = vand.u32 %v3628, 4294901760
        %5094 = vmatprep.mubr.f32.mxu0 %v5093
        %v5095 = vand.u32 %v3627, 4294901760
        %5096 = vmatmul.mubr.f32.gmra.mrb[0].mxu0 %v5095
        %v5097 = vpop.f32.mrb[0].mxu0
        %v5098 = vadd.f32 %v4777, %v5097
        %v5099 = vpop.f32.mrb[0].mxu0
        %v5100 = vand.u32 %v3630, 4294901760
        %5101 = vmatprep.mubr.f32.mxu0 %v5100
        %v5102 = vand.u32 %v3629, 4294901760
        %5103 = vmatmul.mubr.f32.gmra.mrb[0].mxu0 %v5102
        %v5104 = vpop.f32.mrb[0].mxu0
        %v5105 = vadd.f32 %v4788, %v5104
        %v5106 = vpop.f32.mrb[0].mxu0
        %v5107 = vand.u32 %v3632, 4294901760
        %5108 = vmatprep.mubr.f32.mxu0 %v5107
        %v5109 = vand.u32 %v3631, 4294901760
        %5110 = vmatmul.mubr.f32.gmra.mrb[0].mxu0 %v5109
        %v5111 = vpop.f32.mrb[0].mxu0
        %v5112 = vadd.f32 %v4799, %v5111
        %v5113 = vpop.f32.mrb[0].mxu0
        %v5114 = vand.u32 %v3634, 4294901760
        %5115 = vmatprep.mubr.f32.mxu0 %v5114
        %v5116 = vand.u32 %v3633, 4294901760
        %5117 = vmatmul.mubr.f32.gmra.mrb[0].mxu0 %v5116
        %v5118 = vpop.f32.mrb[0].mxu0
        %v5119 = vadd.f32 %v4810, %v5118
        %v5120 = vpop.f32.mrb[0].mxu0
        %v5121 = vand.u32 %v3636, 4294901760
        %5122 = vmatprep.mubr.f32.mxu0 %v5121
        %v5123 = vand.u32 %v3635, 4294901760
        %5124 = vmatmul.mubr.f32.gmra.mrb[0].mxu0 %v5123
        %v5125 = vpop.f32.mrb[0].mxu0
        %v5126 = vadd.f32 %v4821, %v5125
        %v5127 = vpop.f32.mrb[0].mxu0
        %v5128 = vand.u32 %v3638, 4294901760
        %5129 = vmatprep.mubr.f32.mxu0 %v5128
        %v5130 = vand.u32 %v3637, 4294901760
        %5131 = vmatmul.mubr.f32.gmra.mrb[0].mxu0 %v5130
        %v5132 = vpop.f32.mrb[0].mxu0
        %v5133 = vadd.f32 %v4832, %v5132
        %v5134 = vpop.f32.mrb[0].mxu0
        %v5135 = vand.u32 %v3640, 4294901760
        %5136 = vmatprep.mubr.f32.mxu0 %v5135
        %v5137 = vand.u32 %v3639, 4294901760
        %5138 = vmatmul.mubr.f32.gmra.mrb[0].mxu0 %v5137
        %v5139 = vpop.f32.mrb[0].mxu0
        %v5140 = vadd.f32 %v4843, %v5139
        %v5141 = vpop.f32.mrb[0].mxu0
        %v5142 = vand.u32 %v3642, 4294901760
        %5143 = vmatprep.mubr.f32.mxu0 %v5142
        %v5144 = vand.u32 %v3641, 4294901760
        %5145 = vmatmul.mubr.f32.gmra.mrb[0].mxu0 %v5144
        %v5146 = vpop.f32.mrb[0].mxu0
        %v5147 = vadd.f32 %v4854, %v5146
        %v5148 = vpop.f32.mrb[0].mxu0
        %v5149 = vand.u32 %v3644, 4294901760
        %5150 = vmatprep.mubr.f32.mxu0 %v5149
        %v5151 = vand.u32 %v3643, 4294901760
        %5152 = vmatmul.mubr.f32.gmra.mrb[0].mxu0 %v5151
        %v5153 = vpop.f32.mrb[0].mxu0
        %v5154 = vadd.f32 %v4865, %v5153
        %v5155 = vpop.f32.mrb[0].mxu0
        %v5156 = vand.u32 %v3646, 4294901760
        %5157 = vmatprep.mubr.f32.mxu0 %v5156
        %v5158 = vand.u32 %v3645, 4294901760
        %5159 = vmatmul.mubr.f32.gmra.mrb[0].mxu0 %v5158
        %v5160 = vpop.f32.mrb[0].mxu0
        %v5161 = vadd.f32 %v4876, %v5160
        %v5162 = vpop.f32.mrb[0].mxu0
        %v5163 = vand.u32 %v3648, 4294901760
        %5164 = vmatprep.mubr.f32.mxu0 %v5163
        %v5165 = vand.u32 %v3647, 4294901760
        %5166 = vmatmul.mubr.f32.gmra.mrb[0].mxu0 %v5165
        %v5167 = vpop.f32.mrb[0].mxu0
        %v5168 = vadd.f32 %v4887, %v5167
        %v5169 = vpop.f32.mrb[0].mxu0
        %v5170 = vand.u32 %v3650, 4294901760
        %5171 = vmatprep.mubr.f32.mxu0 %v5170
        %v5172 = vand.u32 %v3649, 4294901760
        %5173 = vmatmul.mubr.f32.gmra.mrb[0].mxu0 %v5172
        %v5174 = vpop.f32.mrb[0].mxu0
        %v5175 = vadd.f32 %v4898, %v5174
        %v5176 = vpop.f32.mrb[0].mxu0
        %v5177 = vand.u32 %v3652, 4294901760
        %5178 = vmatprep.mubr.f32.mxu0 %v5177
        %v5179 = vand.u32 %v3651, 4294901760
        %5180 = vmatmul.mubr.f32.gmra.mrb[0].mxu0 %v5179
        %v5181 = vpop.f32.mrb[0].mxu0
        %v5182 = vadd.f32 %v4909, %v5181
        %v5183 = vpop.f32.mrb[0].mxu0
        %5184 = vdwg.mxu0
        %5185 = vmatprep.subr.mxu0 0.0
        %v5186 = vand.u32 %v3653, 4294901760
        %5187 = vmatpush1.msra.mxu0 %v5186
        %5188 = vmatprep.subr.mxu0 0.0
        %v5189 = vand.u32 %v3654, 4294901760
        %5190 = vmatpush1.msra.mxu0 %v5189
        %5191 = vmatprep.subr.mxu0 0.0
        %v5192 = vand.u32 %v3655, 4294901760
        %5193 = vmatpush1.msra.mxu0 %v5192
        %5194 = vmatprep.subr.mxu0 0.0
        %v5195 = vand.u32 %v3656, 4294901760
        %5196 = vmatpush1.msra.mxu0 %v5195
        %5197 = vmatprep.subr.mxu0 0.0
        %v5198 = vand.u32 %v3657, 4294901760
        %5199 = vmatpush1.msra.mxu0 %v5198
        %5200 = vmatprep.subr.mxu0 0.0
        %v5201 = vand.u32 %v3658, 4294901760
        %5202 = vmatpush1.msra.mxu0 %v5201
        %5203 = vmatprep.subr.mxu0 0.0
        %v5204 = vand.u32 %v3659, 4294901760
        %5205 = vmatpush1.msra.mxu0 %v5204
        %5206 = vmatprep.subr.mxu0 0.0
        %v5207 = vand.u32 %v3660, 4294901760
        %5208 = vmatpush1.msra.mxu0 %v5207
        %5209 = vmatprep.subr.mxu0 0.0
        %v5210 = vand.u32 %v3661, 4294901760
        %5211 = vmatpush1.msra.mxu0 %v5210
        %5212 = vmatprep.subr.mxu0 0.0
        %v5213 = vand.u32 %v3662, 4294901760
        %5214 = vmatpush1.msra.mxu0 %v5213
        %5215 = vmatprep.subr.mxu0 0.0
        %v5216 = vand.u32 %v3663, 4294901760
        %5217 = vmatpush1.msra.mxu0 %v5216
        %5218 = vmatprep.subr.mxu0 0.0
        %v5219 = vand.u32 %v3664, 4294901760
        %5220 = vmatpush1.msra.mxu0 %v5219
        %5221 = vmatprep.subr.mxu0 0.0
        %v5222 = vand.u32 %v3665, 4294901760
        %5223 = vmatpush1.msra.mxu0 %v5222
        %5224 = vmatprep.subr.mxu0 0.0
        %v5225 = vand.u32 %v3666, 4294901760
        %5226 = vmatpush1.msra.mxu0 %v5225
        %5227 = vmatprep.subr.mxu0 0.0
        %v5228 = vand.u32 %v3667, 4294901760
        %5229 = vmatpush1.msra.mxu0 %v5228
        %5230 = vmatprep.subr.mxu0 0.0
        %v5231 = vand.u32 %v3668, 4294901760
        %5232 = vmatpush1.msra.mxu0 %v5231
        %5233 = vmatprep.subr.mxu0 0.0
        %v5234 = vand.u32 %v3669, 4294901760
        %5235 = vmatpush1.msra.mxu0 %v5234
        %5236 = vmatprep.subr.mxu0 0.0
        %v5237 = vand.u32 %v3670, 4294901760
        %5238 = vmatpush1.msra.mxu0 %v5237
        %5239 = vmatprep.subr.mxu0 0.0
        %v5240 = vand.u32 %v3671, 4294901760
        %5241 = vmatpush1.msra.mxu0 %v5240
        %5242 = vmatprep.subr.mxu0 0.0
        %v5243 = vand.u32 %v3672, 4294901760
        %5244 = vmatpush1.msra.mxu0 %v5243
        %5245 = vmatprep.subr.mxu0 0.0
        %v5246 = vand.u32 %v3673, 4294901760
        %5247 = vmatpush1.msra.mxu0 %v5246
        %5248 = vmatprep.subr.mxu0 0.0
        %v5249 = vand.u32 %v3674, 4294901760
        %5250 = vmatpush1.msra.mxu0 %v5249
        %5251 = vmatprep.subr.mxu0 0.0
        %v5252 = vand.u32 %v3675, 4294901760
        %5253 = vmatpush1.msra.mxu0 %v5252
        %5254 = vmatprep.subr.mxu0 0.0
        %v5255 = vand.u32 %v3676, 4294901760
        %5256 = vmatpush1.msra.mxu0 %v5255
        %5257 = vmatprep.subr.mxu0 0.0
        %v5258 = vand.u32 %v3677, 4294901760
        %5259 = vmatpush1.msra.mxu0 %v5258
        %5260 = vmatprep.subr.mxu0 0.0
        %v5261 = vand.u32 %v3678, 4294901760
        %5262 = vmatpush1.msra.mxu0 %v5261
        %5263 = vmatprep.subr.mxu0 0.0
        %v5264 = vand.u32 %v3679, 4294901760
        %5265 = vmatpush1.msra.mxu0 %v5264
        %5266 = vmatprep.subr.mxu0 0.0
        %v5267 = vand.u32 %v3680, 4294901760
        %5268 = vmatpush1.msra.mxu0 %v5267
        %5269 = vmatprep.subr.mxu0 0.0
        %v5270 = vand.u32 %v3681, 4294901760
        %5271 = vmatpush1.msra.mxu0 %v5270
        %5272 = vmatprep.subr.mxu0 0.0
        %v5273 = vand.u32 %v3682, 4294901760
        %5274 = vmatpush1.msra.mxu0 %v5273
        %5275 = vmatprep.subr.mxu0 0.0
        %v5276 = vand.u32 %v3683, 4294901760
        %5277 = vmatpush1.msra.mxu0 %v5276
        %5278 = vmatprep.subr.mxu0 0.0
        %v5279 = vand.u32 %v3684, 4294901760
        %5280 = vmatpush1.msra.mxu0 %v5279
        %v5281 = vand.u32 %v3622, 4294901760
        %5282 = vmatprep.mubr.f32.mxu0 %v5281
        %v5283 = vand.u32 %v3621, 4294901760
        %5284 = vmatmul.mubr.f32.gmra.mrb[0].mxu0 %v5283
        %v5285 = vpop.f32.mrb[0].mxu0
        %v5286 = vadd.f32 %v5077, %v5285
        %v5287 = vpop.f32.mrb[0].mxu0
        %v5288 = vand.u32 %v3624, 4294901760
        %5289 = vmatprep.mubr.f32.mxu0 %v5288
        %v5290 = vand.u32 %v3623, 4294901760
        %5291 = vmatmul.mubr.f32.gmra.mrb[0].mxu0 %v5290
        %v5292 = vpop.f32.mrb[0].mxu0
        %v5293 = vadd.f32 %v5084, %v5292
        %v5294 = vpop.f32.mrb[0].mxu0
        %v5295 = vand.u32 %v3626, 4294901760
        %5296 = vmatprep.mubr.f32.mxu0 %v5295
        %v5297 = vand.u32 %v3625, 4294901760
        %5298 = vmatmul.mubr.f32.gmra.mrb[0].mxu0 %v5297
        %v5299 = vpop.f32.mrb[0].mxu0
        %v5300 = vadd.f32 %v5091, %v5299
        %v5301 = vpop.f32.mrb[0].mxu0
        %v5302 = vand.u32 %v3628, 4294901760
        %5303 = vmatprep.mubr.f32.mxu0 %v5302
        %v5304 = vand.u32 %v3627, 4294901760
        %5305 = vmatmul.mubr.f32.gmra.mrb[0].mxu0 %v5304
        %v5306 = vpop.f32.mrb[0].mxu0
        %v5307 = vadd.f32 %v5098, %v5306
        %v5308 = vpop.f32.mrb[0].mxu0
        %v5309 = vand.u32 %v3630, 4294901760
        %5310 = vmatprep.mubr.f32.mxu0 %v5309
        %v5311 = vand.u32 %v3629, 4294901760
        %5312 = vmatmul.mubr.f32.gmra.mrb[0].mxu0 %v5311
        %v5313 = vpop.f32.mrb[0].mxu0
        %v5314 = vadd.f32 %v5105, %v5313
        %v5315 = vpop.f32.mrb[0].mxu0
        %v5316 = vand.u32 %v3632, 4294901760
        %5317 = vmatprep.mubr.f32.mxu0 %v5316
        %v5318 = vand.u32 %v3631, 4294901760
        %5319 = vmatmul.mubr.f32.gmra.mrb[0].mxu0 %v5318
        %v5320 = vpop.f32.mrb[0].mxu0
        %v5321 = vadd.f32 %v5112, %v5320
        %v5322 = vpop.f32.mrb[0].mxu0
        %v5323 = vand.u32 %v3634, 4294901760
        %5324 = vmatprep.mubr.f32.mxu0 %v5323
        %v5325 = vand.u32 %v3633, 4294901760
        %5326 = vmatmul.mubr.f32.gmra.mrb[0].mxu0 %v5325
        %v5327 = vpop.f32.mrb[0].mxu0
        %v5328 = vadd.f32 %v5119, %v5327
        %v5329 = vpop.f32.mrb[0].mxu0
        %v5330 = vand.u32 %v3636, 4294901760
        %5331 = vmatprep.mubr.f32.mxu0 %v5330
        %v5332 = vand.u32 %v3635, 4294901760
        %5333 = vmatmul.mubr.f32.gmra.mrb[0].mxu0 %v5332
        %v5334 = vpop.f32.mrb[0].mxu0
        %v5335 = vadd.f32 %v5126, %v5334
        %v5336 = vpop.f32.mrb[0].mxu0
        %v5337 = vand.u32 %v3638, 4294901760
        %5338 = vmatprep.mubr.f32.mxu0 %v5337
        %v5339 = vand.u32 %v3637, 4294901760
        %5340 = vmatmul.mubr.f32.gmra.mrb[0].mxu0 %v5339
        %v5341 = vpop.f32.mrb[0].mxu0
        %v5342 = vadd.f32 %v5133, %v5341
        %v5343 = vpop.f32.mrb[0].mxu0
        %v5344 = vand.u32 %v3640, 4294901760
        %5345 = vmatprep.mubr.f32.mxu0 %v5344
        %v5346 = vand.u32 %v3639, 4294901760
        %5347 = vmatmul.mubr.f32.gmra.mrb[0].mxu0 %v5346
        %v5348 = vpop.f32.mrb[0].mxu0
        %v5349 = vadd.f32 %v5140, %v5348
        %v5350 = vpop.f32.mrb[0].mxu0
        %v5351 = vand.u32 %v3642, 4294901760
        %5352 = vmatprep.mubr.f32.mxu0 %v5351
        %v5353 = vand.u32 %v3641, 4294901760
        %5354 = vmatmul.mubr.f32.gmra.mrb[0].mxu0 %v5353
        %v5355 = vpop.f32.mrb[0].mxu0
        %v5356 = vadd.f32 %v5147, %v5355
        %v5357 = vpop.f32.mrb[0].mxu0
        %v5358 = vand.u32 %v3644, 4294901760
        %5359 = vmatprep.mubr.f32.mxu0 %v5358
        %v5360 = vand.u32 %v3643, 4294901760
        %5361 = vmatmul.mubr.f32.gmra.mrb[0].mxu0 %v5360
        %v5362 = vpop.f32.mrb[0].mxu0
        %v5363 = vadd.f32 %v5154, %v5362
        %v5364 = vpop.f32.mrb[0].mxu0
        %v5365 = vand.u32 %v3646, 4294901760
        %5366 = vmatprep.mubr.f32.mxu0 %v5365
        %v5367 = vand.u32 %v3645, 4294901760
        %5368 = vmatmul.mubr.f32.gmra.mrb[0].mxu0 %v5367
        %v5369 = vpop.f32.mrb[0].mxu0
        %v5370 = vadd.f32 %v5161, %v5369
        %v5371 = vpop.f32.mrb[0].mxu0
        %v5372 = vand.u32 %v3648, 4294901760
        %5373 = vmatprep.mubr.f32.mxu0 %v5372
        %v5374 = vand.u32 %v3647, 4294901760
        %5375 = vmatmul.mubr.f32.gmra.mrb[0].mxu0 %v5374
        %v5376 = vpop.f32.mrb[0].mxu0
        %v5377 = vadd.f32 %v5168, %v5376
        %v5378 = vpop.f32.mrb[0].mxu0
        %v5379 = vand.u32 %v3650, 4294901760
        %5380 = vmatprep.mubr.f32.mxu0 %v5379
        %v5381 = vand.u32 %v3649, 4294901760
        %5382 = vmatmul.mubr.f32.gmra.mrb[0].mxu0 %v5381
        %v5383 = vpop.f32.mrb[0].mxu0
        %v5384 = vadd.f32 %v5175, %v5383
        %v5385 = vpop.f32.mrb[0].mxu0
        %v5386 = vand.u32 %v3652, 4294901760
        %5387 = vmatprep.mubr.f32.mxu0 %v5386
        %v5388 = vand.u32 %v3651, 4294901760
        %5389 = vmatmul.mubr.f32.gmra.mrb[0].mxu0 %v5388
        %v5390 = vpop.f32.mrb[0].mxu0
        %v5391 = vadd.f32 %v5182, %v5390
        %v5392 = vpop.f32.mrb[0].mxu0
        %5393 = vdwg.mxu0
        %5394 = vmax.xlane.f32.xlu0 %v5286
        %v5395 = vpop.xlane.xlu0 %5394
        %5396 = vmax.xlane.f32.xlu0 %v5293
        %v5397 = vpop.xlane.xlu0 %5396
        %5398 = vmax.xlane.f32.xlu0 %v5300
        %v5399 = vpop.xlane.xlu0 %5398
        %5400 = vmax.xlane.f32.xlu0 %v5307
        %v5401 = vpop.xlane.xlu0 %5400
        %5402 = vmax.xlane.f32.xlu0 %v5314
        %v5403 = vpop.xlane.xlu0 %5402
        %5404 = vmax.xlane.f32.xlu0 %v5321
        %v5405 = vpop.xlane.xlu0 %5404
        %5406 = vmax.xlane.f32.xlu0 %v5328
        %v5407 = vpop.xlane.xlu0 %5406
        %5408 = vmax.xlane.f32.xlu0 %v5335
        %v5409 = vpop.xlane.xlu0 %5408
        %5410 = vmax.xlane.f32.xlu0 %v5342
        %v5411 = vpop.xlane.xlu0 %5410
        %5412 = vmax.xlane.f32.xlu0 %v5349
        %v5413 = vpop.xlane.xlu0 %5412
        %5414 = vmax.xlane.f32.xlu0 %v5356
        %v5415 = vpop.xlane.xlu0 %5414
        %5416 = vmax.xlane.f32.xlu0 %v5363
        %v5417 = vpop.xlane.xlu0 %5416
        %5418 = vmax.xlane.f32.xlu0 %v5370
        %v5419 = vpop.xlane.xlu0 %5418
        %5420 = vmax.xlane.f32.xlu0 %v5377
        %v5421 = vpop.xlane.xlu0 %5420
        %5422 = vmax.xlane.f32.xlu0 %v5384
        %v5423 = vpop.xlane.xlu0 %5422
        %5424 = vmax.xlane.f32.xlu0 %v5391
        %v5425 = vpop.xlane.xlu0 %5424
        %v5426 = vsub.f32 %v5286, %v5395
        %v5427 = vsub.f32 %v5293, %v5397
        %v5428 = vsub.f32 %v5300, %v5399
        %v5429 = vsub.f32 %v5307, %v5401
        %v5430 = vsub.f32 %v5314, %v5403
        %v5431 = vsub.f32 %v5321, %v5405
        %v5432 = vsub.f32 %v5328, %v5407
        %v5433 = vsub.f32 %v5335, %v5409
        %v5434 = vsub.f32 %v5342, %v5411
        %v5435 = vsub.f32 %v5349, %v5413
        %v5436 = vsub.f32 %v5356, %v5415
        %v5437 = vsub.f32 %v5363, %v5417
        %v5438 = vsub.f32 %v5370, %v5419
        %v5439 = vsub.f32 %v5377, %v5421
        %v5440 = vsub.f32 %v5384, %v5423
        %v5441 = vsub.f32 %v5391, %v5425
        %v5442 = vmul.f32 %v5426, 1.442695
        %v5443 = vpow.pop %v5442
        %v5444 = vmul.f32 %v5427, 1.442695
        %v5445 = vpow.pop %v5444
        %v5446 = vmul.f32 %v5428, 1.442695
        %v5447 = vpow.pop %v5446
        %v5448 = vmul.f32 %v5429, 1.442695
        %v5449 = vpow.pop %v5448
        %v5450 = vmul.f32 %v5430, 1.442695
        %v5451 = vpow.pop %v5450
        %v5452 = vmul.f32 %v5431, 1.442695
        %v5453 = vpow.pop %v5452
        %v5454 = vmul.f32 %v5432, 1.442695
        %v5455 = vpow.pop %v5454
        %v5456 = vmul.f32 %v5433, 1.442695
        %v5457 = vpow.pop %v5456
        %v5458 = vmul.f32 %v5434, 1.442695
        %v5459 = vpow.pop %v5458
        %v5460 = vmul.f32 %v5435, 1.442695
        %v5461 = vpow.pop %v5460
        %v5462 = vmul.f32 %v5436, 1.442695
        %v5463 = vpow.pop %v5462
        %v5464 = vmul.f32 %v5437, 1.442695
        %v5465 = vpow.pop %v5464
        %v5466 = vmul.f32 %v5438, 1.442695
        %v5467 = vpow.pop %v5466
        %v5468 = vmul.f32 %v5439, 1.442695
        %v5469 = vpow.pop %v5468
        %v5470 = vmul.f32 %v5440, 1.442695
        %v5471 = vpow.pop %v5470
        %v5472 = vmul.f32 %v5441, 1.442695
        %v5473 = vpow.pop %v5472
        %5474 = vadd.xlane.f32.xlu0 %v5443
        %v5475 = vpop.xlane.xlu0 %5474
        %5476 = vadd.xlane.f32.xlu0 %v5445
        %v5477 = vpop.xlane.xlu0 %5476
        %5478 = vadd.xlane.f32.xlu0 %v5447
        %v5479 = vpop.xlane.xlu0 %5478
        %5480 = vadd.xlane.f32.xlu0 %v5449
        %v5481 = vpop.xlane.xlu0 %5480
        %5482 = vadd.xlane.f32.xlu0 %v5451
        %v5483 = vpop.xlane.xlu0 %5482
        %5484 = vadd.xlane.f32.xlu0 %v5453
        %v5485 = vpop.xlane.xlu0 %5484
        %5486 = vadd.xlane.f32.xlu0 %v5455
        %v5487 = vpop.xlane.xlu0 %5486
        %5488 = vadd.xlane.f32.xlu0 %v5457
        %v5489 = vpop.xlane.xlu0 %5488
        %5490 = vadd.xlane.f32.xlu0 %v5459
        %v5491 = vpop.xlane.xlu0 %5490
        %5492 = vadd.xlane.f32.xlu0 %v5461
        %v5493 = vpop.xlane.xlu0 %5492
        %5494 = vadd.xlane.f32.xlu0 %v5463
        %v5495 = vpop.xlane.xlu0 %5494
        %5496 = vadd.xlane.f32.xlu0 %v5465
        %v5497 = vpop.xlane.xlu0 %5496
        %5498 = vadd.xlane.f32.xlu0 %v5467
        %v5499 = vpop.xlane.xlu0 %5498
        %5500 = vadd.xlane.f32.xlu0 %v5469
        %v5501 = vpop.xlane.xlu0 %5500
        %5502 = vadd.xlane.f32.xlu0 %v5471
        %v5503 = vpop.xlane.xlu0 %5502
        %5504 = vadd.xlane.f32.xlu0 %v5473
        %v5505 = vpop.xlane.xlu0 %5504
        %v5506 = vlog2.pop %v5475
        %v5507 = vmul.f32 %v5506, 0.6931472
        %v5508 = vlog2.pop %v5477
        %v5509 = vmul.f32 %v5508, 0.6931472
        %v5510 = vlog2.pop %v5479
        %v5511 = vmul.f32 %v5510, 0.6931472
        %v5512 = vlog2.pop %v5481
        %v5513 = vmul.f32 %v5512, 0.6931472
        %v5514 = vlog2.pop %v5483
        %v5515 = vmul.f32 %v5514, 0.6931472
        %v5516 = vlog2.pop %v5485
        %v5517 = vmul.f32 %v5516, 0.6931472
        %v5518 = vlog2.pop %v5487
        %v5519 = vmul.f32 %v5518, 0.6931472
        %v5520 = vlog2.pop %v5489
        %v5521 = vmul.f32 %v5520, 0.6931472
        %v5522 = vlog2.pop %v5491
        %v5523 = vmul.f32 %v5522, 0.6931472
        %v5524 = vlog2.pop %v5493
        %v5525 = vmul.f32 %v5524, 0.6931472
        %v5526 = vlog2.pop %v5495
        %v5527 = vmul.f32 %v5526, 0.6931472
        %v5528 = vlog2.pop %v5497
        %v5529 = vmul.f32 %v5528, 0.6931472
        %v5530 = vlog2.pop %v5499
        %v5531 = vmul.f32 %v5530, 0.6931472
        %v5532 = vlog2.pop %v5501
        %v5533 = vmul.f32 %v5532, 0.6931472
        %v5534 = vlog2.pop %v5503
        %v5535 = vmul.f32 %v5534, 0.6931472
        %v5536 = vlog2.pop %v5505
        %v5537 = vmul.f32 %v5536, 0.6931472
        %v5538 = vsub.f32 %v5426, %v5507
        %v5539 = vsub.f32 %v5427, %v5509
        %v5540 = vsub.f32 %v5428, %v5511
        %v5541 = vsub.f32 %v5429, %v5513
        %v5542 = vsub.f32 %v5430, %v5515
        %v5543 = vsub.f32 %v5431, %v5517
        %v5544 = vsub.f32 %v5432, %v5519
        %v5545 = vsub.f32 %v5433, %v5521
        %v5546 = vsub.f32 %v5434, %v5523
        %v5547 = vsub.f32 %v5435, %v5525
        %v5548 = vsub.f32 %v5436, %v5527
        %v5549 = vsub.f32 %v5437, %v5529
        %v5550 = vsub.f32 %v5438, %v5531
        %v5551 = vsub.f32 %v5439, %v5533
        %v5552 = vsub.f32 %v5440, %v5535
        %v5553 = vsub.f32 %v5441, %v5537
        %5554 = vst [vmem:[%s275] sm:$0xff] %v5538
        %5555 = vst [vmem:[%s275 + $0x8] sm:$0xff] %v5539
        %5556 = vst [vmem:[%s275 + $0x10] sm:$0xff] %v5540
        %5557 = vst [vmem:[%s275 + $0x18] sm:$0xff] %v5541
        %5558 = vst [vmem:[%s275 + $0x20] sm:$0xff] %v5542
        %5559 = vst [vmem:[%s275 + $0x28] sm:$0xff] %v5543
        %5560 = vst [vmem:[%s275 + $0x30] sm:$0xff] %v5544
        %5561 = vst [vmem:[%s275 + $0x38] sm:$0xff] %v5545
        %5562 = vst [vmem:[%s275 + $0x40] sm:$0xff] %v5546
        %5563 = vst [vmem:[%s275 + $0x48] sm:$0xff] %v5547
        %5564 = vst [vmem:[%s275 + $0x50] sm:$0xff] %v5548
        %5565 = vst [vmem:[%s275 + $0x58] sm:$0xff] %v5549
        %5566 = vst [vmem:[%s275 + $0x60] sm:$0xff] %v5550
        %5567 = vst [vmem:[%s275 + $0x68] sm:$0xff] %v5551
        %5568 = vst [vmem:[%s275 + $0x70] sm:$0xff] %v5552
        %5569 = vst [vmem:[%s275 + $0x78] sm:$0xff] %v5553
        %s5570 = sand.u32 %s161, 1
        %s5571 = scalar_lea.sflag [#allocation4], %s5570
        %s5572 = sand.u32 %s161, 1
        %s5573 = smul.addr %s5572, 128
        %s5574 = scalar_lea.vmem [#allocation7], %s5573
        // Predicated region
        $region53: #{tpu_custom_call.1} parent=43 // pred_check
          %p5575 = pneg %p171
        $region54: #{tpu_custom_call.1} parent=43 // pred_check_branch
          %5577 = sbr.rel (%p5575) target = $region56
        $region55: #{tpu_custom_call.1} parent=43 // pred_region
          %s5578 = smul.u32 16, %s22
          %s5580 = ssub.s32 2048, 2048
          %5581 = vsyncadd %s5571, %s5580
          %s5582 = smul.addr %s5578, 128
          %s5583 = scalar_lea.hbm %s6, %s5582
          %s5584 = sshll.u32 %s5574, 4
          %s5585 = int_to_ptr.vmem [resolvable:$true] %s5584
          %5590 = dma.vmem_to_hbm [thread:$0]  %s5585, 2048, %s5583, %s5571, 128, 128, 8
        $region56: #{tpu_custom_call.1} parent=43 // pred_fallthru
          _
      $region44: #{tpu_custom_call.1} parent=5 // pred_fallthru
        _
      %p5591 = scmp.le.s32.totalorder 2, %s17
      // Predicated region
      $region57: #{tpu_custom_call.1} parent=5 // pred_check
        %p5592 = pneg %p5591
      $region58: #{tpu_custom_call.1} parent=5 // pred_check_branch
        %5594 = sbr.rel (%p5592) target = $region60
      $region59: #{tpu_custom_call.1} parent=5 // pred_region
        %s5595 = ssub.s32 %s17, 2
        // Predicated region
        $region61: #{tpu_custom_call.1} parent=59 // pred_check
          %p5596 = pneg %p177
        $region62: #{tpu_custom_call.1} parent=59 // pred_check_branch
          %5598 = sbr.rel (%p5596) target = $region64
        $region63: #{tpu_custom_call.1} parent=59 // pred_region
          %s5599 = sand.u32 %s162, 1
          %s5600 = scalar_lea.sflag [#allocation4], %s5599
          %s5601 = sand.u32 %s162, 1
          %s5602 = smul.addr %s5601, 128
          %s5603 = scalar_lea.vmem [#allocation7], %s5602
          %5604 = dma.done %s5600, 2048
        $region64: #{tpu_custom_call.1} parent=59 // pred_fallthru
          _
      $region60: #{tpu_custom_call.1} parent=5 // pred_fallthru
        _
    $region6: #{tpu_custom_call.1} parent=1 // loop_footer
      %s21 = sadd.s32 1, %s17
    $region7: #{tpu_custom_call.1} parent=1 // loop_footer_branch
      %16 = sbr.rel target = $region3
    $region8: #{tpu_custom_call.1} parent=1 // loop_exit
      _
    %5605 = vsyncpa [#allocation3], 1
    %s5606 = scalar_lea.sflag [#allocation3], 1
    %5607 = vsyncpa %s5606, 1
    %5608 = vsyncpa [#allocation6], 1
    %5609 = vsyncpa [#allocation4], 1
    %s5610 = scalar_lea.sflag [#allocation4], 1
    %5611 = vsyncpa %s5610, 1

</llo_original>
